<compile_context>
chip_gen: v6e
topology: v6e:2x2x1
jax: 0.10.0
libtpu: 0.0.40
codegen_flags: <defaults>
</compile_context>

<pallas_src>
import functools

import jax
import jax.numpy as jnp
from jax.experimental import pallas as pl
from jax.experimental.pallas import tpu as pltpu

BN_EPS = 1e-5


# ----------------------------------------------------------------------------
# Fused ASPP Pallas kernel (all 5 branches + projection; one output row/step)
# ----------------------------------------------------------------------------
def _make_aspp_kernel(offsets, rates, R, W, Cout):
    """Build the kernel body for static (offsets, rates, halo R, W, Cout)."""
    n_off = len(offsets)
    off_idx = {d: i for i, d in enumerate(offsets)}
    f32 = jnp.float32
    bf16 = jnp.bfloat16

    def kernel(*refs):
        row_refs = refs[:n_off]
        (pooled_ref, w0_ref, w1_ref, w2_ref, w3_ref, w4_ref, wp_ref,
         bias5_ref, biasp_ref,
         f0_ref, f1_ref, f2_ref, f3_ref, f4_ref, proj_ref) = refs[n_off:]
        wd_refs = (w1_ref, w2_ref, w3_ref)
        feat_refs = (f0_ref, f1_ref, f2_ref, f3_ref)

        # Haloed bf16 input rows for the current output row: each (W + 2R, Cin).
        rows = [r[0, 0] for r in row_refs]

        # --- b0: 1x1 conv (+ folded BN bias, ReLU) --------------------------
        center = rows[off_idx[0]][R:R + W, :]
        acc0 = jnp.dot(center, w0_ref[...], preferred_element_type=f32)
        feats = [jnp.maximum(acc0 + bias5_ref[0], 0.0)]          # (W, Cout)

        # --- b1..b3: dilated 3x3 conv as 9 accumulating MXU matmuls ---------
        for b, rate in enumerate(rates):
            w_ref = wd_refs[b]
            acc = None
            for kh in range(3):
                row = rows[off_idx[(kh - 1) * rate]]
                for kw in range(3):
                    s = (kw - 1) * rate + R
                    t = jnp.dot(row[s:s + W, :], w_ref[kh * 3 + kw],
                                preferred_element_type=f32)
                    acc = t if acc is None else acc + t
            feats.append(jnp.maximum(acc + bias5_ref[1 + b], 0.0))

        # --- b4: global-pool branch (1x1 conv on pooled vector) -------------
        acc4 = jnp.dot(pooled_ref[0], w4_ref[...], preferred_element_type=f32)
        f4 = jnp.maximum(acc4 + bias5_ref[4], 0.0)               # (1, Cout)

        # --- projection: 5 accumulating matmuls over the "virtual" concat ---
        pacc = None
        for i in range(4):
            t = jnp.dot(feats[i].astype(bf16), wp_ref[i],
                        preferred_element_type=f32)
            pacc = t if pacc is None else pacc + t
        pacc = pacc + jnp.dot(f4.astype(bf16), wp_ref[4],
                              preferred_element_type=f32)        # bcast (1,Cout)
        proj = jnp.maximum(pacc + biasp_ref[...], 0.0)

        # --- stores (NHWC row blocks) ----------------------------------------
        for i in range(4):
            feat_refs[i][0, 0] = feats[i].astype(feat_refs[i].dtype)
        f4_ref[0, 0] = jnp.broadcast_to(f4, (W, Cout)).astype(f4_ref.dtype)
        proj_ref[0, 0] = proj.astype(proj_ref.dtype)

    return kernel


def _aspp_pallas(xp, pooled, kp, *, rates, N, H, W, Cin, Cout):
    R = max(rates)
    offsets = tuple(sorted({0} | {s * r for r in rates for s in (-1, 1)}))
    kernel = _make_aspp_kernel(offsets, tuple(rates), R, W, Cout)

    # One single-row (haloed) view of the padded input per needed row offset.
    # Block size 1 along H => block index == element row index, so arbitrary
    # static offsets (h + R + d) are expressible with a plain BlockSpec.
    row_specs = [
        pl.BlockSpec((1, 1, W + 2 * R, Cin),
                     lambda n, h, d=d: (n, h + R + d, 0, 0))
        for d in offsets
    ]
    in_specs = row_specs + [
        pl.BlockSpec((1, 1, Cin), lambda n, h: (n, 0, 0)),        # pooled (N,1,Cin)
        pl.BlockSpec((Cin, Cout), lambda n, h: (0, 0)),           # w0
        pl.BlockSpec((9, Cin, Cout), lambda n, h: (0, 0, 0)),     # w1
        pl.BlockSpec((9, Cin, Cout), lambda n, h: (0, 0, 0)),     # w2
        pl.BlockSpec((9, Cin, Cout), lambda n, h: (0, 0, 0)),     # w3
        pl.BlockSpec((Cin, Cout), lambda n, h: (0, 0)),           # w4
        pl.BlockSpec((5, Cout, Cout), lambda n, h: (0, 0, 0)),    # wp (5 row blocks)
        pl.BlockSpec((5, 1, Cout), lambda n, h: (0, 0, 0)),       # biases b0..b4
        pl.BlockSpec((1, Cout), lambda n, h: (0, 0)),             # projection bias
    ]
    row_block = pl.BlockSpec((1, 1, W, Cout), lambda n, h: (n, h, 0, 0))
    out_specs = tuple([row_block] * 6)
    out_shape = tuple(jax.ShapeDtypeStruct((N, H, W, Cout), jnp.float32)
                      for _ in range(6))

    outs = pl.pallas_call(
        kernel,
        grid=(N, H),
        in_specs=in_specs,
        out_specs=out_specs,
        out_shape=out_shape,
        compiler_params=pltpu.CompilerParams(
            dimension_semantics=("parallel", "parallel"),
            vmem_limit_bytes=64 * 1024 * 1024),
    )(*([xp] * len(offsets)
        + [pooled, kp["w0"], kp["w1"], kp["w2"], kp["w3"], kp["w4"],
           kp["wp"], kp["bias5"], kp["biasp"]]))
    f0, f1, f2, f3, f4, proj = outs
    return (f0, f1, f2, f3, f4), proj


# ----------------------------------------------------------------------------
# Host-side parameter preparation (BN folding, weight reshapes, bf16 cast)
# ----------------------------------------------------------------------------
def fold_bn(gamma, beta, mean, var, eps=BN_EPS):
    scale = gamma / jnp.sqrt(var + eps)
    return scale, beta - mean * scale


def prepare_params(raw):
    """Fold BN scale into conv weights (bf16 for the MXU); keep f32 biases."""
    def fold1x1(w, bn):
        scale, bias = fold_bn(*bn)
        w2d = jnp.transpose(w[:, :, 0, 0], (1, 0)) * scale[None, :]   # (Cin, Cout)
        return w2d.astype(jnp.bfloat16), bias

    def fold3x3(w, bn):
        scale, bias = fold_bn(*bn)
        cout, cin = w.shape[0], w.shape[1]
        w9 = jnp.transpose(w, (2, 3, 1, 0)).reshape(9, cin, cout)     # tap = kh*3+kw
        return (w9 * scale[None, None, :]).astype(jnp.bfloat16), bias

    w0, b0 = fold1x1(raw["w0"], raw["bn0"])
    w1, b1 = fold3x3(raw["w1"], raw["bn1"])
    w2, b2 = fold3x3(raw["w2"], raw["bn2"])
    w3, b3 = fold3x3(raw["w3"], raw["bn3"])
    w4, b4 = fold1x1(raw["w4"], raw["bn4"])
    wp2d, bp = fold1x1(raw["wp"], raw["bnp"])                          # (5*Cout, Cout)
    cout = raw["w0"].shape[0]
    return {
        "w0": w0, "w1": w1, "w2": w2, "w3": w3, "w4": w4,
        "wp": wp2d.reshape(5, cout, cout),
        "bias5": jnp.stack([b0, b1, b2, b3, b4], 0)
                    .reshape(5, 1, cout).astype(jnp.float32),
        "biasp": bp.reshape(1, cout).astype(jnp.float32),
    }


def init_raw_params(key, in_channels):
    out_channels = in_channels // 8
    keys = jax.random.split(key, 12)
    it = iter(keys)

    def bn(kk, c):
        k1, k2, k3, k4 = jax.random.split(kk, 4)
        gamma = 1.0 + 0.1 * jax.random.normal(k1, (c,), jnp.float32)
        beta = 0.1 * jax.random.normal(k2, (c,), jnp.float32)
        mean = 0.1 * jax.random.normal(k3, (c,), jnp.float32)
        var = 1.0 + 0.1 * jnp.abs(jax.random.normal(k4, (c,), jnp.float32))
        return (gamma, beta, mean, var)

    raw = {}
    raw["w0"] = 0.1 * jax.random.normal(next(it), (out_channels, in_channels, 1, 1), jnp.float32)
    raw["bn0"] = bn(next(it), out_channels)
    for i in range(1, 4):
        raw[f"w{i}"] = 0.1 * jax.random.normal(next(it), (out_channels, in_channels, 3, 3), jnp.float32)
        raw[f"bn{i}"] = bn(next(it), out_channels)
    raw["w4"] = 0.1 * jax.random.normal(next(it), (out_channels, in_channels, 1, 1), jnp.float32)
    raw["bn4"] = bn(next(it), out_channels)
    raw["wp"] = 0.1 * jax.random.normal(next(it), (out_channels, 5 * out_channels, 1, 1), jnp.float32)
    raw["bnp"] = bn(next(it), out_channels)
    return raw


# ----------------------------------------------------------------------------
# ASPP forward (NCHW in / NCHW out, matching the PyTorch module)
# ----------------------------------------------------------------------------
@functools.partial(jax.jit, static_argnames=("atrous_rates",))
def aspp_forward(x_nchw, kparams, atrous_rates):
    rates = tuple(int(r) for r in atrous_rates)   # static python ints
    assert len(rates) == 3
    N, Cin, H, W = x_nchw.shape
    Cout = kparams["biasp"].shape[-1]
    R = max(rates)

    x_nhwc = jnp.transpose(x_nchw, (0, 2, 3, 1))
    # AdaptiveAvgPool2d(1): tiny (N, Cin) reduction, f32, left to XLA.
    pooled = jnp.mean(x_nhwc, axis=(1, 2)).reshape(N, 1, Cin).astype(jnp.bfloat16)
    # Single zero-pad by R = max(rates); correct for every branch's own padding
    # since the extra pad region is also zeros.
    xp = jnp.pad(x_nhwc.astype(jnp.bfloat16),
                 ((0, 0), (R, R), (R, R), (0, 0)))

    feats_nhwc, proj_nhwc = _aspp_pallas(
        xp, pooled, kparams, rates=rates, N=N, H=H, W=W, Cin=Cin, Cout=Cout)

    to_nchw = lambda t: jnp.transpose(t, (0, 3, 1, 2))
    return to_nchw(proj_nhwc), [to_nchw(f) for f in feats_nhwc]


# ----------------------------------------------------------------------------
# Pure-XLA f32 reference (for an in-script sanity check)
# ----------------------------------------------------------------------------
def aspp_reference(x_nchw, raw, atrous_rates):
    def bn(y, p):
        gamma, beta, mean, var = p
        s = gamma / jnp.sqrt(var + BN_EPS)
        return y * s[None, :, None, None] + (beta - mean * s)[None, :, None, None]

    def conv(x, w, rate=1):
        ph = rate * (w.shape[2] // 2)
        pw = rate * (w.shape[3] // 2)
        return jax.lax.conv_general_dilated(
            x, w, window_strides=(1, 1), padding=[(ph, ph), (pw, pw)],
            rhs_dilation=(rate, rate),
            dimension_numbers=("NCHW", "OIHW", "NCHW"))

    relu = lambda t: jnp.maximum(t, 0.0)
    feats = [relu(bn(conv(x_nchw, raw["w0"]), raw["bn0"]))]
    for i, r in enumerate(atrous_rates, start=1):
        feats.append(relu(bn(conv(x_nchw, raw[f"w{i}"], r), raw[f"bn{i}"])))
    pooled = jnp.mean(x_nchw, axis=(2, 3), keepdims=True)
    f4 = relu(bn(conv(pooled, raw["w4"]), raw["bn4"]))
    N, _, H, W = x_nchw.shape
    feats.append(jnp.broadcast_to(f4, (N, f4.shape[1], H, W)))
    y = jnp.concatenate(feats, axis=1)
    out = relu(bn(conv(y, raw["wp"]), raw["bnp"]))
    return out, feats


# ----------------------------------------------------------------------------
if __name__ == "__main__":
    in_channels = 32              # out_channels = 32 // 8 = 4
    atrous_rates = (2, 4, 6)
    N, H, W = 2, 16, 16

    x = jax.random.normal(jax.random.PRNGKey(0), (N, in_channels, H, W), jnp.float32)
    raw = init_raw_params(jax.random.PRNGKey(42), in_channels)
    kparams = prepare_params(raw)

    out, feats = aspp_forward(x, kparams, atrous_rates)
    jax.block_until_ready(out)
    for f in feats:
        jax.block_until_ready(f)

    Cout = in_channels // 8
    assert out.shape == (N, Cout, H, W)
    assert all(f.shape == (N, Cout, H, W) for f in feats)

    # Sanity check against a pure-XLA f32 reference (bf16 on MXU => loose tol).
    ref_out, ref_feats = aspp_reference(x, raw, atrous_rates)
    assert float(jnp.max(jnp.abs(out - ref_out))) < 1e-1
    for f, rf in zip(feats, ref_feats):
        assert float(jnp.max(jnp.abs(f - rf))) < 1e-1

    print("KERNEL_OK")
</pallas_src>

<mosaic_0001>
module attributes {stable_mosaic.version = 11 : i64} {
  func.func @kernel(%arg0: i32, %arg1: i32, %arg2: memref<1x1x28x32xbf16, #tpu.memory_space<vmem>>, %arg3: memref<1x1x28x32xbf16, #tpu.memory_space<vmem>>, %arg4: memref<1x1x28x32xbf16, #tpu.memory_space<vmem>>, %arg5: memref<1x1x28x32xbf16, #tpu.memory_space<vmem>>, %arg6: memref<1x1x28x32xbf16, #tpu.memory_space<vmem>>, %arg7: memref<1x1x28x32xbf16, #tpu.memory_space<vmem>>, %arg8: memref<1x1x28x32xbf16, #tpu.memory_space<vmem>>, %arg9: memref<1x1x32xbf16, #tpu.memory_space<vmem>>, %arg10: memref<32x4xbf16, #tpu.memory_space<vmem>>, %arg11: memref<9x32x4xbf16, #tpu.memory_space<vmem>>, %arg12: memref<9x32x4xbf16, #tpu.memory_space<vmem>>, %arg13: memref<9x32x4xbf16, #tpu.memory_space<vmem>>, %arg14: memref<32x4xbf16, #tpu.memory_space<vmem>>, %arg15: memref<5x4x4xbf16, #tpu.memory_space<vmem>>, %arg16: memref<5x1x4xf32, #tpu.memory_space<vmem>>, %arg17: memref<1x4xf32, #tpu.memory_space<vmem>>, %arg18: memref<1x1x16x4xf32, #tpu.memory_space<vmem>>, %arg19: memref<1x1x16x4xf32, #tpu.memory_space<vmem>>, %arg20: memref<1x1x16x4xf32, #tpu.memory_space<vmem>>, %arg21: memref<1x1x16x4xf32, #tpu.memory_space<vmem>>, %arg22: memref<1x1x16x4xf32, #tpu.memory_space<vmem>>, %arg23: memref<1x1x16x4xf32, #tpu.memory_space<vmem>>) attributes {dimension_semantics = [#tpu.dimension_semantics<parallel>, #tpu.dimension_semantics<parallel>], iteration_bounds = array<i64: 2, 16>, scalar_prefetch = 0 : i64, scratch_operands = 0 : i64, tpu.core_type = #tpu.core_type<tc>, window_params = [{transform_indices = @transform_0, window_bounds = array<i64: 1, 1, 28, 32>}, {transform_indices = @transform_1, window_bounds = array<i64: 1, 1, 28, 32>}, {transform_indices = @transform_2, window_bounds = array<i64: 1, 1, 28, 32>}, {transform_indices = @transform_3, window_bounds = array<i64: 1, 1, 28, 32>}, {transform_indices = @transform_4, window_bounds = array<i64: 1, 1, 28, 32>}, {transform_indices = @transform_5, window_bounds = array<i64: 1, 1, 28, 32>}, {transform_indices = @transform_6, window_bounds = array<i64: 1, 1, 28, 32>}, {transform_indices = @transform_7, window_bounds = array<i64: 1, 1, 32>}, {pipeline_mode = #tpu.pipeline_mode<synchronous>, transform_indices = @transform_8, window_bounds = array<i64: 32, 4>}, {pipeline_mode = #tpu.pipeline_mode<synchronous>, transform_indices = @transform_9, window_bounds = array<i64: 9, 32, 4>}, {pipeline_mode = #tpu.pipeline_mode<synchronous>, transform_indices = @transform_10, window_bounds = array<i64: 9, 32, 4>}, {pipeline_mode = #tpu.pipeline_mode<synchronous>, transform_indices = @transform_11, window_bounds = array<i64: 9, 32, 4>}, {pipeline_mode = #tpu.pipeline_mode<synchronous>, transform_indices = @transform_12, window_bounds = array<i64: 32, 4>}, {pipeline_mode = #tpu.pipeline_mode<synchronous>, transform_indices = @transform_13, window_bounds = array<i64: 5, 4, 4>}, {pipeline_mode = #tpu.pipeline_mode<synchronous>, transform_indices = @transform_14, window_bounds = array<i64: 5, 1, 4>}, {pipeline_mode = #tpu.pipeline_mode<synchronous>, transform_indices = @transform_15, window_bounds = array<i64: 1, 4>}, {transform_indices = @transform_16, window_bounds = array<i64: 1, 1, 16, 4>}, {transform_indices = @transform_17, window_bounds = array<i64: 1, 1, 16, 4>}, {transform_indices = @transform_18, window_bounds = array<i64: 1, 1, 16, 4>}, {transform_indices = @transform_19, window_bounds = array<i64: 1, 1, 16, 4>}, {transform_indices = @transform_20, window_bounds = array<i64: 1, 1, 16, 4>}, {transform_indices = @transform_21, window_bounds = array<i64: 1, 1, 16, 4>}]} {
    %c0 = arith.constant 0 : index
    %c0_0 = arith.constant 0 : index
    %c0_1 = arith.constant 0 : index
    %c0_2 = arith.constant 0 : index
    %0 = vector.load %arg2[%c0, %c0_0, %c0_1, %c0_2] : memref<1x1x28x32xbf16, #tpu.memory_space<vmem>>, vector<1x1x28x32xbf16>
    %1 = vector.shape_cast %0 : vector<1x1x28x32xbf16> to vector<28x32xbf16>
    %c0_3 = arith.constant 0 : index
    %c0_4 = arith.constant 0 : index
    %c0_5 = arith.constant 0 : index
    %c0_6 = arith.constant 0 : index
    %2 = vector.load %arg3[%c0_3, %c0_4, %c0_5, %c0_6] : memref<1x1x28x32xbf16, #tpu.memory_space<vmem>>, vector<1x1x28x32xbf16>
    %3 = vector.shape_cast %2 : vector<1x1x28x32xbf16> to vector<28x32xbf16>
    %c0_7 = arith.constant 0 : index
    %c0_8 = arith.constant 0 : index
    %c0_9 = arith.constant 0 : index
    %c0_10 = arith.constant 0 : index
    %4 = vector.load %arg4[%c0_7, %c0_8, %c0_9, %c0_10] : memref<1x1x28x32xbf16, #tpu.memory_space<vmem>>, vector<1x1x28x32xbf16>
    %5 = vector.shape_cast %4 : vector<1x1x28x32xbf16> to vector<28x32xbf16>
    %c0_11 = arith.constant 0 : index
    %c0_12 = arith.constant 0 : index
    %c0_13 = arith.constant 0 : index
    %c0_14 = arith.constant 0 : index
    %6 = vector.load %arg5[%c0_11, %c0_12, %c0_13, %c0_14] : memref<1x1x28x32xbf16, #tpu.memory_space<vmem>>, vector<1x1x28x32xbf16>
    %7 = vector.shape_cast %6 : vector<1x1x28x32xbf16> to vector<28x32xbf16>
    %c0_15 = arith.constant 0 : index
    %c0_16 = arith.constant 0 : index
    %c0_17 = arith.constant 0 : index
    %c0_18 = arith.constant 0 : index
    %8 = vector.load %arg6[%c0_15, %c0_16, %c0_17, %c0_18] : memref<1x1x28x32xbf16, #tpu.memory_space<vmem>>, vector<1x1x28x32xbf16>
    %9 = vector.shape_cast %8 : vector<1x1x28x32xbf16> to vector<28x32xbf16>
    %c0_19 = arith.constant 0 : index
    %c0_20 = arith.constant 0 : index
    %c0_21 = arith.constant 0 : index
    %c0_22 = arith.constant 0 : index
    %10 = vector.load %arg7[%c0_19, %c0_20, %c0_21, %c0_22] : memref<1x1x28x32xbf16, #tpu.memory_space<vmem>>, vector<1x1x28x32xbf16>
    %11 = vector.shape_cast %10 : vector<1x1x28x32xbf16> to vector<28x32xbf16>
    %c0_23 = arith.constant 0 : index
    %c0_24 = arith.constant 0 : index
    %c0_25 = arith.constant 0 : index
    %c0_26 = arith.constant 0 : index
    %12 = vector.load %arg8[%c0_23, %c0_24, %c0_25, %c0_26] : memref<1x1x28x32xbf16, #tpu.memory_space<vmem>>, vector<1x1x28x32xbf16>
    %13 = vector.shape_cast %12 : vector<1x1x28x32xbf16> to vector<28x32xbf16>
    %14 = vector.extract_strided_slice %7 {offsets = [6, 0], sizes = [16, 32], strides = [1, 1]} : vector<28x32xbf16> to vector<16x32xbf16>
    %c0_27 = arith.constant 0 : index
    %c0_28 = arith.constant 0 : index
    %15 = vector.load %arg10[%c0_27, %c0_28] : memref<32x4xbf16, #tpu.memory_space<vmem>>, vector<32x4xbf16>
    %cst = arith.constant dense<0.000000e+00> : vector<16x4xf32>
    %16 = tpu.matmul %14, %15, %cst {dimension_numbers = #tpu.dot_dimension_numbers<[1], [0], [0], [1], [0, 0, 1, 1], [], []>} : vector<16x32xbf16>, vector<32x4xbf16>, vector<16x4xf32> -> vector<16x4xf32>
    %c0_29 = arith.constant 0 : index
    %c0_30 = arith.constant 0 : index
    %c0_31 = arith.constant 0 : index
    %17 = vector.load %arg16[%c0_29, %c0_30, %c0_31] : memref<5x1x4xf32, #tpu.memory_space<vmem>>, vector<1x1x4xf32>
    %18 = vector.shape_cast %17 : vector<1x1x4xf32> to vector<1x4xf32>
    %19 = vector.broadcast %18 : vector<1x4xf32> to vector<16x4xf32>
    %20 = arith.addf %16, %19 : vector<16x4xf32>
    %cst_32 = arith.constant 0.000000e+00 : f32
    %21 = vector.broadcast %cst_32 : f32 to vector<16x4xf32>
    %22 = arith.maximumf %20, %21 : vector<16x4xf32>
    %23 = vector.extract_strided_slice %5 {offsets = [4, 0], sizes = [16, 32], strides = [1, 1]} : vector<28x32xbf16> to vector<16x32xbf16>
    %c0_33 = arith.constant 0 : index
    %c0_34 = arith.constant 0 : index
    %c0_35 = arith.constant 0 : index
    %24 = vector.load %arg11[%c0_33, %c0_34, %c0_35] : memref<9x32x4xbf16, #tpu.memory_space<vmem>>, vector<1x32x4xbf16>
    %25 = vector.shape_cast %24 : vector<1x32x4xbf16> to vector<32x4xbf16>
    %cst_36 = arith.constant dense<0.000000e+00> : vector<16x4xf32>
    %26 = tpu.matmul %23, %25, %cst_36 {dimension_numbers = #tpu.dot_dimension_numbers<[1], [0], [0], [1], [0, 0, 1, 1], [], []>} : vector<16x32xbf16>, vector<32x4xbf16>, vector<16x4xf32> -> vector<16x4xf32>
    %27 = vector.extract_strided_slice %5 {offsets = [6, 0], sizes = [16, 32], strides = [1, 1]} : vector<28x32xbf16> to vector<16x32xbf16>
    %c1 = arith.constant 1 : index
    %c0_37 = arith.constant 0 : index
    %c0_38 = arith.constant 0 : index
    %28 = vector.load %arg11[%c1, %c0_37, %c0_38] : memref<9x32x4xbf16, #tpu.memory_space<vmem>>, vector<1x32x4xbf16>
    %29 = vector.shape_cast %28 : vector<1x32x4xbf16> to vector<32x4xbf16>
    %cst_39 = arith.constant dense<0.000000e+00> : vector<16x4xf32>
    %30 = tpu.matmul %27, %29, %cst_39 {dimension_numbers = #tpu.dot_dimension_numbers<[1], [0], [0], [1], [0, 0, 1, 1], [], []>} : vector<16x32xbf16>, vector<32x4xbf16>, vector<16x4xf32> -> vector<16x4xf32>
    %31 = arith.addf %26, %30 : vector<16x4xf32>
    %32 = vector.extract_strided_slice %5 {offsets = [8, 0], sizes = [16, 32], strides = [1, 1]} : vector<28x32xbf16> to vector<16x32xbf16>
    %c2 = arith.constant 2 : index
    %c0_40 = arith.constant 0 : index
    %c0_41 = arith.constant 0 : index
    %33 = vector.load %arg11[%c2, %c0_40, %c0_41] : memref<9x32x4xbf16, #tpu.memory_space<vmem>>, vector<1x32x4xbf16>
    %34 = vector.shape_cast %33 : vector<1x32x4xbf16> to vector<32x4xbf16>
    %cst_42 = arith.constant dense<0.000000e+00> : vector<16x4xf32>
    %35 = tpu.matmul %32, %34, %cst_42 {dimension_numbers = #tpu.dot_dimension_numbers<[1], [0], [0], [1], [0, 0, 1, 1], [], []>} : vector<16x32xbf16>, vector<32x4xbf16>, vector<16x4xf32> -> vector<16x4xf32>
    %36 = arith.addf %31, %35 : vector<16x4xf32>
    %37 = vector.extract_strided_slice %7 {offsets = [4, 0], sizes = [16, 32], strides = [1, 1]} : vector<28x32xbf16> to vector<16x32xbf16>
    %c3 = arith.constant 3 : index
    %c0_43 = arith.constant 0 : index
    %c0_44 = arith.constant 0 : index
    %38 = vector.load %arg11[%c3, %c0_43, %c0_44] : memref<9x32x4xbf16, #tpu.memory_space<vmem>>, vector<1x32x4xbf16>
    %39 = vector.shape_cast %38 : vector<1x32x4xbf16> to vector<32x4xbf16>
    %cst_45 = arith.constant dense<0.000000e+00> : vector<16x4xf32>
    %40 = tpu.matmul %37, %39, %cst_45 {dimension_numbers = #tpu.dot_dimension_numbers<[1], [0], [0], [1], [0, 0, 1, 1], [], []>} : vector<16x32xbf16>, vector<32x4xbf16>, vector<16x4xf32> -> vector<16x4xf32>
    %41 = arith.addf %36, %40 : vector<16x4xf32>
    %42 = vector.extract_strided_slice %7 {offsets = [6, 0], sizes = [16, 32], strides = [1, 1]} : vector<28x32xbf16> to vector<16x32xbf16>
    %c4 = arith.constant 4 : index
    %c0_46 = arith.constant 0 : index
    %c0_47 = arith.constant 0 : index
    %43 = vector.load %arg11[%c4, %c0_46, %c0_47] : memref<9x32x4xbf16, #tpu.memory_space<vmem>>, vector<1x32x4xbf16>
    %44 = vector.shape_cast %43 : vector<1x32x4xbf16> to vector<32x4xbf16>
    %cst_48 = arith.constant dense<0.000000e+00> : vector<16x4xf32>
    %45 = tpu.matmul %42, %44, %cst_48 {dimension_numbers = #tpu.dot_dimension_numbers<[1], [0], [0], [1], [0, 0, 1, 1], [], []>} : vector<16x32xbf16>, vector<32x4xbf16>, vector<16x4xf32> -> vector<16x4xf32>
    %46 = arith.addf %41, %45 : vector<16x4xf32>
    %47 = vector.extract_strided_slice %7 {offsets = [8, 0], sizes = [16, 32], strides = [1, 1]} : vector<28x32xbf16> to vector<16x32xbf16>
    %c5 = arith.constant 5 : index
    %c0_49 = arith.constant 0 : index
    %c0_50 = arith.constant 0 : index
    %48 = vector.load %arg11[%c5, %c0_49, %c0_50] : memref<9x32x4xbf16, #tpu.memory_space<vmem>>, vector<1x32x4xbf16>
    %49 = vector.shape_cast %48 : vector<1x32x4xbf16> to vector<32x4xbf16>
    %cst_51 = arith.constant dense<0.000000e+00> : vector<16x4xf32>
    %50 = tpu.matmul %47, %49, %cst_51 {dimension_numbers = #tpu.dot_dimension_numbers<[1], [0], [0], [1], [0, 0, 1, 1], [], []>} : vector<16x32xbf16>, vector<32x4xbf16>, vector<16x4xf32> -> vector<16x4xf32>
    %51 = arith.addf %46, %50 : vector<16x4xf32>
    %52 = vector.extract_strided_slice %9 {offsets = [4, 0], sizes = [16, 32], strides = [1, 1]} : vector<28x32xbf16> to vector<16x32xbf16>
    %c6 = arith.constant 6 : index
    %c0_52 = arith.constant 0 : index
    %c0_53 = arith.constant 0 : index
    %53 = vector.load %arg11[%c6, %c0_52, %c0_53] : memref<9x32x4xbf16, #tpu.memory_space<vmem>>, vector<1x32x4xbf16>
    %54 = vector.shape_cast %53 : vector<1x32x4xbf16> to vector<32x4xbf16>
    %cst_54 = arith.constant dense<0.000000e+00> : vector<16x4xf32>
    %55 = tpu.matmul %52, %54, %cst_54 {dimension_numbers = #tpu.dot_dimension_numbers<[1], [0], [0], [1], [0, 0, 1, 1], [], []>} : vector<16x32xbf16>, vector<32x4xbf16>, vector<16x4xf32> -> vector<16x4xf32>
    %56 = arith.addf %51, %55 : vector<16x4xf32>
    %57 = vector.extract_strided_slice %9 {offsets = [6, 0], sizes = [16, 32], strides = [1, 1]} : vector<28x32xbf16> to vector<16x32xbf16>
    %c7 = arith.constant 7 : index
    %c0_55 = arith.constant 0 : index
    %c0_56 = arith.constant 0 : index
    %58 = vector.load %arg11[%c7, %c0_55, %c0_56] : memref<9x32x4xbf16, #tpu.memory_space<vmem>>, vector<1x32x4xbf16>
    %59 = vector.shape_cast %58 : vector<1x32x4xbf16> to vector<32x4xbf16>
    %cst_57 = arith.constant dense<0.000000e+00> : vector<16x4xf32>
    %60 = tpu.matmul %57, %59, %cst_57 {dimension_numbers = #tpu.dot_dimension_numbers<[1], [0], [0], [1], [0, 0, 1, 1], [], []>} : vector<16x32xbf16>, vector<32x4xbf16>, vector<16x4xf32> -> vector<16x4xf32>
    %61 = arith.addf %56, %60 : vector<16x4xf32>
    %62 = vector.extract_strided_slice %9 {offsets = [8, 0], sizes = [16, 32], strides = [1, 1]} : vector<28x32xbf16> to vector<16x32xbf16>
    %c8 = arith.constant 8 : index
    %c0_58 = arith.constant 0 : index
    %c0_59 = arith.constant 0 : index
    %63 = vector.load %arg11[%c8, %c0_58, %c0_59] : memref<9x32x4xbf16, #tpu.memory_space<vmem>>, vector<1x32x4xbf16>
    %64 = vector.shape_cast %63 : vector<1x32x4xbf16> to vector<32x4xbf16>
    %cst_60 = arith.constant dense<0.000000e+00> : vector<16x4xf32>
    %65 = tpu.matmul %62, %64, %cst_60 {dimension_numbers = #tpu.dot_dimension_numbers<[1], [0], [0], [1], [0, 0, 1, 1], [], []>} : vector<16x32xbf16>, vector<32x4xbf16>, vector<16x4xf32> -> vector<16x4xf32>
    %66 = arith.addf %61, %65 : vector<16x4xf32>
    %c1_61 = arith.constant 1 : index
    %c0_62 = arith.constant 0 : index
    %c0_63 = arith.constant 0 : index
    %67 = vector.load %arg16[%c1_61, %c0_62, %c0_63] : memref<5x1x4xf32, #tpu.memory_space<vmem>>, vector<1x1x4xf32>
    %68 = vector.shape_cast %67 : vector<1x1x4xf32> to vector<1x4xf32>
    %69 = vector.broadcast %68 : vector<1x4xf32> to vector<16x4xf32>
    %70 = arith.addf %66, %69 : vector<16x4xf32>
    %cst_64 = arith.constant 0.000000e+00 : f32
    %71 = vector.broadcast %cst_64 : f32 to vector<16x4xf32>
    %72 = arith.maximumf %70, %71 : vector<16x4xf32>
    %73 = vector.extract_strided_slice %3 {offsets = [2, 0], sizes = [16, 32], strides = [1, 1]} : vector<28x32xbf16> to vector<16x32xbf16>
    %c0_65 = arith.constant 0 : index
    %c0_66 = arith.constant 0 : index
    %c0_67 = arith.constant 0 : index
    %74 = vector.load %arg12[%c0_65, %c0_66, %c0_67] : memref<9x32x4xbf16, #tpu.memory_space<vmem>>, vector<1x32x4xbf16>
    %75 = vector.shape_cast %74 : vector<1x32x4xbf16> to vector<32x4xbf16>
    %cst_68 = arith.constant dense<0.000000e+00> : vector<16x4xf32>
    %76 = tpu.matmul %73, %75, %cst_68 {dimension_numbers = #tpu.dot_dimension_numbers<[1], [0], [0], [1], [0, 0, 1, 1], [], []>} : vector<16x32xbf16>, vector<32x4xbf16>, vector<16x4xf32> -> vector<16x4xf32>
    %77 = vector.extract_strided_slice %3 {offsets = [6, 0], sizes = [16, 32], strides = [1, 1]} : vector<28x32xbf16> to vector<16x32xbf16>
    %c1_69 = arith.constant 1 : index
    %c0_70 = arith.constant 0 : index
    %c0_71 = arith.constant 0 : index
    %78 = vector.load %arg12[%c1_69, %c0_70, %c0_71] : memref<9x32x4xbf16, #tpu.memory_space<vmem>>, vector<1x32x4xbf16>
    %79 = vector.shape_cast %78 : vector<1x32x4xbf16> to vector<32x4xbf16>
    %cst_72 = arith.constant dense<0.000000e+00> : vector<16x4xf32>
    %80 = tpu.matmul %77, %79, %cst_72 {dimension_numbers = #tpu.dot_dimension_numbers<[1], [0], [0], [1], [0, 0, 1, 1], [], []>} : vector<16x32xbf16>, vector<32x4xbf16>, vector<16x4xf32> -> vector<16x4xf32>
    %81 = arith.addf %76, %80 : vector<16x4xf32>
    %82 = vector.extract_strided_slice %3 {offsets = [10, 0], sizes = [16, 32], strides = [1, 1]} : vector<28x32xbf16> to vector<16x32xbf16>
    %c2_73 = arith.constant 2 : index
    %c0_74 = arith.constant 0 : index
    %c0_75 = arith.constant 0 : index
    %83 = vector.load %arg12[%c2_73, %c0_74, %c0_75] : memref<9x32x4xbf16, #tpu.memory_space<vmem>>, vector<1x32x4xbf16>
    %84 = vector.shape_cast %83 : vector<1x32x4xbf16> to vector<32x4xbf16>
    %cst_76 = arith.constant dense<0.000000e+00> : vector<16x4xf32>
    %85 = tpu.matmul %82, %84, %cst_76 {dimension_numbers = #tpu.dot_dimension_numbers<[1], [0], [0], [1], [0, 0, 1, 1], [], []>} : vector<16x32xbf16>, vector<32x4xbf16>, vector<16x4xf32> -> vector<16x4xf32>
    %86 = arith.addf %81, %85 : vector<16x4xf32>
    %87 = vector.extract_strided_slice %7 {offsets = [2, 0], sizes = [16, 32], strides = [1, 1]} : vector<28x32xbf16> to vector<16x32xbf16>
    %c3_77 = arith.constant 3 : index
    %c0_78 = arith.constant 0 : index
    %c0_79 = arith.constant 0 : index
    %88 = vector.load %arg12[%c3_77, %c0_78, %c0_79] : memref<9x32x4xbf16, #tpu.memory_space<vmem>>, vector<1x32x4xbf16>
    %89 = vector.shape_cast %88 : vector<1x32x4xbf16> to vector<32x4xbf16>
    %cst_80 = arith.constant dense<0.000000e+00> : vector<16x4xf32>
    %90 = tpu.matmul %87, %89, %cst_80 {dimension_numbers = #tpu.dot_dimension_numbers<[1], [0], [0], [1], [0, 0, 1, 1], [], []>} : vector<16x32xbf16>, vector<32x4xbf16>, vector<16x4xf32> -> vector<16x4xf32>
    %91 = arith.addf %86, %90 : vector<16x4xf32>
    %92 = vector.extract_strided_slice %7 {offsets = [6, 0], sizes = [16, 32], strides = [1, 1]} : vector<28x32xbf16> to vector<16x32xbf16>
    %c4_81 = arith.constant 4 : index
    %c0_82 = arith.constant 0 : index
    %c0_83 = arith.constant 0 : index
    %93 = vector.load %arg12[%c4_81, %c0_82, %c0_83] : memref<9x32x4xbf16, #tpu.memory_space<vmem>>, vector<1x32x4xbf16>
    %94 = vector.shape_cast %93 : vector<1x32x4xbf16> to vector<32x4xbf16>
    %cst_84 = arith.constant dense<0.000000e+00> : vector<16x4xf32>
    %95 = tpu.matmul %92, %94, %cst_84 {dimension_numbers = #tpu.dot_dimension_numbers<[1], [0], [0], [1], [0, 0, 1, 1], [], []>} : vector<16x32xbf16>, vector<32x4xbf16>, vector<16x4xf32> -> vector<16x4xf32>
    %96 = arith.addf %91, %95 : vector<16x4xf32>
    %97 = vector.extract_strided_slice %7 {offsets = [10, 0], sizes = [16, 32], strides = [1, 1]} : vector<28x32xbf16> to vector<16x32xbf16>
    %c5_85 = arith.constant 5 : index
    %c0_86 = arith.constant 0 : index
    %c0_87 = arith.constant 0 : index
    %98 = vector.load %arg12[%c5_85, %c0_86, %c0_87] : memref<9x32x4xbf16, #tpu.memory_space<vmem>>, vector<1x32x4xbf16>
    %99 = vector.shape_cast %98 : vector<1x32x4xbf16> to vector<32x4xbf16>
    %cst_88 = arith.constant dense<0.000000e+00> : vector<16x4xf32>
    %100 = tpu.matmul %97, %99, %cst_88 {dimension_numbers = #tpu.dot_dimension_numbers<[1], [0], [0], [1], [0, 0, 1, 1], [], []>} : vector<16x32xbf16>, vector<32x4xbf16>, vector<16x4xf32> -> vector<16x4xf32>
    %101 = arith.addf %96, %100 : vector<16x4xf32>
    %102 = vector.extract_strided_slice %11 {offsets = [2, 0], sizes = [16, 32], strides = [1, 1]} : vector<28x32xbf16> to vector<16x32xbf16>
    %c6_89 = arith.constant 6 : index
    %c0_90 = arith.constant 0 : index
    %c0_91 = arith.constant 0 : index
    %103 = vector.load %arg12[%c6_89, %c0_90, %c0_91] : memref<9x32x4xbf16, #tpu.memory_space<vmem>>, vector<1x32x4xbf16>
    %104 = vector.shape_cast %103 : vector<1x32x4xbf16> to vector<32x4xbf16>
    %cst_92 = arith.constant dense<0.000000e+00> : vector<16x4xf32>
    %105 = tpu.matmul %102, %104, %cst_92 {dimension_numbers = #tpu.dot_dimension_numbers<[1], [0], [0], [1], [0, 0, 1, 1], [], []>} : vector<16x32xbf16>, vector<32x4xbf16>, vector<16x4xf32> -> vector<16x4xf32>
    %106 = arith.addf %101, %105 : vector<16x4xf32>
    %107 = vector.extract_strided_slice %11 {offsets = [6, 0], sizes = [16, 32], strides = [1, 1]} : vector<28x32xbf16> to vector<16x32xbf16>
    %c7_93 = arith.constant 7 : index
    %c0_94 = arith.constant 0 : index
    %c0_95 = arith.constant 0 : index
    %108 = vector.load %arg12[%c7_93, %c0_94, %c0_95] : memref<9x32x4xbf16, #tpu.memory_space<vmem>>, vector<1x32x4xbf16>
    %109 = vector.shape_cast %108 : vector<1x32x4xbf16> to vector<32x4xbf16>
    %cst_96 = arith.constant dense<0.000000e+00> : vector<16x4xf32>
    %110 = tpu.matmul %107, %109, %cst_96 {dimension_numbers = #tpu.dot_dimension_numbers<[1], [0], [0], [1], [0, 0, 1, 1], [], []>} : vector<16x32xbf16>, vector<32x4xbf16>, vector<16x4xf32> -> vector<16x4xf32>
    %111 = arith.addf %106, %110 : vector<16x4xf32>
    %112 = vector.extract_strided_slice %11 {offsets = [10, 0], sizes = [16, 32], strides = [1, 1]} : vector<28x32xbf16> to vector<16x32xbf16>
    %c8_97 = arith.constant 8 : index
    %c0_98 = arith.constant 0 : index
    %c0_99 = arith.constant 0 : index
    %113 = vector.load %arg12[%c8_97, %c0_98, %c0_99] : memref<9x32x4xbf16, #tpu.memory_space<vmem>>, vector<1x32x4xbf16>
    %114 = vector.shape_cast %113 : vector<1x32x4xbf16> to vector<32x4xbf16>
    %cst_100 = arith.constant dense<0.000000e+00> : vector<16x4xf32>
    %115 = tpu.matmul %112, %114, %cst_100 {dimension_numbers = #tpu.dot_dimension_numbers<[1], [0], [0], [1], [0, 0, 1, 1], [], []>} : vector<16x32xbf16>, vector<32x4xbf16>, vector<16x4xf32> -> vector<16x4xf32>
    %116 = arith.addf %111, %115 : vector<16x4xf32>
    %c2_101 = arith.constant 2 : index
    %c0_102 = arith.constant 0 : index
    %c0_103 = arith.constant 0 : index
    %117 = vector.load %arg16[%c2_101, %c0_102, %c0_103] : memref<5x1x4xf32, #tpu.memory_space<vmem>>, vector<1x1x4xf32>
    %118 = vector.shape_cast %117 : vector<1x1x4xf32> to vector<1x4xf32>
    %119 = vector.broadcast %118 : vector<1x4xf32> to vector<16x4xf32>
    %120 = arith.addf %116, %119 : vector<16x4xf32>
    %cst_104 = arith.constant 0.000000e+00 : f32
    %121 = vector.broadcast %cst_104 : f32 to vector<16x4xf32>
    %122 = arith.maximumf %120, %121 : vector<16x4xf32>
    %123 = vector.extract_strided_slice %1 {offsets = [0, 0], sizes = [16, 32], strides = [1, 1]} : vector<28x32xbf16> to vector<16x32xbf16>
    %c0_105 = arith.constant 0 : index
    %c0_106 = arith.constant 0 : index
    %c0_107 = arith.constant 0 : index
    %124 = vector.load %arg13[%c0_105, %c0_106, %c0_107] : memref<9x32x4xbf16, #tpu.memory_space<vmem>>, vector<1x32x4xbf16>
    %125 = vector.shape_cast %124 : vector<1x32x4xbf16> to vector<32x4xbf16>
    %cst_108 = arith.constant dense<0.000000e+00> : vector<16x4xf32>
    %126 = tpu.matmul %123, %125, %cst_108 {dimension_numbers = #tpu.dot_dimension_numbers<[1], [0], [0], [1], [0, 0, 1, 1], [], []>} : vector<16x32xbf16>, vector<32x4xbf16>, vector<16x4xf32> -> vector<16x4xf32>
    %127 = vector.extract_strided_slice %1 {offsets = [6, 0], sizes = [16, 32], strides = [1, 1]} : vector<28x32xbf16> to vector<16x32xbf16>
    %c1_109 = arith.constant 1 : index
    %c0_110 = arith.constant 0 : index
    %c0_111 = arith.constant 0 : index
    %128 = vector.load %arg13[%c1_109, %c0_110, %c0_111] : memref<9x32x4xbf16, #tpu.memory_space<vmem>>, vector<1x32x4xbf16>
    %129 = vector.shape_cast %128 : vector<1x32x4xbf16> to vector<32x4xbf16>
    %cst_112 = arith.constant dense<0.000000e+00> : vector<16x4xf32>
    %130 = tpu.matmul %127, %129, %cst_112 {dimension_numbers = #tpu.dot_dimension_numbers<[1], [0], [0], [1], [0, 0, 1, 1], [], []>} : vector<16x32xbf16>, vector<32x4xbf16>, vector<16x4xf32> -> vector<16x4xf32>
    %131 = arith.addf %126, %130 : vector<16x4xf32>
    %132 = vector.extract_strided_slice %1 {offsets = [12, 0], sizes = [16, 32], strides = [1, 1]} : vector<28x32xbf16> to vector<16x32xbf16>
    %c2_113 = arith.constant 2 : index
    %c0_114 = arith.constant 0 : index
    %c0_115 = arith.constant 0 : index
    %133 = vector.load %arg13[%c2_113, %c0_114, %c0_115] : memref<9x32x4xbf16, #tpu.memory_space<vmem>>, vector<1x32x4xbf16>
    %134 = vector.shape_cast %133 : vector<1x32x4xbf16> to vector<32x4xbf16>
    %cst_116 = arith.constant dense<0.000000e+00> : vector<16x4xf32>
    %135 = tpu.matmul %132, %134, %cst_116 {dimension_numbers = #tpu.dot_dimension_numbers<[1], [0], [0], [1], [0, 0, 1, 1], [], []>} : vector<16x32xbf16>, vector<32x4xbf16>, vector<16x4xf32> -> vector<16x4xf32>
    %136 = arith.addf %131, %135 : vector<16x4xf32>
    %137 = vector.extract_strided_slice %7 {offsets = [0, 0], sizes = [16, 32], strides = [1, 1]} : vector<28x32xbf16> to vector<16x32xbf16>
    %c3_117 = arith.constant 3 : index
    %c0_118 = arith.constant 0 : index
    %c0_119 = arith.constant 0 : index
    %138 = vector.load %arg13[%c3_117, %c0_118, %c0_119] : memref<9x32x4xbf16, #tpu.memory_space<vmem>>, vector<1x32x4xbf16>
    %139 = vector.shape_cast %138 : vector<1x32x4xbf16> to vector<32x4xbf16>
    %cst_120 = arith.constant dense<0.000000e+00> : vector<16x4xf32>
    %140 = tpu.matmul %137, %139, %cst_120 {dimension_numbers = #tpu.dot_dimension_numbers<[1], [0], [0], [1], [0, 0, 1, 1], [], []>} : vector<16x32xbf16>, vector<32x4xbf16>, vector<16x4xf32> -> vector<16x4xf32>
    %141 = arith.addf %136, %140 : vector<16x4xf32>
    %142 = vector.extract_strided_slice %7 {offsets = [6, 0], sizes = [16, 32], strides = [1, 1]} : vector<28x32xbf16> to vector<16x32xbf16>
    %c4_121 = arith.constant 4 : index
    %c0_122 = arith.constant 0 : index
    %c0_123 = arith.constant 0 : index
    %143 = vector.load %arg13[%c4_121, %c0_122, %c0_123] : memref<9x32x4xbf16, #tpu.memory_space<vmem>>, vector<1x32x4xbf16>
    %144 = vector.shape_cast %143 : vector<1x32x4xbf16> to vector<32x4xbf16>
    %cst_124 = arith.constant dense<0.000000e+00> : vector<16x4xf32>
    %145 = tpu.matmul %142, %144, %cst_124 {dimension_numbers = #tpu.dot_dimension_numbers<[1], [0], [0], [1], [0, 0, 1, 1], [], []>} : vector<16x32xbf16>, vector<32x4xbf16>, vector<16x4xf32> -> vector<16x4xf32>
    %146 = arith.addf %141, %145 : vector<16x4xf32>
    %147 = vector.extract_strided_slice %7 {offsets = [12, 0], sizes = [16, 32], strides = [1, 1]} : vector<28x32xbf16> to vector<16x32xbf16>
    %c5_125 = arith.constant 5 : index
    %c0_126 = arith.constant 0 : index
    %c0_127 = arith.constant 0 : index
    %148 = vector.load %arg13[%c5_125, %c0_126, %c0_127] : memref<9x32x4xbf16, #tpu.memory_space<vmem>>, vector<1x32x4xbf16>
    %149 = vector.shape_cast %148 : vector<1x32x4xbf16> to vector<32x4xbf16>
    %cst_128 = arith.constant dense<0.000000e+00> : vector<16x4xf32>
    %150 = tpu.matmul %147, %149, %cst_128 {dimension_numbers = #tpu.dot_dimension_numbers<[1], [0], [0], [1], [0, 0, 1, 1], [], []>} : vector<16x32xbf16>, vector<32x4xbf16>, vector<16x4xf32> -> vector<16x4xf32>
    %151 = arith.addf %146, %150 : vector<16x4xf32>
    %152 = vector.extract_strided_slice %13 {offsets = [0, 0], sizes = [16, 32], strides = [1, 1]} : vector<28x32xbf16> to vector<16x32xbf16>
    %c6_129 = arith.constant 6 : index
    %c0_130 = arith.constant 0 : index
    %c0_131 = arith.constant 0 : index
    %153 = vector.load %arg13[%c6_129, %c0_130, %c0_131] : memref<9x32x4xbf16, #tpu.memory_space<vmem>>, vector<1x32x4xbf16>
    %154 = vector.shape_cast %153 : vector<1x32x4xbf16> to vector<32x4xbf16>
    %cst_132 = arith.constant dense<0.000000e+00> : vector<16x4xf32>
    %155 = tpu.matmul %152, %154, %cst_132 {dimension_numbers = #tpu.dot_dimension_numbers<[1], [0], [0], [1], [0, 0, 1, 1], [], []>} : vector<16x32xbf16>, vector<32x4xbf16>, vector<16x4xf32> -> vector<16x4xf32>
    %156 = arith.addf %151, %155 : vector<16x4xf32>
    %157 = vector.extract_strided_slice %13 {offsets = [6, 0], sizes = [16, 32], strides = [1, 1]} : vector<28x32xbf16> to vector<16x32xbf16>
    %c7_133 = arith.constant 7 : index
    %c0_134 = arith.constant 0 : index
    %c0_135 = arith.constant 0 : index
    %158 = vector.load %arg13[%c7_133, %c0_134, %c0_135] : memref<9x32x4xbf16, #tpu.memory_space<vmem>>, vector<1x32x4xbf16>
    %159 = vector.shape_cast %158 : vector<1x32x4xbf16> to vector<32x4xbf16>
    %cst_136 = arith.constant dense<0.000000e+00> : vector<16x4xf32>
    %160 = tpu.matmul %157, %159, %cst_136 {dimension_numbers = #tpu.dot_dimension_numbers<[1], [0], [0], [1], [0, 0, 1, 1], [], []>} : vector<16x32xbf16>, vector<32x4xbf16>, vector<16x4xf32> -> vector<16x4xf32>
    %161 = arith.addf %156, %160 : vector<16x4xf32>
    %162 = vector.extract_strided_slice %13 {offsets = [12, 0], sizes = [16, 32], strides = [1, 1]} : vector<28x32xbf16> to vector<16x32xbf16>
    %c8_137 = arith.constant 8 : index
    %c0_138 = arith.constant 0 : index
    %c0_139 = arith.constant 0 : index
    %163 = vector.load %arg13[%c8_137, %c0_138, %c0_139] : memref<9x32x4xbf16, #tpu.memory_space<vmem>>, vector<1x32x4xbf16>
    %164 = vector.shape_cast %163 : vector<1x32x4xbf16> to vector<32x4xbf16>
    %cst_140 = arith.constant dense<0.000000e+00> : vector<16x4xf32>
    %165 = tpu.matmul %162, %164, %cst_140 {dimension_numbers = #tpu.dot_dimension_numbers<[1], [0], [0], [1], [0, 0, 1, 1], [], []>} : vector<16x32xbf16>, vector<32x4xbf16>, vector<16x4xf32> -> vector<16x4xf32>
    %166 = arith.addf %161, %165 : vector<16x4xf32>
    %c3_141 = arith.constant 3 : index
    %c0_142 = arith.constant 0 : index
    %c0_143 = arith.constant 0 : index
    %167 = vector.load %arg16[%c3_141, %c0_142, %c0_143] : memref<5x1x4xf32, #tpu.memory_space<vmem>>, vector<1x1x4xf32>
    %168 = vector.shape_cast %167 : vector<1x1x4xf32> to vector<1x4xf32>
    %169 = vector.broadcast %168 : vector<1x4xf32> to vector<16x4xf32>
    %170 = arith.addf %166, %169 : vector<16x4xf32>
    %cst_144 = arith.constant 0.000000e+00 : f32
    %171 = vector.broadcast %cst_144 : f32 to vector<16x4xf32>
    %172 = arith.maximumf %170, %171 : vector<16x4xf32>
    %c0_145 = arith.constant 0 : index
    %c0_146 = arith.constant 0 : index
    %c0_147 = arith.constant 0 : index
    %173 = vector.load %arg9[%c0_145, %c0_146, %c0_147] : memref<1x1x32xbf16, #tpu.memory_space<vmem>>, vector<1x1x32xbf16>
    %174 = vector.shape_cast %173 : vector<1x1x32xbf16> to vector<1x32xbf16>
    %c0_148 = arith.constant 0 : index
    %c0_149 = arith.constant 0 : index
    %175 = vector.load %arg14[%c0_148, %c0_149] : memref<32x4xbf16, #tpu.memory_space<vmem>>, vector<32x4xbf16>
    %cst_150 = arith.constant dense<0.000000e+00> : vector<1x4xf32>
    %176 = tpu.matmul %174, %175, %cst_150 {dimension_numbers = #tpu.dot_dimension_numbers<[1], [0], [0], [1], [0, 0, 1, 1], [], []>} : vector<1x32xbf16>, vector<32x4xbf16>, vector<1x4xf32> -> vector<1x4xf32>
    %c4_151 = arith.constant 4 : index
    %c0_152 = arith.constant 0 : index
    %c0_153 = arith.constant 0 : index
    %177 = vector.load %arg16[%c4_151, %c0_152, %c0_153] : memref<5x1x4xf32, #tpu.memory_space<vmem>>, vector<1x1x4xf32>
    %178 = vector.shape_cast %177 : vector<1x1x4xf32> to vector<1x4xf32>
    %179 = arith.addf %176, %178 : vector<1x4xf32>
    %cst_154 = arith.constant 0.000000e+00 : f32
    %180 = vector.broadcast %cst_154 : f32 to vector<1x4xf32>
    %181 = arith.maximumf %179, %180 : vector<1x4xf32>
    %182 = arith.truncf %22 : vector<16x4xf32> to vector<16x4xbf16>
    %c0_155 = arith.constant 0 : index
    %c0_156 = arith.constant 0 : index
    %c0_157 = arith.constant 0 : index
    %183 = vector.load %arg15[%c0_155, %c0_156, %c0_157] : memref<5x4x4xbf16, #tpu.memory_space<vmem>>, vector<1x4x4xbf16>
    %184 = vector.shape_cast %183 : vector<1x4x4xbf16> to vector<4x4xbf16>
    %cst_158 = arith.constant dense<0.000000e+00> : vector<16x4xf32>
    %185 = tpu.matmul %182, %184, %cst_158 {dimension_numbers = #tpu.dot_dimension_numbers<[1], [0], [0], [1], [0, 0, 1, 1], [], []>} : vector<16x4xbf16>, vector<4x4xbf16>, vector<16x4xf32> -> vector<16x4xf32>
    %186 = arith.truncf %72 : vector<16x4xf32> to vector<16x4xbf16>
    %c1_159 = arith.constant 1 : index
    %c0_160 = arith.constant 0 : index
    %c0_161 = arith.constant 0 : index
    %187 = vector.load %arg15[%c1_159, %c0_160, %c0_161] : memref<5x4x4xbf16, #tpu.memory_space<vmem>>, vector<1x4x4xbf16>
    %188 = vector.shape_cast %187 : vector<1x4x4xbf16> to vector<4x4xbf16>
    %cst_162 = arith.constant dense<0.000000e+00> : vector<16x4xf32>
    %189 = tpu.matmul %186, %188, %cst_162 {dimension_numbers = #tpu.dot_dimension_numbers<[1], [0], [0], [1], [0, 0, 1, 1], [], []>} : vector<16x4xbf16>, vector<4x4xbf16>, vector<16x4xf32> -> vector<16x4xf32>
    %190 = arith.addf %185, %189 : vector<16x4xf32>
    %191 = arith.truncf %122 : vector<16x4xf32> to vector<16x4xbf16>
    %c2_163 = arith.constant 2 : index
    %c0_164 = arith.constant 0 : index
    %c0_165 = arith.constant 0 : index
    %192 = vector.load %arg15[%c2_163, %c0_164, %c0_165] : memref<5x4x4xbf16, #tpu.memory_space<vmem>>, vector<1x4x4xbf16>
    %193 = vector.shape_cast %192 : vector<1x4x4xbf16> to vector<4x4xbf16>
    %cst_166 = arith.constant dense<0.000000e+00> : vector<16x4xf32>
    %194 = tpu.matmul %191, %193, %cst_166 {dimension_numbers = #tpu.dot_dimension_numbers<[1], [0], [0], [1], [0, 0, 1, 1], [], []>} : vector<16x4xbf16>, vector<4x4xbf16>, vector<16x4xf32> -> vector<16x4xf32>
    %195 = arith.addf %190, %194 : vector<16x4xf32>
    %196 = arith.truncf %172 : vector<16x4xf32> to vector<16x4xbf16>
    %c3_167 = arith.constant 3 : index
    %c0_168 = arith.constant 0 : index
    %c0_169 = arith.constant 0 : index
    %197 = vector.load %arg15[%c3_167, %c0_168, %c0_169] : memref<5x4x4xbf16, #tpu.memory_space<vmem>>, vector<1x4x4xbf16>
    %198 = vector.shape_cast %197 : vector<1x4x4xbf16> to vector<4x4xbf16>
    %cst_170 = arith.constant dense<0.000000e+00> : vector<16x4xf32>
    %199 = tpu.matmul %196, %198, %cst_170 {dimension_numbers = #tpu.dot_dimension_numbers<[1], [0], [0], [1], [0, 0, 1, 1], [], []>} : vector<16x4xbf16>, vector<4x4xbf16>, vector<16x4xf32> -> vector<16x4xf32>
    %200 = arith.addf %195, %199 : vector<16x4xf32>
    %201 = arith.truncf %181 : vector<1x4xf32> to vector<1x4xbf16>
    %c4_171 = arith.constant 4 : index
    %c0_172 = arith.constant 0 : index
    %c0_173 = arith.constant 0 : index
    %202 = vector.load %arg15[%c4_171, %c0_172, %c0_173] : memref<5x4x4xbf16, #tpu.memory_space<vmem>>, vector<1x4x4xbf16>
    %203 = vector.shape_cast %202 : vector<1x4x4xbf16> to vector<4x4xbf16>
    %cst_174 = arith.constant dense<0.000000e+00> : vector<1x4xf32>
    %204 = tpu.matmul %201, %203, %cst_174 {dimension_numbers = #tpu.dot_dimension_numbers<[1], [0], [0], [1], [0, 0, 1, 1], [], []>} : vector<1x4xbf16>, vector<4x4xbf16>, vector<1x4xf32> -> vector<1x4xf32>
    %205 = vector.broadcast %204 : vector<1x4xf32> to vector<16x4xf32>
    %206 = arith.addf %200, %205 : vector<16x4xf32>
    %c0_175 = arith.constant 0 : index
    %c0_176 = arith.constant 0 : index
    %207 = vector.load %arg17[%c0_175, %c0_176] : memref<1x4xf32, #tpu.memory_space<vmem>>, vector<1x4xf32>
    %208 = vector.broadcast %207 : vector<1x4xf32> to vector<16x4xf32>
    %209 = arith.addf %206, %208 : vector<16x4xf32>
    %cst_177 = arith.constant 0.000000e+00 : f32
    %210 = vector.broadcast %cst_177 : f32 to vector<16x4xf32>
    %211 = arith.maximumf %209, %210 : vector<16x4xf32>
    %c0_178 = arith.constant 0 : index
    %c0_179 = arith.constant 0 : index
    %c0_180 = arith.constant 0 : index
    %c0_181 = arith.constant 0 : index
    %212 = vector.load %arg18[%c0_178, %c0_179, %c0_180, %c0_181] : memref<1x1x16x4xf32, #tpu.memory_space<vmem>>, vector<1x1x16x4xf32>
    %213 = vector.shape_cast %212 : vector<1x1x16x4xf32> to vector<16x4xf32>
    %214 = vector.shape_cast %22 : vector<16x4xf32> to vector<1x1x16x4xf32>
    tpu.vector_store %arg18[%c0_178, %c0_179, %c0_180, %c0_181], %214 {strides = array<i32>} : memref<1x1x16x4xf32, #tpu.memory_space<vmem>>, vector<1x1x16x4xf32>,
    %c0_182 = arith.constant 0 : index
    %c0_183 = arith.constant 0 : index
    %c0_184 = arith.constant 0 : index
    %c0_185 = arith.constant 0 : index
    %215 = vector.load %arg19[%c0_182, %c0_183, %c0_184, %c0_185] : memref<1x1x16x4xf32, #tpu.memory_space<vmem>>, vector<1x1x16x4xf32>
    %216 = vector.shape_cast %215 : vector<1x1x16x4xf32> to vector<16x4xf32>
    %217 = vector.shape_cast %72 : vector<16x4xf32> to vector<1x1x16x4xf32>
    tpu.vector_store %arg19[%c0_182, %c0_183, %c0_184, %c0_185], %217 {strides = array<i32>} : memref<1x1x16x4xf32, #tpu.memory_space<vmem>>, vector<1x1x16x4xf32>,
    %c0_186 = arith.constant 0 : index
    %c0_187 = arith.constant 0 : index
    %c0_188 = arith.constant 0 : index
    %c0_189 = arith.constant 0 : index
    %218 = vector.load %arg20[%c0_186, %c0_187, %c0_188, %c0_189] : memref<1x1x16x4xf32, #tpu.memory_space<vmem>>, vector<1x1x16x4xf32>
    %219 = vector.shape_cast %218 : vector<1x1x16x4xf32> to vector<16x4xf32>
    %220 = vector.shape_cast %122 : vector<16x4xf32> to vector<1x1x16x4xf32>
    tpu.vector_store %arg20[%c0_186, %c0_187, %c0_188, %c0_189], %220 {strides = array<i32>} : memref<1x1x16x4xf32, #tpu.memory_space<vmem>>, vector<1x1x16x4xf32>,
    %c0_190 = arith.constant 0 : index
    %c0_191 = arith.constant 0 : index
    %c0_192 = arith.constant 0 : index
    %c0_193 = arith.constant 0 : index
    %221 = vector.load %arg21[%c0_190, %c0_191, %c0_192, %c0_193] : memref<1x1x16x4xf32, #tpu.memory_space<vmem>>, vector<1x1x16x4xf32>
    %222 = vector.shape_cast %221 : vector<1x1x16x4xf32> to vector<16x4xf32>
    %223 = vector.shape_cast %172 : vector<16x4xf32> to vector<1x1x16x4xf32>
    tpu.vector_store %arg21[%c0_190, %c0_191, %c0_192, %c0_193], %223 {strides = array<i32>} : memref<1x1x16x4xf32, #tpu.memory_space<vmem>>, vector<1x1x16x4xf32>,
    %224 = vector.shape_cast %181 : vector<1x4xf32> to vector<1x4xf32>
    %225 = vector.broadcast %224 : vector<1x4xf32> to vector<16x4xf32>
    %c0_194 = arith.constant 0 : index
    %c0_195 = arith.constant 0 : index
    %c0_196 = arith.constant 0 : index
    %c0_197 = arith.constant 0 : index
    %226 = vector.load %arg22[%c0_194, %c0_195, %c0_196, %c0_197] : memref<1x1x16x4xf32, #tpu.memory_space<vmem>>, vector<1x1x16x4xf32>
    %227 = vector.shape_cast %226 : vector<1x1x16x4xf32> to vector<16x4xf32>
    %228 = vector.shape_cast %225 : vector<16x4xf32> to vector<1x1x16x4xf32>
    tpu.vector_store %arg22[%c0_194, %c0_195, %c0_196, %c0_197], %228 {strides = array<i32>} : memref<1x1x16x4xf32, #tpu.memory_space<vmem>>, vector<1x1x16x4xf32>,
    %c0_198 = arith.constant 0 : index
    %c0_199 = arith.constant 0 : index
    %c0_200 = arith.constant 0 : index
    %c0_201 = arith.constant 0 : index
    %229 = vector.load %arg23[%c0_198, %c0_199, %c0_200, %c0_201] : memref<1x1x16x4xf32, #tpu.memory_space<vmem>>, vector<1x1x16x4xf32>
    %230 = vector.shape_cast %229 : vector<1x1x16x4xf32> to vector<16x4xf32>
    %231 = vector.shape_cast %211 : vector<16x4xf32> to vector<1x1x16x4xf32>
    tpu.vector_store %arg23[%c0_198, %c0_199, %c0_200, %c0_201], %231 {strides = array<i32>} : memref<1x1x16x4xf32, #tpu.memory_space<vmem>>, vector<1x1x16x4xf32>,
    return
  }
  func.func @transform_0(%arg0: i32, %arg1: i32) -> (i32, i32, i32, i32) {
    %c6_i32 = arith.constant 6 : i32
    %0 = arith.addi %arg1, %c6_i32 : i32
    %c-6_i32 = arith.constant -6 : i32
    %1 = arith.addi %0, %c-6_i32 : i32
    %c0_i32 = arith.constant 0 : i32
    %c0_i32_0 = arith.constant 0 : i32
    %c0_i32_1 = arith.constant 0 : i32
    return %arg0, %1, %c0_i32, %c0_i32_0 : i32, i32, i32, i32
  }
  func.func @transform_1(%arg0: i32, %arg1: i32) -> (i32, i32, i32, i32) {
    %c6_i32 = arith.constant 6 : i32
    %0 = arith.addi %arg1, %c6_i32 : i32
    %c-4_i32 = arith.constant -4 : i32
    %1 = arith.addi %0, %c-4_i32 : i32
    %c0_i32 = arith.constant 0 : i32
    %c0_i32_0 = arith.constant 0 : i32
    %c0_i32_1 = arith.constant 0 : i32
    return %arg0, %1, %c0_i32, %c0_i32_0 : i32, i32, i32, i32
  }
  func.func @transform_2(%arg0: i32, %arg1: i32) -> (i32, i32, i32, i32) {
    %c6_i32 = arith.constant 6 : i32
    %0 = arith.addi %arg1, %c6_i32 : i32
    %c-2_i32 = arith.constant -2 : i32
    %1 = arith.addi %0, %c-2_i32 : i32
    %c0_i32 = arith.constant 0 : i32
    %c0_i32_0 = arith.constant 0 : i32
    %c0_i32_1 = arith.constant 0 : i32
    return %arg0, %1, %c0_i32, %c0_i32_0 : i32, i32, i32, i32
  }
  func.func @transform_3(%arg0: i32, %arg1: i32) -> (i32, i32, i32, i32) {
    %c6_i32 = arith.constant 6 : i32
    %0 = arith.addi %arg1, %c6_i32 : i32
    %c0_i32 = arith.constant 0 : i32
    %1 = arith.addi %0, %c0_i32 : i32
    %c0_i32_0 = arith.constant 0 : i32
    %c0_i32_1 = arith.constant 0 : i32
    %c0_i32_2 = arith.constant 0 : i32
    return %arg0, %1, %c0_i32_0, %c0_i32_1 : i32, i32, i32, i32
  }
  func.func @transform_4(%arg0: i32, %arg1: i32) -> (i32, i32, i32, i32) {
    %c6_i32 = arith.constant 6 : i32
    %0 = arith.addi %arg1, %c6_i32 : i32
    %c2_i32 = arith.constant 2 : i32
    %1 = arith.addi %0, %c2_i32 : i32
    %c0_i32 = arith.constant 0 : i32
    %c0_i32_0 = arith.constant 0 : i32
    %c0_i32_1 = arith.constant 0 : i32
    return %arg0, %1, %c0_i32, %c0_i32_0 : i32, i32, i32, i32
  }
  func.func @transform_5(%arg0: i32, %arg1: i32) -> (i32, i32, i32, i32) {
    %c6_i32 = arith.constant 6 : i32
    %0 = arith.addi %arg1, %c6_i32 : i32
    %c4_i32 = arith.constant 4 : i32
    %1 = arith.addi %0, %c4_i32 : i32
    %c0_i32 = arith.constant 0 : i32
    %c0_i32_0 = arith.constant 0 : i32
    %c0_i32_1 = arith.constant 0 : i32
    return %arg0, %1, %c0_i32, %c0_i32_0 : i32, i32, i32, i32
  }
  func.func @transform_6(%arg0: i32, %arg1: i32) -> (i32, i32, i32, i32) {
    %c6_i32 = arith.constant 6 : i32
    %0 = arith.addi %arg1, %c6_i32 : i32
    %c6_i32_0 = arith.constant 6 : i32
    %1 = arith.addi %0, %c6_i32_0 : i32
    %c0_i32 = arith.constant 0 : i32
    %c0_i32_1 = arith.constant 0 : i32
    %c0_i32_2 = arith.constant 0 : i32
    return %arg0, %1, %c0_i32, %c0_i32_1 : i32, i32, i32, i32
  }
  func.func @transform_7(%arg0: i32, %arg1: i32) -> (i32, i32, i32) {
    %c0_i32 = arith.constant 0 : i32
    %c0_i32_0 = arith.constant 0 : i32
    %c0_i32_1 = arith.constant 0 : i32
    return %arg0, %c0_i32, %c0_i32_0 : i32, i32, i32
  }
  func.func @transform_8(%arg0: i32, %arg1: i32) -> (i32, i32) {
    %c0_i32 = arith.constant 0 : i32
    %c0_i32_0 = arith.constant 0 : i32
    %c0_i32_1 = arith.constant 0 : i32
    return %c0_i32, %c0_i32_0 : i32, i32
  }
  func.func @transform_9(%arg0: i32, %arg1: i32) -> (i32, i32, i32) {
    %c0_i32 = arith.constant 0 : i32
    %c0_i32_0 = arith.constant 0 : i32
    %c0_i32_1 = arith.constant 0 : i32
    %c0_i32_2 = arith.constant 0 : i32
    return %c0_i32, %c0_i32_0, %c0_i32_1 : i32, i32, i32
  }
  func.func @transform_10(%arg0: i32, %arg1: i32) -> (i32, i32, i32) {
    %c0_i32 = arith.constant 0 : i32
    %c0_i32_0 = arith.constant 0 : i32
    %c0_i32_1 = arith.constant 0 : i32
    %c0_i32_2 = arith.constant 0 : i32
    return %c0_i32, %c0_i32_0, %c0_i32_1 : i32, i32, i32
  }
  func.func @transform_11(%arg0: i32, %arg1: i32) -> (i32, i32, i32) {
    %c0_i32 = arith.constant 0 : i32
    %c0_i32_0 = arith.constant 0 : i32
    %c0_i32_1 = arith.constant 0 : i32
    %c0_i32_2 = arith.constant 0 : i32
    return %c0_i32, %c0_i32_0, %c0_i32_1 : i32, i32, i32
  }
  func.func @transform_12(%arg0: i32, %arg1: i32) -> (i32, i32) {
    %c0_i32 = arith.constant 0 : i32
    %c0_i32_0 = arith.constant 0 : i32
    %c0_i32_1 = arith.constant 0 : i32
    return %c0_i32, %c0_i32_0 : i32, i32
  }
  func.func @transform_13(%arg0: i32, %arg1: i32) -> (i32, i32, i32) {
    %c0_i32 = arith.constant 0 : i32
    %c0_i32_0 = arith.constant 0 : i32
    %c0_i32_1 = arith.constant 0 : i32
    %c0_i32_2 = arith.constant 0 : i32
    return %c0_i32, %c0_i32_0, %c0_i32_1 : i32, i32, i32
  }
  func.func @transform_14(%arg0: i32, %arg1: i32) -> (i32, i32, i32) {
    %c0_i32 = arith.constant 0 : i32
    %c0_i32_0 = arith.constant 0 : i32
    %c0_i32_1 = arith.constant 0 : i32
    %c0_i32_2 = arith.constant 0 : i32
    return %c0_i32, %c0_i32_0, %c0_i32_1 : i32, i32, i32
  }
  func.func @transform_15(%arg0: i32, %arg1: i32) -> (i32, i32) {
    %c0_i32 = arith.constant 0 : i32
    %c0_i32_0 = arith.constant 0 : i32
    %c0_i32_1 = arith.constant 0 : i32
    return %c0_i32, %c0_i32_0 : i32, i32
  }
  func.func @transform_16(%arg0: i32, %arg1: i32) -> (i32, i32, i32, i32) {
    %c0_i32 = arith.constant 0 : i32
    %c0_i32_0 = arith.constant 0 : i32
    %c0_i32_1 = arith.constant 0 : i32
    return %arg0, %arg1, %c0_i32, %c0_i32_0 : i32, i32, i32, i32
  }
  func.func @transform_17(%arg0: i32, %arg1: i32) -> (i32, i32, i32, i32) {
    %c0_i32 = arith.constant 0 : i32
    %c0_i32_0 = arith.constant 0 : i32
    %c0_i32_1 = arith.constant 0 : i32
    return %arg0, %arg1, %c0_i32, %c0_i32_0 : i32, i32, i32, i32
  }
  func.func @transform_18(%arg0: i32, %arg1: i32) -> (i32, i32, i32, i32) {
    %c0_i32 = arith.constant 0 : i32
    %c0_i32_0 = arith.constant 0 : i32
    %c0_i32_1 = arith.constant 0 : i32
    return %arg0, %arg1, %c0_i32, %c0_i32_0 : i32, i32, i32, i32
  }
  func.func @transform_19(%arg0: i32, %arg1: i32) -> (i32, i32, i32, i32) {
    %c0_i32 = arith.constant 0 : i32
    %c0_i32_0 = arith.constant 0 : i32
    %c0_i32_1 = arith.constant 0 : i32
    return %arg0, %arg1, %c0_i32, %c0_i32_0 : i32, i32, i32, i32
  }
  func.func @transform_20(%arg0: i32, %arg1: i32) -> (i32, i32, i32, i32) {
    %c0_i32 = arith.constant 0 : i32
    %c0_i32_0 = arith.constant 0 : i32
    %c0_i32_1 = arith.constant 0 : i32
    return %arg0, %arg1, %c0_i32, %c0_i32_0 : i32, i32, i32, i32
  }
  func.func @transform_21(%arg0: i32, %arg1: i32) -> (i32, i32, i32, i32) {
    %c0_i32 = arith.constant 0 : i32
    %c0_i32_0 = arith.constant 0 : i32
    %c0_i32_1 = arith.constant 0 : i32
    return %arg0, %arg1, %c0_i32, %c0_i32_0 : i32, i32, i32, i32
  }
}

</mosaic_0001>

<llo_original>
// kernel: aspp_forward.1
$region0: #{aspp_forward.1}
  #allocation0 [shape = 'u32[]', space=smem, size = 0x4, offset = 0x4, fixed_abs, tag = 'smem constant byte address 0x4 - core index']
  #allocation1 [shape = 'u32[144,128]{1,0:T(1,128)}', space=vmem, size = 0x12000, scoped, tag = 'internal scratch']
  %s0 = inlined_call_operand.vmem [shape: bf16[2,28,28,32], index: 0, kind: input, shape index: {}, may-alias: {0,1,2,3,4,5,6}]
  %s1 = inlined_call_operand.vmem [shape: bf16[2,28,28,32], index: 1, kind: input, shape index: {}, may-alias: {0,1,2,3,4,5,6}]
  %s2 = inlined_call_operand.vmem [shape: bf16[2,28,28,32], index: 2, kind: input, shape index: {}, may-alias: {0,1,2,3,4,5,6}]
  %s3 = inlined_call_operand.vmem [shape: bf16[2,28,28,32], index: 3, kind: input, shape index: {}, may-alias: {0,1,2,3,4,5,6}]
  %s4 = inlined_call_operand.vmem [shape: bf16[2,28,28,32], index: 4, kind: input, shape index: {}, may-alias: {0,1,2,3,4,5,6}]
  %s5 = inlined_call_operand.vmem [shape: bf16[2,28,28,32], index: 5, kind: input, shape index: {}, may-alias: {0,1,2,3,4,5,6}]
  %s6 = inlined_call_operand.vmem [shape: bf16[2,28,28,32], index: 6, kind: input, shape index: {}, may-alias: {0,1,2,3,4,5,6}]
  %s7 = inlined_call_operand.vmem [shape: bf16[2,1,32], index: 7, kind: input, shape index: {}]
  %s8 = inlined_call_operand.vmem [shape: bf16[32,4], index: 8, kind: input, shape index: {}]
  %s9 = inlined_call_operand.vmem [shape: bf16[9,32,4], index: 9, kind: input, shape index: {}]
  %s10 = inlined_call_operand.vmem [shape: bf16[9,32,4], index: 10, kind: input, shape index: {}]
  %s11 = inlined_call_operand.vmem [shape: bf16[9,32,4], index: 11, kind: input, shape index: {}]
  %s12 = inlined_call_operand.vmem [shape: bf16[32,4], index: 12, kind: input, shape index: {}]
  %s13 = inlined_call_operand.vmem [shape: bf16[5,4,4], index: 13, kind: input, shape index: {}]
  %s14 = inlined_call_operand.vmem [shape: f32[5,1,4], index: 14, kind: input, shape index: {}]
  %s15 = inlined_call_operand.vmem [shape: f32[1,4], index: 15, kind: input, shape index: {}]
  %s16 = inlined_call_operand.vmem [shape: f32[2,16,16,4], index: 16, kind: output, shape index: {0}]
  %s17 = inlined_call_operand.vmem [shape: f32[2,16,16,4], index: 17, kind: output, shape index: {1}]
  %s18 = inlined_call_operand.vmem [shape: f32[2,16,16,4], index: 18, kind: output, shape index: {2}]
  %s19 = inlined_call_operand.vmem [shape: f32[2,16,16,4], index: 19, kind: output, shape index: {3}]
  %s20 = inlined_call_operand.vmem [shape: f32[2,16,16,4], index: 20, kind: output, shape index: {4}]
  %s21 = inlined_call_operand.vmem [shape: f32[2,16,16,4], index: 21, kind: output, shape index: {5}]
  %22 = xla_tuple %s16, %s17, %s18, %s19, %s20, %s21
  %s23 = sld [smem:[#allocation0]]
  $region137: #{aspp_forward.1} parent=0
    _
  %s25 = ssub.s32 1, %s23
  %s26 = scalar_select 0, %s25, %s23
  loop: start=0, step=1, limit=34
  $region2: #{aspp_forward.1} parent=0 // loop_pre_header
    _
  $region3: #{aspp_forward.1} parent=0 // loop_header
    %s28 = sphi 0, %s32
    %p29 = scmp.ge.s32.totalorder %s28, 34
    %s35 = sphi 0, %s47
    %s36 = sphi 0, %s43
    %s37 = sphi 0, %s35
    %s38 = sphi 0, %s36
    %s39 = sphi 0, %s37
    %s40 = sphi 0, %s38
    %s52 = sphi 0, %s54
    %s55 = sphi 0, %s52
    %s56 = sphi 0, %s55
    %s72 = sphi 0, %s56
    %s82 = sphi 0, %s84
    %s85 = sphi 0, %s82
    %s86 = sphi 0, %s85
    %s102 = sphi 0, %s86
    %s112 = sphi 0, %s114
    %s115 = sphi 0, %s112
    %s116 = sphi 0, %s115
    %s132 = sphi 0, %s116
    %s142 = sphi 0, %s144
    %s145 = sphi 0, %s142
    %s146 = sphi 0, %s145
    %s162 = sphi 0, %s146
    %s172 = sphi 0, %s174
    %s175 = sphi 0, %s172
    %s176 = sphi 0, %s175
    %s192 = sphi 0, %s176
    %s202 = sphi 0, %s204
    %s205 = sphi 0, %s202
    %s206 = sphi 0, %s205
    %s222 = sphi 0, %s206
    %s232 = sphi 0, %s234
    %s235 = sphi 0, %s232
    %s236 = sphi 0, %s235
    %s252 = sphi 0, %s236
    %s258 = sphi 0, %s260
    %s261 = sphi 0, %s258
    %s262 = sphi 0, %s261
    %s278 = sphi 0, %s262
    %s282 = sphi 0, %s282
    %s284 = sphi 0, %s282
    %s285 = sphi 0, %s284
    %s299 = sphi 0, %s285
    %s303 = sphi 0, %s303
    %s305 = sphi 0, %s303
    %s306 = sphi 0, %s305
    %s320 = sphi 0, %s306
    %s324 = sphi 0, %s324
    %s326 = sphi 0, %s324
    %s327 = sphi 0, %s326
    %s341 = sphi 0, %s327
    %s345 = sphi 0, %s345
    %s347 = sphi 0, %s345
    %s348 = sphi 0, %s347
    %s362 = sphi 0, %s348
    %s366 = sphi 0, %s366
    %s368 = sphi 0, %s366
    %s369 = sphi 0, %s368
    %s383 = sphi 0, %s369
    %s387 = sphi 0, %s387
    %s389 = sphi 0, %s387
    %s390 = sphi 0, %s389
    %s404 = sphi 0, %s390
    %s408 = sphi 0, %s408
    %s410 = sphi 0, %s408
    %s411 = sphi 0, %s410
    %s425 = sphi 0, %s411
    %s429 = sphi 0, %s429
    %s431 = sphi 0, %s429
    %s432 = sphi 0, %s431
    %s446 = sphi 0, %s432
    %s454 = sphi 0, %s456
    %s457 = sphi 0, %s454
    %s458 = sphi 0, %s457
    %s474 = sphi 0, %s458
    %s482 = sphi 0, %s484
    %s485 = sphi 0, %s482
    %s486 = sphi 0, %s485
    %s502 = sphi 0, %s486
    %s510 = sphi 0, %s512
    %s513 = sphi 0, %s510
    %s514 = sphi 0, %s513
    %s530 = sphi 0, %s514
    %s538 = sphi 0, %s540
    %s541 = sphi 0, %s538
    %s542 = sphi 0, %s541
    %s558 = sphi 0, %s542
    %s566 = sphi 0, %s568
    %s569 = sphi 0, %s566
    %s570 = sphi 0, %s569
    %s586 = sphi 0, %s570
    %s594 = sphi 0, %s596
    %s597 = sphi 0, %s594
    %s598 = sphi 0, %s597
    %s614 = sphi 0, %s598
  $region4: #{aspp_forward.1} parent=0 // loop_header_branch
    %31 = sbr.rel (%p29) target = $region8
  $region5: #{aspp_forward.1} parent=0 // loop_body
    %s33 = ssub.s32 %s28, 1
    %s34 = ssub.s32 %s28, 2
    %s41 = sadd.s32 1, %s36
    %p42 = scmp.ge.s32.totalorder %s41, 16
    %s43 = scalar_select %p42, 0, %s41
    %s44 = sadd.s32 1, %s35
    %s45 = scalar_select %p42, %s44, %s35
    %p46 = scmp.ge.s32.totalorder %s45, 2
    %s47 = scalar_select %p46, 0, %s45
    %s48 = ssub.s32 %s35, %s47
    %s49 = ssub.s32 %s36, %s43
    %s50 = sor.u32 %s48, %s49
    %p51 = scmp.eq.s32.totalorder %s50, 0
    %s53 = sadd.s32 %s52, 1
    %s54 = scalar_select %p51, %s52, %s53
    %p57 = pneg %p51
    %p58 = scmp.eq.s32.totalorder %s28, 31
    %p59 = por %p57, %p58
    %p60 = scmp.ne.s32.totalorder %s52, %s55
    %p61 = scmp.eq.s32.totalorder %s28, 0
    %p62 = por %p60, %p61
    %p63 = scmp.ne.s32.totalorder %s52, %s55
    %p64 = scmp.eq.s32.totalorder %s33, 31
    %p65 = por %p63, %p64
    %p66 = scmp.ne.s32.totalorder %s55, %s56
    %p67 = scmp.eq.s32.totalorder %s33, 0
    %p68 = por %p66, %p67
    %p69 = scmp.ne.s32.totalorder %s55, %s56
    %p70 = scmp.eq.s32.totalorder %s34, 31
    %p71 = por %p69, %p70
    %p73 = scmp.ne.s32.totalorder %s56, %s72
    %p74 = scmp.eq.s32.totalorder %s34, 0
    %p75 = por %p73, %p74
    %s76 = sadd.s32 %s36, 2
    %s77 = sadd.s32 %s43, 2
    %s78 = ssub.s32 %s35, %s47
    %s79 = ssub.s32 %s76, %s77
    %s80 = sor.u32 %s78, %s79
    %p81 = scmp.eq.s32.totalorder %s80, 0
    %s83 = sadd.s32 %s82, 1
    %s84 = scalar_select %p81, %s82, %s83
    %p87 = pneg %p81
    %p88 = scmp.eq.s32.totalorder %s28, 31
    %p89 = por %p87, %p88
    %p90 = scmp.ne.s32.totalorder %s82, %s85
    %p91 = scmp.eq.s32.totalorder %s28, 0
    %p92 = por %p90, %p91
    %p93 = scmp.ne.s32.totalorder %s82, %s85
    %p94 = scmp.eq.s32.totalorder %s33, 31
    %p95 = por %p93, %p94
    %p96 = scmp.ne.s32.totalorder %s85, %s86
    %p97 = scmp.eq.s32.totalorder %s33, 0
    %p98 = por %p96, %p97
    %p99 = scmp.ne.s32.totalorder %s85, %s86
    %p100 = scmp.eq.s32.totalorder %s34, 31
    %p101 = por %p99, %p100
    %p103 = scmp.ne.s32.totalorder %s86, %s102
    %p104 = scmp.eq.s32.totalorder %s34, 0
    %p105 = por %p103, %p104
    %s106 = sadd.s32 %s36, 4
    %s107 = sadd.s32 %s43, 4
    %s108 = ssub.s32 %s35, %s47
    %s109 = ssub.s32 %s106, %s107
    %s110 = sor.u32 %s108, %s109
    %p111 = scmp.eq.s32.totalorder %s110, 0
    %s113 = sadd.s32 %s112, 1
    %s114 = scalar_select %p111, %s112, %s113
    %p117 = pneg %p111
    %p118 = scmp.eq.s32.totalorder %s28, 31
    %p119 = por %p117, %p118
    %p120 = scmp.ne.s32.totalorder %s112, %s115
    %p121 = scmp.eq.s32.totalorder %s28, 0
    %p122 = por %p120, %p121
    %p123 = scmp.ne.s32.totalorder %s112, %s115
    %p124 = scmp.eq.s32.totalorder %s33, 31
    %p125 = por %p123, %p124
    %p126 = scmp.ne.s32.totalorder %s115, %s116
    %p127 = scmp.eq.s32.totalorder %s33, 0
    %p128 = por %p126, %p127
    %p129 = scmp.ne.s32.totalorder %s115, %s116
    %p130 = scmp.eq.s32.totalorder %s34, 31
    %p131 = por %p129, %p130
    %p133 = scmp.ne.s32.totalorder %s116, %s132
    %p134 = scmp.eq.s32.totalorder %s34, 0
    %p135 = por %p133, %p134
    %s136 = sadd.s32 %s36, 6
    %s137 = sadd.s32 %s43, 6
    %s138 = ssub.s32 %s35, %s47
    %s139 = ssub.s32 %s136, %s137
    %s140 = sor.u32 %s138, %s139
    %p141 = scmp.eq.s32.totalorder %s140, 0
    %s143 = sadd.s32 %s142, 1
    %s144 = scalar_select %p141, %s142, %s143
    %p147 = pneg %p141
    %p148 = scmp.eq.s32.totalorder %s28, 31
    %p149 = por %p147, %p148
    %p150 = scmp.ne.s32.totalorder %s142, %s145
    %p151 = scmp.eq.s32.totalorder %s28, 0
    %p152 = por %p150, %p151
    %p153 = scmp.ne.s32.totalorder %s142, %s145
    %p154 = scmp.eq.s32.totalorder %s33, 31
    %p155 = por %p153, %p154
    %p156 = scmp.ne.s32.totalorder %s145, %s146
    %p157 = scmp.eq.s32.totalorder %s33, 0
    %p158 = por %p156, %p157
    %p159 = scmp.ne.s32.totalorder %s145, %s146
    %p160 = scmp.eq.s32.totalorder %s34, 31
    %p161 = por %p159, %p160
    %p163 = scmp.ne.s32.totalorder %s146, %s162
    %p164 = scmp.eq.s32.totalorder %s34, 0
    %p165 = por %p163, %p164
    %s166 = sadd.s32 %s36, 8
    %s167 = sadd.s32 %s43, 8
    %s168 = ssub.s32 %s35, %s47
    %s169 = ssub.s32 %s166, %s167
    %s170 = sor.u32 %s168, %s169
    %p171 = scmp.eq.s32.totalorder %s170, 0
    %s173 = sadd.s32 %s172, 1
    %s174 = scalar_select %p171, %s172, %s173
    %p177 = pneg %p171
    %p178 = scmp.eq.s32.totalorder %s28, 31
    %p179 = por %p177, %p178
    %p180 = scmp.ne.s32.totalorder %s172, %s175
    %p181 = scmp.eq.s32.totalorder %s28, 0
    %p182 = por %p180, %p181
    %p183 = scmp.ne.s32.totalorder %s172, %s175
    %p184 = scmp.eq.s32.totalorder %s33, 31
    %p185 = por %p183, %p184
    %p186 = scmp.ne.s32.totalorder %s175, %s176
    %p187 = scmp.eq.s32.totalorder %s33, 0
    %p188 = por %p186, %p187
    %p189 = scmp.ne.s32.totalorder %s175, %s176
    %p190 = scmp.eq.s32.totalorder %s34, 31
    %p191 = por %p189, %p190
    %p193 = scmp.ne.s32.totalorder %s176, %s192
    %p194 = scmp.eq.s32.totalorder %s34, 0
    %p195 = por %p193, %p194
    %s196 = sadd.s32 %s36, 10
    %s197 = sadd.s32 %s43, 10
    %s198 = ssub.s32 %s35, %s47
    %s199 = ssub.s32 %s196, %s197
    %s200 = sor.u32 %s198, %s199
    %p201 = scmp.eq.s32.totalorder %s200, 0
    %s203 = sadd.s32 %s202, 1
    %s204 = scalar_select %p201, %s202, %s203
    %p207 = pneg %p201
    %p208 = scmp.eq.s32.totalorder %s28, 31
    %p209 = por %p207, %p208
    %p210 = scmp.ne.s32.totalorder %s202, %s205
    %p211 = scmp.eq.s32.totalorder %s28, 0
    %p212 = por %p210, %p211
    %p213 = scmp.ne.s32.totalorder %s202, %s205
    %p214 = scmp.eq.s32.totalorder %s33, 31
    %p215 = por %p213, %p214
    %p216 = scmp.ne.s32.totalorder %s205, %s206
    %p217 = scmp.eq.s32.totalorder %s33, 0
    %p218 = por %p216, %p217
    %p219 = scmp.ne.s32.totalorder %s205, %s206
    %p220 = scmp.eq.s32.totalorder %s34, 31
    %p221 = por %p219, %p220
    %p223 = scmp.ne.s32.totalorder %s206, %s222
    %p224 = scmp.eq.s32.totalorder %s34, 0
    %p225 = por %p223, %p224
    %s226 = sadd.s32 %s36, 12
    %s227 = sadd.s32 %s43, 12
    %s228 = ssub.s32 %s35, %s47
    %s229 = ssub.s32 %s226, %s227
    %s230 = sor.u32 %s228, %s229
    %p231 = scmp.eq.s32.totalorder %s230, 0
    %s233 = sadd.s32 %s232, 1
    %s234 = scalar_select %p231, %s232, %s233
    %p237 = pneg %p231
    %p238 = scmp.eq.s32.totalorder %s28, 31
    %p239 = por %p237, %p238
    %p240 = scmp.ne.s32.totalorder %s232, %s235
    %p241 = scmp.eq.s32.totalorder %s28, 0
    %p242 = por %p240, %p241
    %p243 = scmp.ne.s32.totalorder %s232, %s235
    %p244 = scmp.eq.s32.totalorder %s33, 31
    %p245 = por %p243, %p244
    %p246 = scmp.ne.s32.totalorder %s235, %s236
    %p247 = scmp.eq.s32.totalorder %s33, 0
    %p248 = por %p246, %p247
    %p249 = scmp.ne.s32.totalorder %s235, %s236
    %p250 = scmp.eq.s32.totalorder %s34, 31
    %p251 = por %p249, %p250
    %p253 = scmp.ne.s32.totalorder %s236, %s252
    %p254 = scmp.eq.s32.totalorder %s34, 0
    %p255 = por %p253, %p254
    %s256 = ssub.s32 %s35, %s47
    %p257 = scmp.eq.s32.totalorder %s256, 0
    %s259 = sadd.s32 %s258, 1
    %s260 = scalar_select %p257, %s258, %s259
    %p263 = pneg %p257
    %p264 = scmp.eq.s32.totalorder %s28, 31
    %p265 = por %p263, %p264
    %p266 = scmp.ne.s32.totalorder %s258, %s261
    %p267 = scmp.eq.s32.totalorder %s28, 0
    %p268 = por %p266, %p267
    %p269 = scmp.ne.s32.totalorder %s258, %s261
    %p270 = scmp.eq.s32.totalorder %s33, 31
    %p271 = por %p269, %p270
    %p272 = scmp.ne.s32.totalorder %s261, %s262
    %p273 = scmp.eq.s32.totalorder %s33, 0
    %p274 = por %p272, %p273
    %p275 = scmp.ne.s32.totalorder %s261, %s262
    %p276 = scmp.eq.s32.totalorder %s34, 31
    %p277 = por %p275, %p276
    %p279 = scmp.ne.s32.totalorder %s262, %s278
    %p280 = scmp.eq.s32.totalorder %s34, 0
    %p281 = por %p279, %p280
    %s283 = sadd.s32 %s282, 1
    %p286 = scmp.eq.s32.totalorder %s28, 31
    %p287 = scmp.ne.s32.totalorder %s282, %s284
    %p288 = scmp.eq.s32.totalorder %s28, 0
    %p289 = por %p287, %p288
    %p290 = scmp.ne.s32.totalorder %s282, %s284
    %p291 = scmp.eq.s32.totalorder %s33, 31
    %p292 = por %p290, %p291
    %p293 = scmp.ne.s32.totalorder %s284, %s285
    %p294 = scmp.eq.s32.totalorder %s33, 0
    %p295 = por %p293, %p294
    %p296 = scmp.ne.s32.totalorder %s284, %s285
    %p297 = scmp.eq.s32.totalorder %s34, 31
    %p298 = por %p296, %p297
    %p300 = scmp.ne.s32.totalorder %s285, %s299
    %p301 = scmp.eq.s32.totalorder %s34, 0
    %p302 = por %p300, %p301
    %s304 = sadd.s32 %s303, 1
    %p307 = scmp.eq.s32.totalorder %s28, 31
    %p308 = scmp.ne.s32.totalorder %s303, %s305
    %p309 = scmp.eq.s32.totalorder %s28, 0
    %p310 = por %p308, %p309
    %p311 = scmp.ne.s32.totalorder %s303, %s305
    %p312 = scmp.eq.s32.totalorder %s33, 31
    %p313 = por %p311, %p312
    %p314 = scmp.ne.s32.totalorder %s305, %s306
    %p315 = scmp.eq.s32.totalorder %s33, 0
    %p316 = por %p314, %p315
    %p317 = scmp.ne.s32.totalorder %s305, %s306
    %p318 = scmp.eq.s32.totalorder %s34, 31
    %p319 = por %p317, %p318
    %p321 = scmp.ne.s32.totalorder %s306, %s320
    %p322 = scmp.eq.s32.totalorder %s34, 0
    %p323 = por %p321, %p322
    %s325 = sadd.s32 %s324, 1
    %p328 = scmp.eq.s32.totalorder %s28, 31
    %p329 = scmp.ne.s32.totalorder %s324, %s326
    %p330 = scmp.eq.s32.totalorder %s28, 0
    %p331 = por %p329, %p330
    %p332 = scmp.ne.s32.totalorder %s324, %s326
    %p333 = scmp.eq.s32.totalorder %s33, 31
    %p334 = por %p332, %p333
    %p335 = scmp.ne.s32.totalorder %s326, %s327
    %p336 = scmp.eq.s32.totalorder %s33, 0
    %p337 = por %p335, %p336
    %p338 = scmp.ne.s32.totalorder %s326, %s327
    %p339 = scmp.eq.s32.totalorder %s34, 31
    %p340 = por %p338, %p339
    %p342 = scmp.ne.s32.totalorder %s327, %s341
    %p343 = scmp.eq.s32.totalorder %s34, 0
    %p344 = por %p342, %p343
    %s346 = sadd.s32 %s345, 1
    %p349 = scmp.eq.s32.totalorder %s28, 31
    %p350 = scmp.ne.s32.totalorder %s345, %s347
    %p351 = scmp.eq.s32.totalorder %s28, 0
    %p352 = por %p350, %p351
    %p353 = scmp.ne.s32.totalorder %s345, %s347
    %p354 = scmp.eq.s32.totalorder %s33, 31
    %p355 = por %p353, %p354
    %p356 = scmp.ne.s32.totalorder %s347, %s348
    %p357 = scmp.eq.s32.totalorder %s33, 0
    %p358 = por %p356, %p357
    %p359 = scmp.ne.s32.totalorder %s347, %s348
    %p360 = scmp.eq.s32.totalorder %s34, 31
    %p361 = por %p359, %p360
    %p363 = scmp.ne.s32.totalorder %s348, %s362
    %p364 = scmp.eq.s32.totalorder %s34, 0
    %p365 = por %p363, %p364
    %s367 = sadd.s32 %s366, 1
    %p370 = scmp.eq.s32.totalorder %s28, 31
    %p371 = scmp.ne.s32.totalorder %s366, %s368
    %p372 = scmp.eq.s32.totalorder %s28, 0
    %p373 = por %p371, %p372
    %p374 = scmp.ne.s32.totalorder %s366, %s368
    %p375 = scmp.eq.s32.totalorder %s33, 31
    %p376 = por %p374, %p375
    %p377 = scmp.ne.s32.totalorder %s368, %s369
    %p378 = scmp.eq.s32.totalorder %s33, 0
    %p379 = por %p377, %p378
    %p380 = scmp.ne.s32.totalorder %s368, %s369
    %p381 = scmp.eq.s32.totalorder %s34, 31
    %p382 = por %p380, %p381
    %p384 = scmp.ne.s32.totalorder %s369, %s383
    %p385 = scmp.eq.s32.totalorder %s34, 0
    %p386 = por %p384, %p385
    %s388 = sadd.s32 %s387, 1
    %p391 = scmp.eq.s32.totalorder %s28, 31
    %p392 = scmp.ne.s32.totalorder %s387, %s389
    %p393 = scmp.eq.s32.totalorder %s28, 0
    %p394 = por %p392, %p393
    %p395 = scmp.ne.s32.totalorder %s387, %s389
    %p396 = scmp.eq.s32.totalorder %s33, 31
    %p397 = por %p395, %p396
    %p398 = scmp.ne.s32.totalorder %s389, %s390
    %p399 = scmp.eq.s32.totalorder %s33, 0
    %p400 = por %p398, %p399
    %p401 = scmp.ne.s32.totalorder %s389, %s390
    %p402 = scmp.eq.s32.totalorder %s34, 31
    %p403 = por %p401, %p402
    %p405 = scmp.ne.s32.totalorder %s390, %s404
    %p406 = scmp.eq.s32.totalorder %s34, 0
    %p407 = por %p405, %p406
    %s409 = sadd.s32 %s408, 1
    %p412 = scmp.eq.s32.totalorder %s28, 31
    %p413 = scmp.ne.s32.totalorder %s408, %s410
    %p414 = scmp.eq.s32.totalorder %s28, 0
    %p415 = por %p413, %p414
    %p416 = scmp.ne.s32.totalorder %s408, %s410
    %p417 = scmp.eq.s32.totalorder %s33, 31
    %p418 = por %p416, %p417
    %p419 = scmp.ne.s32.totalorder %s410, %s411
    %p420 = scmp.eq.s32.totalorder %s33, 0
    %p421 = por %p419, %p420
    %p422 = scmp.ne.s32.totalorder %s410, %s411
    %p423 = scmp.eq.s32.totalorder %s34, 31
    %p424 = por %p422, %p423
    %p426 = scmp.ne.s32.totalorder %s411, %s425
    %p427 = scmp.eq.s32.totalorder %s34, 0
    %p428 = por %p426, %p427
    %s430 = sadd.s32 %s429, 1
    %p433 = scmp.eq.s32.totalorder %s28, 31
    %p434 = scmp.ne.s32.totalorder %s429, %s431
    %p435 = scmp.eq.s32.totalorder %s28, 0
    %p436 = por %p434, %p435
    %p437 = scmp.ne.s32.totalorder %s429, %s431
    %p438 = scmp.eq.s32.totalorder %s33, 31
    %p439 = por %p437, %p438
    %p440 = scmp.ne.s32.totalorder %s431, %s432
    %p441 = scmp.eq.s32.totalorder %s33, 0
    %p442 = por %p440, %p441
    %p443 = scmp.ne.s32.totalorder %s431, %s432
    %p444 = scmp.eq.s32.totalorder %s34, 31
    %p445 = por %p443, %p444
    %p447 = scmp.ne.s32.totalorder %s432, %s446
    %p448 = scmp.eq.s32.totalorder %s34, 0
    %p449 = por %p447, %p448
    %s450 = ssub.s32 %s35, %s47
    %s451 = ssub.s32 %s36, %s43
    %s452 = sor.u32 %s450, %s451
    %p453 = scmp.eq.s32.totalorder %s452, 0
    %s455 = sadd.s32 %s454, 1
    %s456 = scalar_select %p453, %s454, %s455
    %p459 = pneg %p453
    %p460 = scmp.eq.s32.totalorder %s28, 31
    %p461 = por %p459, %p460
    %p462 = scmp.ne.s32.totalorder %s454, %s457
    %p463 = scmp.eq.s32.totalorder %s28, 0
    %p464 = por %p462, %p463
    %p465 = scmp.ne.s32.totalorder %s454, %s457
    %p466 = scmp.eq.s32.totalorder %s33, 31
    %p467 = por %p465, %p466
    %p468 = scmp.ne.s32.totalorder %s457, %s458
    %p469 = scmp.eq.s32.totalorder %s33, 0
    %p470 = por %p468, %p469
    %p471 = scmp.ne.s32.totalorder %s457, %s458
    %p472 = scmp.eq.s32.totalorder %s34, 31
    %p473 = por %p471, %p472
    %p475 = scmp.ne.s32.totalorder %s458, %s474
    %p476 = scmp.eq.s32.totalorder %s34, 0
    %p477 = por %p475, %p476
    %s478 = ssub.s32 %s35, %s47
    %s479 = ssub.s32 %s36, %s43
    %s480 = sor.u32 %s478, %s479
    %p481 = scmp.eq.s32.totalorder %s480, 0
    %s483 = sadd.s32 %s482, 1
    %s484 = scalar_select %p481, %s482, %s483
    %p487 = pneg %p481
    %p488 = scmp.eq.s32.totalorder %s28, 31
    %p489 = por %p487, %p488
    %p490 = scmp.ne.s32.totalorder %s482, %s485
    %p491 = scmp.eq.s32.totalorder %s28, 0
    %p492 = por %p490, %p491
    %p493 = scmp.ne.s32.totalorder %s482, %s485
    %p494 = scmp.eq.s32.totalorder %s33, 31
    %p495 = por %p493, %p494
    %p496 = scmp.ne.s32.totalorder %s485, %s486
    %p497 = scmp.eq.s32.totalorder %s33, 0
    %p498 = por %p496, %p497
    %p499 = scmp.ne.s32.totalorder %s485, %s486
    %p500 = scmp.eq.s32.totalorder %s34, 31
    %p501 = por %p499, %p500
    %p503 = scmp.ne.s32.totalorder %s486, %s502
    %p504 = scmp.eq.s32.totalorder %s34, 0
    %p505 = por %p503, %p504
    %s506 = ssub.s32 %s35, %s47
    %s507 = ssub.s32 %s36, %s43
    %s508 = sor.u32 %s506, %s507
    %p509 = scmp.eq.s32.totalorder %s508, 0
    %s511 = sadd.s32 %s510, 1
    %s512 = scalar_select %p509, %s510, %s511
    %p515 = pneg %p509
    %p516 = scmp.eq.s32.totalorder %s28, 31
    %p517 = por %p515, %p516
    %p518 = scmp.ne.s32.totalorder %s510, %s513
    %p519 = scmp.eq.s32.totalorder %s28, 0
    %p520 = por %p518, %p519
    %p521 = scmp.ne.s32.totalorder %s510, %s513
    %p522 = scmp.eq.s32.totalorder %s33, 31
    %p523 = por %p521, %p522
    %p524 = scmp.ne.s32.totalorder %s513, %s514
    %p525 = scmp.eq.s32.totalorder %s33, 0
    %p526 = por %p524, %p525
    %p527 = scmp.ne.s32.totalorder %s513, %s514
    %p528 = scmp.eq.s32.totalorder %s34, 31
    %p529 = por %p527, %p528
    %p531 = scmp.ne.s32.totalorder %s514, %s530
    %p532 = scmp.eq.s32.totalorder %s34, 0
    %p533 = por %p531, %p532
    %s534 = ssub.s32 %s35, %s47
    %s535 = ssub.s32 %s36, %s43
    %s536 = sor.u32 %s534, %s535
    %p537 = scmp.eq.s32.totalorder %s536, 0
    %s539 = sadd.s32 %s538, 1
    %s540 = scalar_select %p537, %s538, %s539
    %p543 = pneg %p537
    %p544 = scmp.eq.s32.totalorder %s28, 31
    %p545 = por %p543, %p544
    %p546 = scmp.ne.s32.totalorder %s538, %s541
    %p547 = scmp.eq.s32.totalorder %s28, 0
    %p548 = por %p546, %p547
    %p549 = scmp.ne.s32.totalorder %s538, %s541
    %p550 = scmp.eq.s32.totalorder %s33, 31
    %p551 = por %p549, %p550
    %p552 = scmp.ne.s32.totalorder %s541, %s542
    %p553 = scmp.eq.s32.totalorder %s33, 0
    %p554 = por %p552, %p553
    %p555 = scmp.ne.s32.totalorder %s541, %s542
    %p556 = scmp.eq.s32.totalorder %s34, 31
    %p557 = por %p555, %p556
    %p559 = scmp.ne.s32.totalorder %s542, %s558
    %p560 = scmp.eq.s32.totalorder %s34, 0
    %p561 = por %p559, %p560
    %s562 = ssub.s32 %s35, %s47
    %s563 = ssub.s32 %s36, %s43
    %s564 = sor.u32 %s562, %s563
    %p565 = scmp.eq.s32.totalorder %s564, 0
    %s567 = sadd.s32 %s566, 1
    %s568 = scalar_select %p565, %s566, %s567
    %p571 = pneg %p565
    %p572 = scmp.eq.s32.totalorder %s28, 31
    %p573 = por %p571, %p572
    %p574 = scmp.ne.s32.totalorder %s566, %s569
    %p575 = scmp.eq.s32.totalorder %s28, 0
    %p576 = por %p574, %p575
    %p577 = scmp.ne.s32.totalorder %s566, %s569
    %p578 = scmp.eq.s32.totalorder %s33, 31
    %p579 = por %p577, %p578
    %p580 = scmp.ne.s32.totalorder %s569, %s570
    %p581 = scmp.eq.s32.totalorder %s33, 0
    %p582 = por %p580, %p581
    %p583 = scmp.ne.s32.totalorder %s569, %s570
    %p584 = scmp.eq.s32.totalorder %s34, 31
    %p585 = por %p583, %p584
    %p587 = scmp.ne.s32.totalorder %s570, %s586
    %p588 = scmp.eq.s32.totalorder %s34, 0
    %p589 = por %p587, %p588
    %s590 = ssub.s32 %s35, %s47
    %s591 = ssub.s32 %s36, %s43
    %s592 = sor.u32 %s590, %s591
    %p593 = scmp.eq.s32.totalorder %s592, 0
    %s595 = sadd.s32 %s594, 1
    %s596 = scalar_select %p593, %s594, %s595
    %p599 = pneg %p593
    %p600 = scmp.eq.s32.totalorder %s28, 31
    %p601 = por %p599, %p600
    %p602 = scmp.ne.s32.totalorder %s594, %s597
    %p603 = scmp.eq.s32.totalorder %s28, 0
    %p604 = por %p602, %p603
    %p605 = scmp.ne.s32.totalorder %s594, %s597
    %p606 = scmp.eq.s32.totalorder %s33, 31
    %p607 = por %p605, %p606
    %p608 = scmp.ne.s32.totalorder %s597, %s598
    %p609 = scmp.eq.s32.totalorder %s33, 0
    %p610 = por %p608, %p609
    %p611 = scmp.ne.s32.totalorder %s597, %s598
    %p612 = scmp.eq.s32.totalorder %s34, 31
    %p613 = por %p611, %p612
    %p615 = scmp.ne.s32.totalorder %s598, %s614
    %p616 = scmp.eq.s32.totalorder %s34, 0
    %p617 = por %p615, %p616
    %p618 = scmp.le.s32.totalorder 1, %s28
    %p619 = scmp.lt.s32.totalorder %s28, 33
    %p620 = pnand %p618, %p619
    %p621 = pneg %p620
    // Predicated region
    $region9: #{aspp_forward.1} parent=5 // pred_check
      _
    $region10: #{aspp_forward.1} parent=5 // pred_check_branch
      %623 = sbr.rel (%p620) target = $region12
    $region11: #{aspp_forward.1} parent=5 // pred_region
      %s624 = ssub.s32 %s28, 1
      // Predicated region
      $region13: #{aspp_forward.1} parent=11 // pred_check
        %p625 = pneg %p295
      $region14: #{aspp_forward.1} parent=11 // pred_check_branch
        %627 = sbr.rel (%p625) target = $region16
      $region15: #{aspp_forward.1} parent=11 // pred_region
        _
      $region16: #{aspp_forward.1} parent=11 // pred_fallthru
        _
      // Predicated region
      $region17: #{aspp_forward.1} parent=11 // pred_check
        %p628 = pneg %p316
      $region18: #{aspp_forward.1} parent=11 // pred_check_branch
        %630 = sbr.rel (%p628) target = $region20
      $region19: #{aspp_forward.1} parent=11 // pred_region
        _
      $region20: #{aspp_forward.1} parent=11 // pred_fallthru
        _
      // Predicated region
      $region21: #{aspp_forward.1} parent=11 // pred_check
        %p631 = pneg %p337
      $region22: #{aspp_forward.1} parent=11 // pred_check_branch
        %633 = sbr.rel (%p631) target = $region24
      $region23: #{aspp_forward.1} parent=11 // pred_region
        _
      $region24: #{aspp_forward.1} parent=11 // pred_fallthru
        _
      // Predicated region
      $region25: #{aspp_forward.1} parent=11 // pred_check
        %p634 = pneg %p358
      $region26: #{aspp_forward.1} parent=11 // pred_check_branch
        %636 = sbr.rel (%p634) target = $region28
      $region27: #{aspp_forward.1} parent=11 // pred_region
        _
      $region28: #{aspp_forward.1} parent=11 // pred_fallthru
        _
      // Predicated region
      $region29: #{aspp_forward.1} parent=11 // pred_check
        %p637 = pneg %p379
      $region30: #{aspp_forward.1} parent=11 // pred_check_branch
        %639 = sbr.rel (%p637) target = $region32
      $region31: #{aspp_forward.1} parent=11 // pred_region
        _
      $region32: #{aspp_forward.1} parent=11 // pred_fallthru
        _
      // Predicated region
      $region33: #{aspp_forward.1} parent=11 // pred_check
        %p640 = pneg %p400
      $region34: #{aspp_forward.1} parent=11 // pred_check_branch
        %642 = sbr.rel (%p640) target = $region36
      $region35: #{aspp_forward.1} parent=11 // pred_region
        _
      $region36: #{aspp_forward.1} parent=11 // pred_fallthru
        _
      // Predicated region
      $region37: #{aspp_forward.1} parent=11 // pred_check
        %p643 = pneg %p421
      $region38: #{aspp_forward.1} parent=11 // pred_check_branch
        %645 = sbr.rel (%p643) target = $region40
      $region39: #{aspp_forward.1} parent=11 // pred_region
        _
      $region40: #{aspp_forward.1} parent=11 // pred_fallthru
        _
      // Predicated region
      $region41: #{aspp_forward.1} parent=11 // pred_check
        %p646 = pneg %p442
      $region42: #{aspp_forward.1} parent=11 // pred_check_branch
        %648 = sbr.rel (%p646) target = $region44
      $region43: #{aspp_forward.1} parent=11 // pred_region
        _
      $region44: #{aspp_forward.1} parent=11 // pred_fallthru
        _
    $region12: #{aspp_forward.1} parent=5 // pred_fallthru
      _
    %p649 = scmp.lt.s32.totalorder %s28, 32
    // Predicated region
    $region45: #{aspp_forward.1} parent=5 // pred_check
      %p650 = pneg %p649
    $region46: #{aspp_forward.1} parent=5 // pred_check_branch
      %652 = sbr.rel (%p650) target = $region48
    $region47: #{aspp_forward.1} parent=5 // pred_region
      // Predicated region
      $region49: #{aspp_forward.1} parent=47 // pred_check
        %p653 = pneg %p62
      $region50: #{aspp_forward.1} parent=47 // pred_check_branch
        %655 = sbr.rel (%p653) target = $region52
      $region51: #{aspp_forward.1} parent=47 // pred_region
        %p656 = scmp.lt.s32.totalorder %s35, 1
        %s657 = scalar_select %p656, %s35, 1
        %p658 = scmp.lt.s32.totalorder %s36, 27
        %s659 = scalar_select %p658, %s36, 27
        %s660 = smul.addr %s659, 4
        %s661 = smul.addr %s657, 112
        %s662 = sadd.s32 %s660, %s661
        %s663 = smul.addr %s662, 4
        %s664 = scalar_lea.vmem %s0, %s663
      $region52: #{aspp_forward.1} parent=47 // pred_fallthru
        _
      // Predicated region
      $region53: #{aspp_forward.1} parent=47 // pred_check
        %p665 = pneg %p92
      $region54: #{aspp_forward.1} parent=47 // pred_check_branch
        %667 = sbr.rel (%p665) target = $region56
      $region55: #{aspp_forward.1} parent=47 // pred_region
        %s668 = sadd.s32 %s36, 2
        %p669 = scmp.lt.s32.totalorder %s35, 1
        %s670 = scalar_select %p669, %s35, 1
        %p671 = scmp.lt.s32.totalorder %s668, 27
        %s672 = scalar_select %p671, %s668, 27
        %s673 = smul.addr %s672, 4
        %s674 = smul.addr %s670, 112
        %s675 = sadd.s32 %s673, %s674
        %s676 = smul.addr %s675, 4
        %s677 = scalar_lea.vmem %s1, %s676
        %s678 = sadd.s32 %s36, 2
      $region56: #{aspp_forward.1} parent=47 // pred_fallthru
        _
      // Predicated region
      $region57: #{aspp_forward.1} parent=47 // pred_check
        %p679 = pneg %p122
      $region58: #{aspp_forward.1} parent=47 // pred_check_branch
        %681 = sbr.rel (%p679) target = $region60
      $region59: #{aspp_forward.1} parent=47 // pred_region
        %s682 = sadd.s32 %s36, 4
        %p683 = scmp.lt.s32.totalorder %s35, 1
        %s684 = scalar_select %p683, %s35, 1
        %p685 = scmp.lt.s32.totalorder %s682, 27
        %s686 = scalar_select %p685, %s682, 27
        %s687 = smul.addr %s686, 4
        %s688 = smul.addr %s684, 112
        %s689 = sadd.s32 %s687, %s688
        %s690 = smul.addr %s689, 4
        %s691 = scalar_lea.vmem %s2, %s690
        %s692 = sadd.s32 %s36, 4
      $region60: #{aspp_forward.1} parent=47 // pred_fallthru
        _
      // Predicated region
      $region61: #{aspp_forward.1} parent=47 // pred_check
        %p693 = pneg %p152
      $region62: #{aspp_forward.1} parent=47 // pred_check_branch
        %695 = sbr.rel (%p693) target = $region64
      $region63: #{aspp_forward.1} parent=47 // pred_region
        %s696 = sadd.s32 %s36, 6
        %p697 = scmp.lt.s32.totalorder %s35, 1
        %s698 = scalar_select %p697, %s35, 1
        %p699 = scmp.lt.s32.totalorder %s696, 27
        %s700 = scalar_select %p699, %s696, 27
        %s701 = smul.addr %s700, 4
        %s702 = smul.addr %s698, 112
        %s703 = sadd.s32 %s701, %s702
        %s704 = smul.addr %s703, 4
        %s705 = scalar_lea.vmem %s3, %s704
        %s706 = sadd.s32 %s36, 6
      $region64: #{aspp_forward.1} parent=47 // pred_fallthru
        _
      // Predicated region
      $region65: #{aspp_forward.1} parent=47 // pred_check
        %p707 = pneg %p182
      $region66: #{aspp_forward.1} parent=47 // pred_check_branch
        %709 = sbr.rel (%p707) target = $region68
      $region67: #{aspp_forward.1} parent=47 // pred_region
        %s710 = sadd.s32 %s36, 8
        %p711 = scmp.lt.s32.totalorder %s35, 1
        %s712 = scalar_select %p711, %s35, 1
        %p713 = scmp.lt.s32.totalorder %s710, 27
        %s714 = scalar_select %p713, %s710, 27
        %s715 = smul.addr %s714, 4
        %s716 = smul.addr %s712, 112
        %s717 = sadd.s32 %s715, %s716
        %s718 = smul.addr %s717, 4
        %s719 = scalar_lea.vmem %s4, %s718
        %s720 = sadd.s32 %s36, 8
      $region68: #{aspp_forward.1} parent=47 // pred_fallthru
        _
      // Predicated region
      $region69: #{aspp_forward.1} parent=47 // pred_check
        %p721 = pneg %p212
      $region70: #{aspp_forward.1} parent=47 // pred_check_branch
        %723 = sbr.rel (%p721) target = $region72
      $region71: #{aspp_forward.1} parent=47 // pred_region
        %s724 = sadd.s32 %s36, 10
        %p725 = scmp.lt.s32.totalorder %s35, 1
        %s726 = scalar_select %p725, %s35, 1
        %p727 = scmp.lt.s32.totalorder %s724, 27
        %s728 = scalar_select %p727, %s724, 27
        %s729 = smul.addr %s728, 4
        %s730 = smul.addr %s726, 112
        %s731 = sadd.s32 %s729, %s730
        %s732 = smul.addr %s731, 4
        %s733 = scalar_lea.vmem %s5, %s732
        %s734 = sadd.s32 %s36, 10
      $region72: #{aspp_forward.1} parent=47 // pred_fallthru
        _
      // Predicated region
      $region73: #{aspp_forward.1} parent=47 // pred_check
        %p735 = pneg %p242
      $region74: #{aspp_forward.1} parent=47 // pred_check_branch
        %737 = sbr.rel (%p735) target = $region76
      $region75: #{aspp_forward.1} parent=47 // pred_region
        %s738 = sadd.s32 %s36, 12
        %p739 = scmp.lt.s32.totalorder %s35, 1
        %s740 = scalar_select %p739, %s35, 1
        %p741 = scmp.lt.s32.totalorder %s738, 27
        %s742 = scalar_select %p741, %s738, 27
        %s743 = smul.addr %s742, 4
        %s744 = smul.addr %s740, 112
        %s745 = sadd.s32 %s743, %s744
        %s746 = smul.addr %s745, 4
        %s747 = scalar_lea.vmem %s6, %s746
        %s748 = sadd.s32 %s36, 12
      $region76: #{aspp_forward.1} parent=47 // pred_fallthru
        _
      // Predicated region
      $region77: #{aspp_forward.1} parent=47 // pred_check
        %p749 = pneg %p268
      $region78: #{aspp_forward.1} parent=47 // pred_check_branch
        %751 = sbr.rel (%p749) target = $region80
      $region79: #{aspp_forward.1} parent=47 // pred_region
        %p752 = scmp.lt.s32.totalorder %s35, 1
        %s753 = scalar_select %p752, %s35, 1
        %s754 = scalar_lea.vmem %s7, %s753
      $region80: #{aspp_forward.1} parent=47 // pred_fallthru
        _
    $region48: #{aspp_forward.1} parent=5 // pred_fallthru
      _
    %p755 = scmp.le.s32.totalorder 1, %s28
    %p756 = scmp.lt.s32.totalorder %s28, 33
    %p757 = pnand %p755, %p756
    %p758 = pneg %p757
    // Predicated region
    $region81: #{aspp_forward.1} parent=5 // pred_check
      _
    $region82: #{aspp_forward.1} parent=5 // pred_check_branch
      %760 = sbr.rel (%p757) target = $region84
    $region83: #{aspp_forward.1} parent=5 // pred_region
      %s761 = ssub.s32 %s28, 1
      %p762 = scmp.lt.s32.totalorder %s37, 1
      %s763 = scalar_select %p762, %s37, 1
      %p764 = scmp.lt.s32.totalorder %s38, 27
      %s765 = scalar_select %p764, %s38, 27
      %s766 = smul.addr %s765, 4
      %s767 = smul.addr %s763, 112
      %s768 = sadd.s32 %s766, %s767
      %s769 = smul.addr %s768, 4
      %s770 = scalar_lea.vmem %s0, %s769
      %p771 = pneg %p68
      %p772 = pneg %p65
      %s773 = sadd.s32 %s38, 2
      %p774 = scmp.lt.s32.totalorder %s37, 1
      %s775 = scalar_select %p774, %s37, 1
      %p776 = scmp.lt.s32.totalorder %s773, 27
      %s777 = scalar_select %p776, %s773, 27
      %s778 = smul.addr %s777, 4
      %s779 = smul.addr %s775, 112
      %s780 = sadd.s32 %s778, %s779
      %s781 = smul.addr %s780, 4
      %s782 = scalar_lea.vmem %s1, %s781
      %p783 = pneg %p98
      %p784 = pneg %p95
      %s785 = sadd.s32 %s38, 4
      %p786 = scmp.lt.s32.totalorder %s37, 1
      %s787 = scalar_select %p786, %s37, 1
      %p788 = scmp.lt.s32.totalorder %s785, 27
      %s789 = scalar_select %p788, %s785, 27
      %s790 = smul.addr %s789, 4
      %s791 = smul.addr %s787, 112
      %s792 = sadd.s32 %s790, %s791
      %s793 = smul.addr %s792, 4
      %s794 = scalar_lea.vmem %s2, %s793
      %p795 = pneg %p128
      %p796 = pneg %p125
      %s797 = sadd.s32 %s38, 6
      %p798 = scmp.lt.s32.totalorder %s37, 1
      %s799 = scalar_select %p798, %s37, 1
      %p800 = scmp.lt.s32.totalorder %s797, 27
      %s801 = scalar_select %p800, %s797, 27
      %s802 = smul.addr %s801, 4
      %s803 = smul.addr %s799, 112
      %s804 = sadd.s32 %s802, %s803
      %s805 = smul.addr %s804, 4
      %s806 = scalar_lea.vmem %s3, %s805
      %p807 = pneg %p158
      %p808 = pneg %p155
      %s809 = sadd.s32 %s38, 8
      %p810 = scmp.lt.s32.totalorder %s37, 1
      %s811 = scalar_select %p810, %s37, 1
      %p812 = scmp.lt.s32.totalorder %s809, 27
      %s813 = scalar_select %p812, %s809, 27
      %s814 = smul.addr %s813, 4
      %s815 = smul.addr %s811, 112
      %s816 = sadd.s32 %s814, %s815
      %s817 = smul.addr %s816, 4
      %s818 = scalar_lea.vmem %s4, %s817
      %p819 = pneg %p188
      %p820 = pneg %p185
      %s821 = sadd.s32 %s38, 10
      %p822 = scmp.lt.s32.totalorder %s37, 1
      %s823 = scalar_select %p822, %s37, 1
      %p824 = scmp.lt.s32.totalorder %s821, 27
      %s825 = scalar_select %p824, %s821, 27
      %s826 = smul.addr %s825, 4
      %s827 = smul.addr %s823, 112
      %s828 = sadd.s32 %s826, %s827
      %s829 = smul.addr %s828, 4
      %s830 = scalar_lea.vmem %s5, %s829
      %p831 = pneg %p218
      %p832 = pneg %p215
      %s833 = sadd.s32 %s38, 12
      %p834 = scmp.lt.s32.totalorder %s37, 1
      %s835 = scalar_select %p834, %s37, 1
      %p836 = scmp.lt.s32.totalorder %s833, 27
      %s837 = scalar_select %p836, %s833, 27
      %s838 = smul.addr %s837, 4
      %s839 = smul.addr %s835, 112
      %s840 = sadd.s32 %s838, %s839
      %s841 = smul.addr %s840, 4
      %s842 = scalar_lea.vmem %s6, %s841
      %p843 = pneg %p248
      %p844 = pneg %p245
      %p845 = scmp.lt.s32.totalorder %s37, 1
      %s846 = scalar_select %p845, %s37, 1
      %s847 = scalar_lea.vmem %s7, %s846
      %p848 = pneg %p274
      %p849 = pneg %p271
      %p850 = pneg %p295
      %p851 = pneg %p292
      %p852 = pneg %p316
      %p853 = pneg %p313
      %p854 = pneg %p337
      %p855 = pneg %p334
      %p856 = pneg %p358
      %p857 = pneg %p355
      %p858 = pneg %p379
      %p859 = pneg %p376
      %p860 = pneg %p400
      %p861 = pneg %p397
      %p862 = pneg %p421
      %p863 = pneg %p418
      %p864 = pneg %p442
      %p865 = pneg %p439
      %p866 = pneg %p470
      %p867 = pneg %p467
      %p868 = scmp.lt.s32.totalorder %s37, 1
      %s869 = scalar_select %p868, %s37, 1
      %p870 = scmp.lt.s32.totalorder %s38, 15
      %s871 = scalar_select %p870, %s38, 15
      %s872 = smul.addr %s871, 2
      %s873 = smul.addr %s869, 32
      %s874 = sadd.s32 %s872, %s873
      %s875 = smul.addr %s874, 8
      %s876 = scalar_lea.vmem %s16, %s875
      %p877 = pneg %p498
      %p878 = pneg %p495
      %p879 = scmp.lt.s32.totalorder %s37, 1
      %s880 = scalar_select %p879, %s37, 1
      %p881 = scmp.lt.s32.totalorder %s38, 15
      %s882 = scalar_select %p881, %s38, 15
      %s883 = smul.addr %s882, 2
      %s884 = smul.addr %s880, 32
      %s885 = sadd.s32 %s883, %s884
      %s886 = smul.addr %s885, 8
      %s887 = scalar_lea.vmem %s17, %s886
      %p888 = pneg %p526
      %p889 = pneg %p523
      %p890 = scmp.lt.s32.totalorder %s37, 1
      %s891 = scalar_select %p890, %s37, 1
      %p892 = scmp.lt.s32.totalorder %s38, 15
      %s893 = scalar_select %p892, %s38, 15
      %s894 = smul.addr %s893, 2
      %s895 = smul.addr %s891, 32
      %s896 = sadd.s32 %s894, %s895
      %s897 = smul.addr %s896, 8
      %s898 = scalar_lea.vmem %s18, %s897
      %p899 = pneg %p554
      %p900 = pneg %p551
      %p901 = scmp.lt.s32.totalorder %s37, 1
      %s902 = scalar_select %p901, %s37, 1
      %p903 = scmp.lt.s32.totalorder %s38, 15
      %s904 = scalar_select %p903, %s38, 15
      %s905 = smul.addr %s904, 2
      %s906 = smul.addr %s902, 32
      %s907 = sadd.s32 %s905, %s906
      %s908 = smul.addr %s907, 8
      %s909 = scalar_lea.vmem %s19, %s908
      %p910 = pneg %p582
      %p911 = pneg %p579
      %p912 = scmp.lt.s32.totalorder %s37, 1
      %s913 = scalar_select %p912, %s37, 1
      %p914 = scmp.lt.s32.totalorder %s38, 15
      %s915 = scalar_select %p914, %s38, 15
      %s916 = smul.addr %s915, 2
      %s917 = smul.addr %s913, 32
      %s918 = sadd.s32 %s916, %s917
      %s919 = smul.addr %s918, 8
      %s920 = scalar_lea.vmem %s20, %s919
      %p921 = pneg %p610
      %p922 = pneg %p607
      %p923 = scmp.lt.s32.totalorder %s37, 1
      %s924 = scalar_select %p923, %s37, 1
      %p925 = scmp.lt.s32.totalorder %s38, 15
      %s926 = scalar_select %p925, %s38, 15
      %s927 = smul.addr %s926, 2
      %s928 = smul.addr %s924, 32
      %s929 = sadd.s32 %s927, %s928
      %s930 = smul.addr %s929, 8
      %s931 = scalar_lea.vmem %s21, %s930
      %p932 = scmp.lt.s32.totalorder %s37, 1
      %s933 = scalar_select %p932, %s37, 1
      %p934 = scmp.lt.s32.totalorder %s38, 27
      %s935 = scalar_select %p934, %s38, 27
      %s936 = smul.addr %s935, 4
      %s937 = smul.addr %s933, 112
      %s938 = sadd.s32 %s936, %s937
      %s939 = smul.addr %s938, 4
      %s940 = scalar_lea.vmem %s0, %s939
      %s941 = sadd.s32 %s38, 2
      %p942 = scmp.lt.s32.totalorder %s37, 1
      %s943 = scalar_select %p942, %s37, 1
      %p944 = scmp.lt.s32.totalorder %s941, 27
      %s945 = scalar_select %p944, %s941, 27
      %s946 = smul.addr %s945, 4
      %s947 = smul.addr %s943, 112
      %s948 = sadd.s32 %s946, %s947
      %s949 = smul.addr %s948, 4
      %s950 = scalar_lea.vmem %s1, %s949
      %s951 = sadd.s32 %s38, 2
      %s952 = sadd.s32 %s38, 4
      %p953 = scmp.lt.s32.totalorder %s37, 1
      %s954 = scalar_select %p953, %s37, 1
      %p955 = scmp.lt.s32.totalorder %s952, 27
      %s956 = scalar_select %p955, %s952, 27
      %s957 = smul.addr %s956, 4
      %s958 = smul.addr %s954, 112
      %s959 = sadd.s32 %s957, %s958
      %s960 = smul.addr %s959, 4
      %s961 = scalar_lea.vmem %s2, %s960
      %s962 = sadd.s32 %s38, 4
      %s963 = sadd.s32 %s38, 6
      %p964 = scmp.lt.s32.totalorder %s37, 1
      %s965 = scalar_select %p964, %s37, 1
      %p966 = scmp.lt.s32.totalorder %s963, 27
      %s967 = scalar_select %p966, %s963, 27
      %s968 = smul.addr %s967, 4
      %s969 = smul.addr %s965, 112
      %s970 = sadd.s32 %s968, %s969
      %s971 = smul.addr %s970, 4
      %s972 = scalar_lea.vmem %s3, %s971
      %s973 = sadd.s32 %s38, 6
      %s974 = sadd.s32 %s38, 8
      %p975 = scmp.lt.s32.totalorder %s37, 1
      %s976 = scalar_select %p975, %s37, 1
      %p977 = scmp.lt.s32.totalorder %s974, 27
      %s978 = scalar_select %p977, %s974, 27
      %s979 = smul.addr %s978, 4
      %s980 = smul.addr %s976, 112
      %s981 = sadd.s32 %s979, %s980
      %s982 = smul.addr %s981, 4
      %s983 = scalar_lea.vmem %s4, %s982
      %s984 = sadd.s32 %s38, 8
      %s985 = sadd.s32 %s38, 10
      %p986 = scmp.lt.s32.totalorder %s37, 1
      %s987 = scalar_select %p986, %s37, 1
      %p988 = scmp.lt.s32.totalorder %s985, 27
      %s989 = scalar_select %p988, %s985, 27
      %s990 = smul.addr %s989, 4
      %s991 = smul.addr %s987, 112
      %s992 = sadd.s32 %s990, %s991
      %s993 = smul.addr %s992, 4
      %s994 = scalar_lea.vmem %s5, %s993
      %s995 = sadd.s32 %s38, 10
      %s996 = sadd.s32 %s38, 12
      %p997 = scmp.lt.s32.totalorder %s37, 1
      %s998 = scalar_select %p997, %s37, 1
      %p999 = scmp.lt.s32.totalorder %s996, 27
      %s1000 = scalar_select %p999, %s996, 27
      %s1001 = smul.addr %s1000, 4
      %s1002 = smul.addr %s998, 112
      %s1003 = sadd.s32 %s1001, %s1002
      %s1004 = smul.addr %s1003, 4
      %s1005 = scalar_lea.vmem %s6, %s1004
      %s1006 = sadd.s32 %s38, 12
      %p1007 = scmp.lt.s32.totalorder %s37, 1
      %s1008 = scalar_select %p1007, %s37, 1
      %s1009 = scalar_lea.vmem %s7, %s1008
      %p1010 = scmp.lt.s32.totalorder %s37, 1
      %s1011 = scalar_select %p1010, %s37, 1
      %p1012 = scmp.lt.s32.totalorder %s38, 15
      %s1013 = scalar_select %p1012, %s38, 15
      %s1014 = smul.addr %s1013, 2
      %s1015 = smul.addr %s1011, 32
      %s1016 = sadd.s32 %s1014, %s1015
      %s1017 = smul.addr %s1016, 8
      %s1018 = scalar_lea.vmem %s16, %s1017
      %p1019 = scmp.lt.s32.totalorder %s37, 1
      %s1020 = scalar_select %p1019, %s37, 1
      %p1021 = scmp.lt.s32.totalorder %s38, 15
      %s1022 = scalar_select %p1021, %s38, 15
      %s1023 = smul.addr %s1022, 2
      %s1024 = smul.addr %s1020, 32
      %s1025 = sadd.s32 %s1023, %s1024
      %s1026 = smul.addr %s1025, 8
      %s1027 = scalar_lea.vmem %s17, %s1026
      %p1028 = scmp.lt.s32.totalorder %s37, 1
      %s1029 = scalar_select %p1028, %s37, 1
      %p1030 = scmp.lt.s32.totalorder %s38, 15
      %s1031 = scalar_select %p1030, %s38, 15
      %s1032 = smul.addr %s1031, 2
      %s1033 = smul.addr %s1029, 32
      %s1034 = sadd.s32 %s1032, %s1033
      %s1035 = smul.addr %s1034, 8
      %s1036 = scalar_lea.vmem %s18, %s1035
      %p1037 = scmp.lt.s32.totalorder %s37, 1
      %s1038 = scalar_select %p1037, %s37, 1
      %p1039 = scmp.lt.s32.totalorder %s38, 15
      %s1040 = scalar_select %p1039, %s38, 15
      %s1041 = smul.addr %s1040, 2
      %s1042 = smul.addr %s1038, 32
      %s1043 = sadd.s32 %s1041, %s1042
      %s1044 = smul.addr %s1043, 8
      %s1045 = scalar_lea.vmem %s19, %s1044
      %p1046 = scmp.lt.s32.totalorder %s37, 1
      %s1047 = scalar_select %p1046, %s37, 1
      %p1048 = scmp.lt.s32.totalorder %s38, 15
      %s1049 = scalar_select %p1048, %s38, 15
      %s1050 = smul.addr %s1049, 2
      %s1051 = smul.addr %s1047, 32
      %s1052 = sadd.s32 %s1050, %s1051
      %s1053 = smul.addr %s1052, 8
      %s1054 = scalar_lea.vmem %s20, %s1053
      %p1055 = scmp.lt.s32.totalorder %s37, 1
      %s1056 = scalar_select %p1055, %s37, 1
      %p1057 = scmp.lt.s32.totalorder %s38, 15
      %s1058 = scalar_select %p1057, %s38, 15
      %s1059 = smul.addr %s1058, 2
      %s1060 = smul.addr %s1056, 32
      %s1061 = sadd.s32 %s1059, %s1060
      %s1062 = smul.addr %s1061, 8
      %s1063 = scalar_lea.vmem %s21, %s1062
      %v1065 = vld [vmem:[%s940] sm:$0xf]
      %v1066 = vld [vmem:[%s940 + $0x4] sm:$0xf]
      %v1067 = vld [vmem:[%s940 + $0x8] sm:$0xf]
      %v1068 = vld [vmem:[%s940 + $0xc] sm:$0x3]
      %v1069 = vld [vmem:[%s950] sm:$0xf]
      %v1070 = vld [vmem:[%s950 + $0x4] sm:$0xf]
      %v1071 = vld [vmem:[%s950 + $0x8] sm:$0xf]
      %v1072 = vld [vmem:[%s950 + $0xc] sm:$0x3]
      %v1073 = vld [vmem:[%s961] sm:$0xf]
      %v1074 = vld [vmem:[%s961 + $0x4] sm:$0xf]
      %v1075 = vld [vmem:[%s961 + $0x8] sm:$0xf]
      %v1076 = vld [vmem:[%s972] sm:$0xf]
      %v1077 = vld [vmem:[%s972 + $0x4] sm:$0xf]
      %v1078 = vld [vmem:[%s972 + $0x8] sm:$0xf]
      %v1079 = vld [vmem:[%s972 + $0xc] sm:$0x3]
      %v1080 = vld [vmem:[%s983] sm:$0xf]
      %v1081 = vld [vmem:[%s983 + $0x4] sm:$0xf]
      %v1082 = vld [vmem:[%s983 + $0x8] sm:$0xf]
      %v1083 = vld [vmem:[%s994] sm:$0xf]
      %v1084 = vld [vmem:[%s994 + $0x4] sm:$0xf]
      %v1085 = vld [vmem:[%s994 + $0x8] sm:$0xf]
      %v1086 = vld [vmem:[%s994 + $0xc] sm:$0x3]
      %v1087 = vld [vmem:[%s1005] sm:$0xf]
      %v1088 = vld [vmem:[%s1005 + $0x4] sm:$0xf]
      %v1089 = vld [vmem:[%s1005 + $0x8] sm:$0xf]
      %v1090 = vld [vmem:[%s1005 + $0xc] sm:$0x3]
      %v1091 = vld [vmem:[%s8] sm:$0xf]
      %v1092 = vld [vmem:[%s8 + $0x4] sm:$0xf]
      %v1093 = vld [vmem:[%s8 + $0x8] sm:$0xf]
      %v1094 = vld [vmem:[%s8 + $0xc] sm:$0xf]
      %v1095 = vld [vmem:[%s14] sm:$0x1]
      %v1097 = vlaneseq
      %v1098 = vshrl.u32 %v1097, 7
      %v1099 = vsub.s32 0, %v1098
      %v1100 = vrot.slane %v1095, %v1099
      %v1105 = vunpack.c.l.b16 %v1076
      %v1106 = vunpack.c.l.b16 %v1077
      %v1107 = vunpack.c.l.b16 %v1078
      %v1108 = vpack.c.b16 %v1106, %v1105
      %v1109 = vpack.c.b16 %v1107, %v1107
      %vm1110 = vcmask 1044480
      %v1111 = vrot.slane %v1108, 3
      %v1112 = vrot.slane %v1109, 3
      %v1113 = vsel %vm1110, %v1111, %v1112
      %v1118 = vunpack.c.l.b16 %v1091
      %v1119 = vunpack.c.l.b16 %v1092
      %v1120 = vunpack.c.l.b16 %v1093
      %v1121 = vunpack.c.l.b16 %v1094
      %v1122 = vpack.c.b16 %v1119, %v1118
      %v1123 = vpack.c.b16 %v1121, %v1120
      %vm1126 = vcmask 261120
      %v1128 = vsel %vm1126, %v1113, 0
      %1130 = vmatprep.subr.bf16.mxu0 0
      %1131 = vmatpush1.bf16.msra.mxu0 0
      %1132 = vmatprep.subr.bf16.mxu0 0
      %1133 = vmatpush1.bf16.msra.mxu0 0
      %1134 = vmatprep.subr.bf16.mxu0 0
      %1135 = vmatpush1.bf16.msra.mxu0 0
      %1136 = vmatprep.subr.bf16.mxu0 0
      %1137 = vmatpush1.bf16.msra.mxu0 0
      %1138 = vmatprep.subr.bf16.mxu0 0
      %1139 = vmatpush1.bf16.msra.mxu0 0
      %1140 = vmatprep.subr.bf16.mxu0 0
      %1141 = vmatpush1.bf16.msra.mxu0 0
      %1142 = vmatprep.subr.bf16.mxu0 0
      %1143 = vmatpush1.bf16.msra.mxu0 %v1123
      %1144 = vmatprep.subr.bf16.mxu0 0
      %1145 = vmatpush1.bf16.msra.mxu0 %v1122
      %1146 = vmatprep.subr.bf16.mxu0 0
      %1147 = vmatpush2.bf16.msra.mxu0 0
      %1148 = vmatprep.subr.bf16.mxu0 0
      %1149 = vmatpush2.bf16.msra.mxu0 0
      %1150 = vmatprep.subr.bf16.mxu0 0
      %1151 = vmatpush2.bf16.msra.mxu0 0
      %1152 = vmatprep.subr.bf16.mxu0 0
      %1153 = vmatpush2.bf16.msra.mxu0 0
      %1154 = vmatprep.subr.bf16.mxu0 0
      %1155 = vmatpush2.bf16.msra.mxu0 0
      %1156 = vmatprep.subr.bf16.mxu0 0
      %1157 = vmatpush2.bf16.msra.mxu0 0
      %1158 = vmatprep.subr.bf16.mxu0 0
      %1159 = vmatpush2.bf16.msra.mxu0 0
      %1160 = vmatprep.subr.bf16.mxu0 0
      %1161 = vmatpush2.bf16.msra.mxu0 0
      %1162 = vmatprep.mubr.bf16.mxu0 0
      %1163 = vmatmul.mubr.bf16.gmra.mxu0 %v1128
      %v1164 = vpop.f32.mrf.mxu0
      %v1165 = vadd.f32 %v1100, %v1164
      %v1166 = vpop.f32.mrf.mxu0
      %v1167 = vpop.f32.mrf.mxu0
      %v1168 = vadd.f32 %v1100, %v1167
      %v1169 = vpop.f32.mrf.mxu0
      %1170 = vdwg.mxu0
      %v1171 = vmax.f32 %v1165, 0.0
      %v1172 = vmax.f32 %v1168, 0.0
      %v1173 = vld [vmem:[%s9] sm:$0xf]
      %v1174 = vld [vmem:[%s9 + $0x4] sm:$0xf]
      %v1175 = vld [vmem:[%s9 + $0x8] sm:$0xf]
      %v1176 = vld [vmem:[%s9 + $0xc] sm:$0xf]
      %s1177 = scalar_lea.vmem %s9, 16
      %v1178 = vld [vmem:[%s1177] sm:$0xf]
      %v1179 = vld [vmem:[%s1177 + $0x4] sm:$0xf]
      %v1180 = vld [vmem:[%s1177 + $0x8] sm:$0xf]
      %v1181 = vld [vmem:[%s1177 + $0xc] sm:$0xf]
      %v1185 = vunpack.c.l.b16 %v1073
      %v1186 = vunpack.c.l.b16 %v1074
      %v1187 = vunpack.c.l.b16 %v1075
      %v1188 = vpack.c.b16 %v1186, %v1185
      %v1189 = vpack.c.b16 %v1187, %v1187
      %v1190 = vrot.slane %v1188, 3
      %v1191 = vrot.slane %v1189, 3
      %v1192 = vsel %vm1110, %v1190, %v1191
      %v1197 = vunpack.c.l.b16 %v1178
      %v1198 = vunpack.c.l.b16 %v1179
      %v1199 = vunpack.c.l.b16 %v1180
      %v1200 = vunpack.c.l.b16 %v1181
      %v1201 = vpack.c.b16 %v1198, %v1197
      %v1202 = vpack.c.b16 %v1200, %v1199
      %v1206 = vsel %vm1126, %v1192, 0
      %1208 = vmatprep.subr.bf16.mxu0 0
      %1209 = vmatpush1.bf16.msra.mxu0 0
      %1210 = vmatprep.subr.bf16.mxu0 0
      %1211 = vmatpush1.bf16.msra.mxu0 0
      %1212 = vmatprep.subr.bf16.mxu0 0
      %1213 = vmatpush1.bf16.msra.mxu0 0
      %1214 = vmatprep.subr.bf16.mxu0 0
      %1215 = vmatpush1.bf16.msra.mxu0 0
      %1216 = vmatprep.subr.bf16.mxu0 0
      %1217 = vmatpush1.bf16.msra.mxu0 0
      %1218 = vmatprep.subr.bf16.mxu0 0
      %1219 = vmatpush1.bf16.msra.mxu0 0
      %1220 = vmatprep.subr.bf16.mxu0 0
      %1221 = vmatpush1.bf16.msra.mxu0 %v1202
      %1222 = vmatprep.subr.bf16.mxu0 0
      %1223 = vmatpush1.bf16.msra.mxu0 %v1201
      %1224 = vmatprep.subr.bf16.mxu0 0
      %1225 = vmatpush2.bf16.msra.mxu0 0
      %1226 = vmatprep.subr.bf16.mxu0 0
      %1227 = vmatpush2.bf16.msra.mxu0 0
      %1228 = vmatprep.subr.bf16.mxu0 0
      %1229 = vmatpush2.bf16.msra.mxu0 0
      %1230 = vmatprep.subr.bf16.mxu0 0
      %1231 = vmatpush2.bf16.msra.mxu0 0
      %1232 = vmatprep.subr.bf16.mxu0 0
      %1233 = vmatpush2.bf16.msra.mxu0 0
      %1234 = vmatprep.subr.bf16.mxu0 0
      %1235 = vmatpush2.bf16.msra.mxu0 0
      %1236 = vmatprep.subr.bf16.mxu0 0
      %1237 = vmatpush2.bf16.msra.mxu0 0
      %1238 = vmatprep.subr.bf16.mxu0 0
      %1239 = vmatpush2.bf16.msra.mxu0 0
      %1240 = vmatprep.mubr.bf16.mxu0 0
      %1241 = vmatmul.mubr.bf16.gmra.mxu0 %v1206
      %v1242 = vpop.f32.mrf.mxu0
      %v1243 = vadd.f32 0.0, %v1242
      %v1244 = vpop.f32.mrf.mxu0
      %v1245 = vpop.f32.mrf.mxu0
      %v1246 = vadd.f32 0.0, %v1245
      %v1247 = vpop.f32.mrf.mxu0
      %1248 = vdwg.mxu0
      %vm1249 = vcmask 1045504
      %v1250 = vrot.slane %v1188, 2
      %v1251 = vrot.slane %v1189, 2
      %v1252 = vsel %vm1249, %v1250, %v1251
      %v1257 = vunpack.c.l.b16 %v1173
      %v1258 = vunpack.c.l.b16 %v1174
      %v1259 = vunpack.c.l.b16 %v1175
      %v1260 = vunpack.c.l.b16 %v1176
      %v1261 = vpack.c.b16 %v1258, %v1257
      %v1262 = vpack.c.b16 %v1260, %v1259
      %v1266 = vsel %vm1126, %v1252, 0
      %1268 = vmatprep.subr.bf16.mxu0 0
      %1269 = vmatpush1.bf16.msra.mxu0 0
      %1270 = vmatprep.subr.bf16.mxu0 0
      %1271 = vmatpush1.bf16.msra.mxu0 0
      %1272 = vmatprep.subr.bf16.mxu0 0
      %1273 = vmatpush1.bf16.msra.mxu0 0
      %1274 = vmatprep.subr.bf16.mxu0 0
      %1275 = vmatpush1.bf16.msra.mxu0 0
      %1276 = vmatprep.subr.bf16.mxu0 0
      %1277 = vmatpush1.bf16.msra.mxu0 0
      %1278 = vmatprep.subr.bf16.mxu0 0
      %1279 = vmatpush1.bf16.msra.mxu0 0
      %1280 = vmatprep.subr.bf16.mxu0 0
      %1281 = vmatpush1.bf16.msra.mxu0 %v1262
      %1282 = vmatprep.subr.bf16.mxu0 0
      %1283 = vmatpush1.bf16.msra.mxu0 %v1261
      %1284 = vmatprep.subr.bf16.mxu0 0
      %1285 = vmatpush2.bf16.msra.mxu0 0
      %1286 = vmatprep.subr.bf16.mxu0 0
      %1287 = vmatpush2.bf16.msra.mxu0 0
      %1288 = vmatprep.subr.bf16.mxu0 0
      %1289 = vmatpush2.bf16.msra.mxu0 0
      %1290 = vmatprep.subr.bf16.mxu0 0
      %1291 = vmatpush2.bf16.msra.mxu0 0
      %1292 = vmatprep.subr.bf16.mxu0 0
      %1293 = vmatpush2.bf16.msra.mxu0 0
      %1294 = vmatprep.subr.bf16.mxu0 0
      %1295 = vmatpush2.bf16.msra.mxu0 0
      %1296 = vmatprep.subr.bf16.mxu0 0
      %1297 = vmatpush2.bf16.msra.mxu0 0
      %1298 = vmatprep.subr.bf16.mxu0 0
      %1299 = vmatpush2.bf16.msra.mxu0 0
      %1300 = vmatprep.mubr.bf16.mxu0 0
      %1301 = vmatmul.mubr.bf16.gmra.mxu0 %v1266
      %v1302 = vpop.f32.mrf.mxu0
      %v1303 = vadd.f32 %v1243, %v1302
      %v1304 = vpop.f32.mrf.mxu0
      %v1305 = vpop.f32.mrf.mxu0
      %v1306 = vadd.f32 %v1246, %v1305
      %v1307 = vpop.f32.mrf.mxu0
      %1308 = vdwg.mxu0
      %s1309 = scalar_lea.vmem %s9, 32
      %v1310 = vld [vmem:[%s1309] sm:$0xf]
      %v1311 = vld [vmem:[%s1309 + $0x4] sm:$0xf]
      %v1312 = vld [vmem:[%s1309 + $0x8] sm:$0xf]
      %v1313 = vld [vmem:[%s1309 + $0xc] sm:$0xf]
      %v1314 = vpack.c.b16 %v1187, %v1186
      %v1319 = vunpack.c.l.b16 %v1310
      %v1320 = vunpack.c.l.b16 %v1311
      %v1321 = vunpack.c.l.b16 %v1312
      %v1322 = vunpack.c.l.b16 %v1313
      %v1323 = vpack.c.b16 %v1320, %v1319
      %v1324 = vpack.c.b16 %v1322, %v1321
      %v1328 = vsel %vm1126, %v1314, 0
      %1330 = vmatprep.subr.bf16.mxu0 0
      %1331 = vmatpush1.bf16.msra.mxu0 0
      %1332 = vmatprep.subr.bf16.mxu0 0
      %1333 = vmatpush1.bf16.msra.mxu0 0
      %1334 = vmatprep.subr.bf16.mxu0 0
      %1335 = vmatpush1.bf16.msra.mxu0 0
      %1336 = vmatprep.subr.bf16.mxu0 0
      %1337 = vmatpush1.bf16.msra.mxu0 0
      %1338 = vmatprep.subr.bf16.mxu0 0
      %1339 = vmatpush1.bf16.msra.mxu0 0
      %1340 = vmatprep.subr.bf16.mxu0 0
      %1341 = vmatpush1.bf16.msra.mxu0 0
      %1342 = vmatprep.subr.bf16.mxu0 0
      %1343 = vmatpush1.bf16.msra.mxu0 %v1324
      %1344 = vmatprep.subr.bf16.mxu0 0
      %1345 = vmatpush1.bf16.msra.mxu0 %v1323
      %1346 = vmatprep.subr.bf16.mxu0 0
      %1347 = vmatpush2.bf16.msra.mxu0 0
      %1348 = vmatprep.subr.bf16.mxu0 0
      %1349 = vmatpush2.bf16.msra.mxu0 0
      %1350 = vmatprep.subr.bf16.mxu0 0
      %1351 = vmatpush2.bf16.msra.mxu0 0
      %1352 = vmatprep.subr.bf16.mxu0 0
      %1353 = vmatpush2.bf16.msra.mxu0 0
      %1354 = vmatprep.subr.bf16.mxu0 0
      %1355 = vmatpush2.bf16.msra.mxu0 0
      %1356 = vmatprep.subr.bf16.mxu0 0
      %1357 = vmatpush2.bf16.msra.mxu0 0
      %1358 = vmatprep.subr.bf16.mxu0 0
      %1359 = vmatpush2.bf16.msra.mxu0 0
      %1360 = vmatprep.subr.bf16.mxu0 0
      %1361 = vmatpush2.bf16.msra.mxu0 0
      %1362 = vmatprep.mubr.bf16.mxu0 0
      %1363 = vmatmul.mubr.bf16.gmra.mxu0 %v1328
      %v1364 = vpop.f32.mrf.mxu0
      %v1365 = vadd.f32 0.0, %v1364
      %v1366 = vpop.f32.mrf.mxu0
      %v1367 = vpop.f32.mrf.mxu0
      %v1368 = vadd.f32 0.0, %v1367
      %v1369 = vpop.f32.mrf.mxu0
      %1370 = vdwg.mxu0
      %v1371 = vadd.f32 %v1303, %v1365
      %v1372 = vadd.f32 %v1306, %v1368
      %s1373 = scalar_lea.vmem %s9, 48
      %v1374 = vld [vmem:[%s1373] sm:$0xf]
      %v1375 = vld [vmem:[%s1373 + $0x4] sm:$0xf]
      %v1376 = vld [vmem:[%s1373 + $0x8] sm:$0xf]
      %v1377 = vld [vmem:[%s1373 + $0xc] sm:$0xf]
      %v1378 = vrot.slane %v1108, 2
      %v1379 = vrot.slane %v1109, 2
      %v1380 = vsel %vm1249, %v1378, %v1379
      %v1385 = vunpack.c.l.b16 %v1374
      %v1386 = vunpack.c.l.b16 %v1375
      %v1387 = vunpack.c.l.b16 %v1376
      %v1388 = vunpack.c.l.b16 %v1377
      %v1389 = vpack.c.b16 %v1386, %v1385
      %v1390 = vpack.c.b16 %v1388, %v1387
      %v1394 = vsel %vm1126, %v1380, 0
      %1396 = vmatprep.subr.bf16.mxu0 0
      %1397 = vmatpush1.bf16.msra.mxu0 0
      %1398 = vmatprep.subr.bf16.mxu0 0
      %1399 = vmatpush1.bf16.msra.mxu0 0
      %1400 = vmatprep.subr.bf16.mxu0 0
      %1401 = vmatpush1.bf16.msra.mxu0 0
      %1402 = vmatprep.subr.bf16.mxu0 0
      %1403 = vmatpush1.bf16.msra.mxu0 0
      %1404 = vmatprep.subr.bf16.mxu0 0
      %1405 = vmatpush1.bf16.msra.mxu0 0
      %1406 = vmatprep.subr.bf16.mxu0 0
      %1407 = vmatpush1.bf16.msra.mxu0 0
      %1408 = vmatprep.subr.bf16.mxu0 0
      %1409 = vmatpush1.bf16.msra.mxu0 %v1390
      %1410 = vmatprep.subr.bf16.mxu0 0
      %1411 = vmatpush1.bf16.msra.mxu0 %v1389
      %1412 = vmatprep.subr.bf16.mxu0 0
      %1413 = vmatpush2.bf16.msra.mxu0 0
      %1414 = vmatprep.subr.bf16.mxu0 0
      %1415 = vmatpush2.bf16.msra.mxu0 0
      %1416 = vmatprep.subr.bf16.mxu0 0
      %1417 = vmatpush2.bf16.msra.mxu0 0
      %1418 = vmatprep.subr.bf16.mxu0 0
      %1419 = vmatpush2.bf16.msra.mxu0 0
      %1420 = vmatprep.subr.bf16.mxu0 0
      %1421 = vmatpush2.bf16.msra.mxu0 0
      %1422 = vmatprep.subr.bf16.mxu0 0
      %1423 = vmatpush2.bf16.msra.mxu0 0
      %1424 = vmatprep.subr.bf16.mxu0 0
      %1425 = vmatpush2.bf16.msra.mxu0 0
      %1426 = vmatprep.subr.bf16.mxu0 0
      %1427 = vmatpush2.bf16.msra.mxu0 0
      %1428 = vmatprep.mubr.bf16.mxu0 0
      %1429 = vmatmul.mubr.bf16.gmra.mxu0 %v1394
      %v1430 = vpop.f32.mrf.mxu0
      %v1431 = vadd.f32 0.0, %v1430
      %v1432 = vpop.f32.mrf.mxu0
      %v1433 = vpop.f32.mrf.mxu0
      %v1434 = vadd.f32 0.0, %v1433
      %v1435 = vpop.f32.mrf.mxu0
      %1436 = vdwg.mxu0
      %v1437 = vadd.f32 %v1371, %v1431
      %v1438 = vadd.f32 %v1372, %v1434
      %s1439 = scalar_lea.vmem %s9, 64
      %v1440 = vld [vmem:[%s1439] sm:$0xf]
      %v1441 = vld [vmem:[%s1439 + $0x4] sm:$0xf]
      %v1442 = vld [vmem:[%s1439 + $0x8] sm:$0xf]
      %v1443 = vld [vmem:[%s1439 + $0xc] sm:$0xf]
      %v1448 = vunpack.c.l.b16 %v1440
      %v1449 = vunpack.c.l.b16 %v1441
      %v1450 = vunpack.c.l.b16 %v1442
      %v1451 = vunpack.c.l.b16 %v1443
      %v1452 = vpack.c.b16 %v1449, %v1448
      %v1453 = vpack.c.b16 %v1451, %v1450
      %1456 = vmatprep.subr.bf16.mxu0 0
      %1457 = vmatpush1.bf16.msra.mxu0 0
      %1458 = vmatprep.subr.bf16.mxu0 0
      %1459 = vmatpush1.bf16.msra.mxu0 0
      %1460 = vmatprep.subr.bf16.mxu0 0
      %1461 = vmatpush1.bf16.msra.mxu0 0
      %1462 = vmatprep.subr.bf16.mxu0 0
      %1463 = vmatpush1.bf16.msra.mxu0 0
      %1464 = vmatprep.subr.bf16.mxu0 0
      %1465 = vmatpush1.bf16.msra.mxu0 0
      %1466 = vmatprep.subr.bf16.mxu0 0
      %1467 = vmatpush1.bf16.msra.mxu0 0
      %1468 = vmatprep.subr.bf16.mxu0 0
      %1469 = vmatpush1.bf16.msra.mxu0 %v1453
      %1470 = vmatprep.subr.bf16.mxu0 0
      %1471 = vmatpush1.bf16.msra.mxu0 %v1452
      %1472 = vmatprep.subr.bf16.mxu0 0
      %1473 = vmatpush2.bf16.msra.mxu0 0
      %1474 = vmatprep.subr.bf16.mxu0 0
      %1475 = vmatpush2.bf16.msra.mxu0 0
      %1476 = vmatprep.subr.bf16.mxu0 0
      %1477 = vmatpush2.bf16.msra.mxu0 0
      %1478 = vmatprep.subr.bf16.mxu0 0
      %1479 = vmatpush2.bf16.msra.mxu0 0
      %1480 = vmatprep.subr.bf16.mxu0 0
      %1481 = vmatpush2.bf16.msra.mxu0 0
      %1482 = vmatprep.subr.bf16.mxu0 0
      %1483 = vmatpush2.bf16.msra.mxu0 0
      %1484 = vmatprep.subr.bf16.mxu0 0
      %1485 = vmatpush2.bf16.msra.mxu0 0
      %1486 = vmatprep.subr.bf16.mxu0 0
      %1487 = vmatpush2.bf16.msra.mxu0 0
      %1488 = vmatprep.mubr.bf16.mxu0 0
      %1489 = vmatmul.mubr.bf16.gmra.mxu0 %v1128
      %v1490 = vpop.f32.mrf.mxu0
      %v1491 = vadd.f32 0.0, %v1490
      %v1492 = vpop.f32.mrf.mxu0
      %v1493 = vpop.f32.mrf.mxu0
      %v1494 = vadd.f32 0.0, %v1493
      %v1495 = vpop.f32.mrf.mxu0
      %1496 = vdwg.mxu0
      %v1497 = vadd.f32 %v1437, %v1491
      %v1498 = vadd.f32 %v1438, %v1494
      %s1499 = scalar_lea.vmem %s9, 80
      %v1500 = vld [vmem:[%s1499] sm:$0xf]
      %v1501 = vld [vmem:[%s1499 + $0x4] sm:$0xf]
      %v1502 = vld [vmem:[%s1499 + $0x8] sm:$0xf]
      %v1503 = vld [vmem:[%s1499 + $0xc] sm:$0xf]
      %v1504 = vpack.c.b16 %v1107, %v1106
      %v1509 = vunpack.c.l.b16 %v1500
      %v1510 = vunpack.c.l.b16 %v1501
      %v1511 = vunpack.c.l.b16 %v1502
      %v1512 = vunpack.c.l.b16 %v1503
      %v1513 = vpack.c.b16 %v1510, %v1509
      %v1514 = vpack.c.b16 %v1512, %v1511
      %v1518 = vsel %vm1126, %v1504, 0
      %1520 = vmatprep.subr.bf16.mxu0 0
      %1521 = vmatpush1.bf16.msra.mxu0 0
      %1522 = vmatprep.subr.bf16.mxu0 0
      %1523 = vmatpush1.bf16.msra.mxu0 0
      %1524 = vmatprep.subr.bf16.mxu0 0
      %1525 = vmatpush1.bf16.msra.mxu0 0
      %1526 = vmatprep.subr.bf16.mxu0 0
      %1527 = vmatpush1.bf16.msra.mxu0 0
      %1528 = vmatprep.subr.bf16.mxu0 0
      %1529 = vmatpush1.bf16.msra.mxu0 0
      %1530 = vmatprep.subr.bf16.mxu0 0
      %1531 = vmatpush1.bf16.msra.mxu0 0
      %1532 = vmatprep.subr.bf16.mxu0 0
      %1533 = vmatpush1.bf16.msra.mxu0 %v1514
      %1534 = vmatprep.subr.bf16.mxu0 0
      %1535 = vmatpush1.bf16.msra.mxu0 %v1513
      %1536 = vmatprep.subr.bf16.mxu0 0
      %1537 = vmatpush2.bf16.msra.mxu0 0
      %1538 = vmatprep.subr.bf16.mxu0 0
      %1539 = vmatpush2.bf16.msra.mxu0 0
      %1540 = vmatprep.subr.bf16.mxu0 0
      %1541 = vmatpush2.bf16.msra.mxu0 0
      %1542 = vmatprep.subr.bf16.mxu0 0
      %1543 = vmatpush2.bf16.msra.mxu0 0
      %1544 = vmatprep.subr.bf16.mxu0 0
      %1545 = vmatpush2.bf16.msra.mxu0 0
      %1546 = vmatprep.subr.bf16.mxu0 0
      %1547 = vmatpush2.bf16.msra.mxu0 0
      %1548 = vmatprep.subr.bf16.mxu0 0
      %1549 = vmatpush2.bf16.msra.mxu0 0
      %1550 = vmatprep.subr.bf16.mxu0 0
      %1551 = vmatpush2.bf16.msra.mxu0 0
      %1552 = vmatprep.mubr.bf16.mxu0 0
      %1553 = vmatmul.mubr.bf16.gmra.mxu0 %v1518
      %v1554 = vpop.f32.mrf.mxu0
      %v1555 = vadd.f32 0.0, %v1554
      %v1556 = vpop.f32.mrf.mxu0
      %v1557 = vpop.f32.mrf.mxu0
      %v1558 = vadd.f32 0.0, %v1557
      %v1559 = vpop.f32.mrf.mxu0
      %1560 = vdwg.mxu0
      %v1561 = vadd.f32 %v1497, %v1555
      %v1562 = vadd.f32 %v1498, %v1558
      %s1563 = scalar_lea.vmem %s9, 96
      %v1564 = vld [vmem:[%s1563] sm:$0xf]
      %v1565 = vld [vmem:[%s1563 + $0x4] sm:$0xf]
      %v1566 = vld [vmem:[%s1563 + $0x8] sm:$0xf]
      %v1567 = vld [vmem:[%s1563 + $0xc] sm:$0xf]
      %v1571 = vunpack.c.l.b16 %v1080
      %v1572 = vunpack.c.l.b16 %v1081
      %v1573 = vunpack.c.l.b16 %v1082
      %v1574 = vpack.c.b16 %v1572, %v1571
      %v1575 = vpack.c.b16 %v1573, %v1573
      %v1576 = vrot.slane %v1574, 2
      %v1577 = vrot.slane %v1575, 2
      %v1578 = vsel %vm1249, %v1576, %v1577
      %v1583 = vunpack.c.l.b16 %v1564
      %v1584 = vunpack.c.l.b16 %v1565
      %v1585 = vunpack.c.l.b16 %v1566
      %v1586 = vunpack.c.l.b16 %v1567
      %v1587 = vpack.c.b16 %v1584, %v1583
      %v1588 = vpack.c.b16 %v1586, %v1585
      %v1592 = vsel %vm1126, %v1578, 0
      %1594 = vmatprep.subr.bf16.mxu0 0
      %1595 = vmatpush1.bf16.msra.mxu0 0
      %1596 = vmatprep.subr.bf16.mxu0 0
      %1597 = vmatpush1.bf16.msra.mxu0 0
      %1598 = vmatprep.subr.bf16.mxu0 0
      %1599 = vmatpush1.bf16.msra.mxu0 0
      %1600 = vmatprep.subr.bf16.mxu0 0
      %1601 = vmatpush1.bf16.msra.mxu0 0
      %1602 = vmatprep.subr.bf16.mxu0 0
      %1603 = vmatpush1.bf16.msra.mxu0 0
      %1604 = vmatprep.subr.bf16.mxu0 0
      %1605 = vmatpush1.bf16.msra.mxu0 0
      %1606 = vmatprep.subr.bf16.mxu0 0
      %1607 = vmatpush1.bf16.msra.mxu0 %v1588
      %1608 = vmatprep.subr.bf16.mxu0 0
      %1609 = vmatpush1.bf16.msra.mxu0 %v1587
      %1610 = vmatprep.subr.bf16.mxu0 0
      %1611 = vmatpush2.bf16.msra.mxu0 0
      %1612 = vmatprep.subr.bf16.mxu0 0
      %1613 = vmatpush2.bf16.msra.mxu0 0
      %1614 = vmatprep.subr.bf16.mxu0 0
      %1615 = vmatpush2.bf16.msra.mxu0 0
      %1616 = vmatprep.subr.bf16.mxu0 0
      %1617 = vmatpush2.bf16.msra.mxu0 0
      %1618 = vmatprep.subr.bf16.mxu0 0
      %1619 = vmatpush2.bf16.msra.mxu0 0
      %1620 = vmatprep.subr.bf16.mxu0 0
      %1621 = vmatpush2.bf16.msra.mxu0 0
      %1622 = vmatprep.subr.bf16.mxu0 0
      %1623 = vmatpush2.bf16.msra.mxu0 0
      %1624 = vmatprep.subr.bf16.mxu0 0
      %1625 = vmatpush2.bf16.msra.mxu0 0
      %1626 = vmatprep.mubr.bf16.mxu0 0
      %1627 = vmatmul.mubr.bf16.gmra.mxu0 %v1592
      %v1628 = vpop.f32.mrf.mxu0
      %v1629 = vadd.f32 0.0, %v1628
      %v1630 = vpop.f32.mrf.mxu0
      %v1631 = vpop.f32.mrf.mxu0
      %v1632 = vadd.f32 0.0, %v1631
      %v1633 = vpop.f32.mrf.mxu0
      %1634 = vdwg.mxu0
      %v1635 = vadd.f32 %v1561, %v1629
      %v1636 = vadd.f32 %v1562, %v1632
      %s1637 = scalar_lea.vmem %s9, 112
      %v1638 = vld [vmem:[%s1637] sm:$0xf]
      %v1639 = vld [vmem:[%s1637 + $0x4] sm:$0xf]
      %v1640 = vld [vmem:[%s1637 + $0x8] sm:$0xf]
      %v1641 = vld [vmem:[%s1637 + $0xc] sm:$0xf]
      %v1642 = vrot.slane %v1574, 3
      %v1643 = vrot.slane %v1575, 3
      %v1644 = vsel %vm1110, %v1642, %v1643
      %v1649 = vunpack.c.l.b16 %v1638
      %v1650 = vunpack.c.l.b16 %v1639
      %v1651 = vunpack.c.l.b16 %v1640
      %v1652 = vunpack.c.l.b16 %v1641
      %v1653 = vpack.c.b16 %v1650, %v1649
      %v1654 = vpack.c.b16 %v1652, %v1651
      %v1658 = vsel %vm1126, %v1644, 0
      %1660 = vmatprep.subr.bf16.mxu0 0
      %1661 = vmatpush1.bf16.msra.mxu0 0
      %1662 = vmatprep.subr.bf16.mxu0 0
      %1663 = vmatpush1.bf16.msra.mxu0 0
      %1664 = vmatprep.subr.bf16.mxu0 0
      %1665 = vmatpush1.bf16.msra.mxu0 0
      %1666 = vmatprep.subr.bf16.mxu0 0
      %1667 = vmatpush1.bf16.msra.mxu0 0
      %1668 = vmatprep.subr.bf16.mxu0 0
      %1669 = vmatpush1.bf16.msra.mxu0 0
      %1670 = vmatprep.subr.bf16.mxu0 0
      %1671 = vmatpush1.bf16.msra.mxu0 0
      %1672 = vmatprep.subr.bf16.mxu0 0
      %1673 = vmatpush1.bf16.msra.mxu0 %v1654
      %1674 = vmatprep.subr.bf16.mxu0 0
      %1675 = vmatpush1.bf16.msra.mxu0 %v1653
      %1676 = vmatprep.subr.bf16.mxu0 0
      %1677 = vmatpush2.bf16.msra.mxu0 0
      %1678 = vmatprep.subr.bf16.mxu0 0
      %1679 = vmatpush2.bf16.msra.mxu0 0
      %1680 = vmatprep.subr.bf16.mxu0 0
      %1681 = vmatpush2.bf16.msra.mxu0 0
      %1682 = vmatprep.subr.bf16.mxu0 0
      %1683 = vmatpush2.bf16.msra.mxu0 0
      %1684 = vmatprep.subr.bf16.mxu0 0
      %1685 = vmatpush2.bf16.msra.mxu0 0
      %1686 = vmatprep.subr.bf16.mxu0 0
      %1687 = vmatpush2.bf16.msra.mxu0 0
      %1688 = vmatprep.subr.bf16.mxu0 0
      %1689 = vmatpush2.bf16.msra.mxu0 0
      %1690 = vmatprep.subr.bf16.mxu0 0
      %1691 = vmatpush2.bf16.msra.mxu0 0
      %1692 = vmatprep.mubr.bf16.mxu0 0
      %1693 = vmatmul.mubr.bf16.gmra.mxu0 %v1658
      %v1694 = vpop.f32.mrf.mxu0
      %v1695 = vadd.f32 0.0, %v1694
      %v1696 = vpop.f32.mrf.mxu0
      %v1697 = vpop.f32.mrf.mxu0
      %v1698 = vadd.f32 0.0, %v1697
      %v1699 = vpop.f32.mrf.mxu0
      %1700 = vdwg.mxu0
      %v1701 = vadd.f32 %v1635, %v1695
      %v1702 = vadd.f32 %v1636, %v1698
      %s1703 = scalar_lea.vmem %s9, 128
      %v1704 = vld [vmem:[%s1703] sm:$0xf]
      %v1705 = vld [vmem:[%s1703 + $0x4] sm:$0xf]
      %v1706 = vld [vmem:[%s1703 + $0x8] sm:$0xf]
      %v1707 = vld [vmem:[%s1703 + $0xc] sm:$0xf]
      %v1708 = vpack.c.b16 %v1573, %v1572
      %v1713 = vunpack.c.l.b16 %v1704
      %v1714 = vunpack.c.l.b16 %v1705
      %v1715 = vunpack.c.l.b16 %v1706
      %v1716 = vunpack.c.l.b16 %v1707
      %v1717 = vpack.c.b16 %v1714, %v1713
      %v1718 = vpack.c.b16 %v1716, %v1715
      %v1722 = vsel %vm1126, %v1708, 0
      %1724 = vmatprep.subr.bf16.mxu0 0
      %1725 = vmatpush1.bf16.msra.mxu0 0
      %1726 = vmatprep.subr.bf16.mxu0 0
      %1727 = vmatpush1.bf16.msra.mxu0 0
      %1728 = vmatprep.subr.bf16.mxu0 0
      %1729 = vmatpush1.bf16.msra.mxu0 0
      %1730 = vmatprep.subr.bf16.mxu0 0
      %1731 = vmatpush1.bf16.msra.mxu0 0
      %1732 = vmatprep.subr.bf16.mxu0 0
      %1733 = vmatpush1.bf16.msra.mxu0 0
      %1734 = vmatprep.subr.bf16.mxu0 0
      %1735 = vmatpush1.bf16.msra.mxu0 0
      %1736 = vmatprep.subr.bf16.mxu0 0
      %1737 = vmatpush1.bf16.msra.mxu0 %v1718
      %1738 = vmatprep.subr.bf16.mxu0 0
      %1739 = vmatpush1.bf16.msra.mxu0 %v1717
      %1740 = vmatprep.subr.bf16.mxu0 0
      %1741 = vmatpush2.bf16.msra.mxu0 0
      %1742 = vmatprep.subr.bf16.mxu0 0
      %1743 = vmatpush2.bf16.msra.mxu0 0
      %1744 = vmatprep.subr.bf16.mxu0 0
      %1745 = vmatpush2.bf16.msra.mxu0 0
      %1746 = vmatprep.subr.bf16.mxu0 0
      %1747 = vmatpush2.bf16.msra.mxu0 0
      %1748 = vmatprep.subr.bf16.mxu0 0
      %1749 = vmatpush2.bf16.msra.mxu0 0
      %1750 = vmatprep.subr.bf16.mxu0 0
      %1751 = vmatpush2.bf16.msra.mxu0 0
      %1752 = vmatprep.subr.bf16.mxu0 0
      %1753 = vmatpush2.bf16.msra.mxu0 0
      %1754 = vmatprep.subr.bf16.mxu0 0
      %1755 = vmatpush2.bf16.msra.mxu0 0
      %1756 = vmatprep.mubr.bf16.mxu0 0
      %1757 = vmatmul.mubr.bf16.gmra.mxu0 %v1722
      %v1758 = vpop.f32.mrf.mxu0
      %v1759 = vadd.f32 0.0, %v1758
      %v1760 = vpop.f32.mrf.mxu0
      %v1761 = vpop.f32.mrf.mxu0
      %v1762 = vadd.f32 0.0, %v1761
      %v1763 = vpop.f32.mrf.mxu0
      %1764 = vdwg.mxu0
      %v1765 = vadd.f32 %v1701, %v1759
      %v1766 = vadd.f32 %v1702, %v1762
      %s1767 = scalar_lea.vmem %s14, 1
      %v1768 = vld [vmem:[%s1767] sm:$0x1]
      %v1770 = vlaneseq
      %v1771 = vshrl.u32 %v1770, 7
      %v1772 = vsub.s32 0, %v1771
      %v1773 = vrot.slane %v1768, %v1772
      %v1775 = vadd.f32 %v1765, %v1773
      %v1776 = vadd.f32 %v1766, %v1773
      %v1777 = vmax.f32 %v1775, 0.0
      %v1778 = vmax.f32 %v1776, 0.0
      %v1779 = vld [vmem:[%s10] sm:$0xf]
      %v1780 = vld [vmem:[%s10 + $0x4] sm:$0xf]
      %v1781 = vld [vmem:[%s10 + $0x8] sm:$0xf]
      %v1782 = vld [vmem:[%s10 + $0xc] sm:$0xf]
      %s1783 = scalar_lea.vmem %s10, 16
      %v1784 = vld [vmem:[%s1783] sm:$0xf]
      %v1785 = vld [vmem:[%s1783 + $0x4] sm:$0xf]
      %v1786 = vld [vmem:[%s1783 + $0x8] sm:$0xf]
      %v1787 = vld [vmem:[%s1783 + $0xc] sm:$0xf]
      %v1791 = vunpack.c.l.b16 %v1069
      %v1792 = vunpack.c.l.b16 %v1070
      %v1793 = vunpack.c.l.b16 %v1071
      %v1794 = vpack.c.b16 %v1792, %v1791
      %v1795 = vpack.c.b16 %v1793, %v1793
      %v1796 = vrot.slane %v1794, 3
      %v1797 = vrot.slane %v1795, 3
      %v1798 = vsel %vm1110, %v1796, %v1797
      %v1803 = vunpack.c.l.b16 %v1784
      %v1804 = vunpack.c.l.b16 %v1785
      %v1805 = vunpack.c.l.b16 %v1786
      %v1806 = vunpack.c.l.b16 %v1787
      %v1807 = vpack.c.b16 %v1804, %v1803
      %v1808 = vpack.c.b16 %v1806, %v1805
      %v1812 = vsel %vm1126, %v1798, 0
      %1814 = vmatprep.subr.bf16.mxu0 0
      %1815 = vmatpush1.bf16.msra.mxu0 0
      %1816 = vmatprep.subr.bf16.mxu0 0
      %1817 = vmatpush1.bf16.msra.mxu0 0
      %1818 = vmatprep.subr.bf16.mxu0 0
      %1819 = vmatpush1.bf16.msra.mxu0 0
      %1820 = vmatprep.subr.bf16.mxu0 0
      %1821 = vmatpush1.bf16.msra.mxu0 0
      %1822 = vmatprep.subr.bf16.mxu0 0
      %1823 = vmatpush1.bf16.msra.mxu0 0
      %1824 = vmatprep.subr.bf16.mxu0 0
      %1825 = vmatpush1.bf16.msra.mxu0 0
      %1826 = vmatprep.subr.bf16.mxu0 0
      %1827 = vmatpush1.bf16.msra.mxu0 %v1808
      %1828 = vmatprep.subr.bf16.mxu0 0
      %1829 = vmatpush1.bf16.msra.mxu0 %v1807
      %1830 = vmatprep.subr.bf16.mxu0 0
      %1831 = vmatpush2.bf16.msra.mxu0 0
      %1832 = vmatprep.subr.bf16.mxu0 0
      %1833 = vmatpush2.bf16.msra.mxu0 0
      %1834 = vmatprep.subr.bf16.mxu0 0
      %1835 = vmatpush2.bf16.msra.mxu0 0
      %1836 = vmatprep.subr.bf16.mxu0 0
      %1837 = vmatpush2.bf16.msra.mxu0 0
      %1838 = vmatprep.subr.bf16.mxu0 0
      %1839 = vmatpush2.bf16.msra.mxu0 0
      %1840 = vmatprep.subr.bf16.mxu0 0
      %1841 = vmatpush2.bf16.msra.mxu0 0
      %1842 = vmatprep.subr.bf16.mxu0 0
      %1843 = vmatpush2.bf16.msra.mxu0 0
      %1844 = vmatprep.subr.bf16.mxu0 0
      %1845 = vmatpush2.bf16.msra.mxu0 0
      %1846 = vmatprep.mubr.bf16.mxu0 0
      %1847 = vmatmul.mubr.bf16.gmra.mxu0 %v1812
      %v1848 = vpop.f32.mrf.mxu0
      %v1849 = vadd.f32 0.0, %v1848
      %v1850 = vpop.f32.mrf.mxu0
      %v1851 = vpop.f32.mrf.mxu0
      %v1852 = vadd.f32 0.0, %v1851
      %v1853 = vpop.f32.mrf.mxu0
      %1854 = vdwg.mxu0
      %vm1855 = vcmask 1046528
      %v1856 = vrot.slane %v1794, 1
      %v1857 = vrot.slane %v1795, 1
      %v1858 = vsel %vm1855, %v1856, %v1857
      %v1863 = vunpack.c.l.b16 %v1779
      %v1864 = vunpack.c.l.b16 %v1780
      %v1865 = vunpack.c.l.b16 %v1781
      %v1866 = vunpack.c.l.b16 %v1782
      %v1867 = vpack.c.b16 %v1864, %v1863
      %v1868 = vpack.c.b16 %v1866, %v1865
      %v1872 = vsel %vm1126, %v1858, 0
      %1874 = vmatprep.subr.bf16.mxu0 0
      %1875 = vmatpush1.bf16.msra.mxu0 0
      %1876 = vmatprep.subr.bf16.mxu0 0
      %1877 = vmatpush1.bf16.msra.mxu0 0
      %1878 = vmatprep.subr.bf16.mxu0 0
      %1879 = vmatpush1.bf16.msra.mxu0 0
      %1880 = vmatprep.subr.bf16.mxu0 0
      %1881 = vmatpush1.bf16.msra.mxu0 0
      %1882 = vmatprep.subr.bf16.mxu0 0
      %1883 = vmatpush1.bf16.msra.mxu0 0
      %1884 = vmatprep.subr.bf16.mxu0 0
      %1885 = vmatpush1.bf16.msra.mxu0 0
      %1886 = vmatprep.subr.bf16.mxu0 0
      %1887 = vmatpush1.bf16.msra.mxu0 %v1868
      %1888 = vmatprep.subr.bf16.mxu0 0
      %1889 = vmatpush1.bf16.msra.mxu0 %v1867
      %1890 = vmatprep.subr.bf16.mxu0 0
      %1891 = vmatpush2.bf16.msra.mxu0 0
      %1892 = vmatprep.subr.bf16.mxu0 0
      %1893 = vmatpush2.bf16.msra.mxu0 0
      %1894 = vmatprep.subr.bf16.mxu0 0
      %1895 = vmatpush2.bf16.msra.mxu0 0
      %1896 = vmatprep.subr.bf16.mxu0 0
      %1897 = vmatpush2.bf16.msra.mxu0 0
      %1898 = vmatprep.subr.bf16.mxu0 0
      %1899 = vmatpush2.bf16.msra.mxu0 0
      %1900 = vmatprep.subr.bf16.mxu0 0
      %1901 = vmatpush2.bf16.msra.mxu0 0
      %1902 = vmatprep.subr.bf16.mxu0 0
      %1903 = vmatpush2.bf16.msra.mxu0 0
      %1904 = vmatprep.subr.bf16.mxu0 0
      %1905 = vmatpush2.bf16.msra.mxu0 0
      %1906 = vmatprep.mubr.bf16.mxu0 0
      %1907 = vmatmul.mubr.bf16.gmra.mxu0 %v1872
      %v1908 = vpop.f32.mrf.mxu0
      %v1909 = vadd.f32 %v1849, %v1908
      %v1910 = vpop.f32.mrf.mxu0
      %v1911 = vpop.f32.mrf.mxu0
      %v1912 = vadd.f32 %v1852, %v1911
      %v1913 = vpop.f32.mrf.mxu0
      %1914 = vdwg.mxu0
      %s1915 = scalar_lea.vmem %s10, 32
      %v1916 = vld [vmem:[%s1915] sm:$0xf]
      %v1917 = vld [vmem:[%s1915 + $0x4] sm:$0xf]
      %v1918 = vld [vmem:[%s1915 + $0x8] sm:$0xf]
      %v1919 = vld [vmem:[%s1915 + $0xc] sm:$0xf]
      %v1921 = vunpack.c.l.b16 %v1072
      %v1922 = vpack.c.b16 %v1793, %v1792
      %v1923 = vpack.c.b16 %v1921, %v1921
      %v1924 = vrot.slane %v1922, 1
      %v1925 = vrot.slane %v1923, 1
      %v1926 = vsel %vm1855, %v1924, %v1925
      %v1931 = vunpack.c.l.b16 %v1916
      %v1932 = vunpack.c.l.b16 %v1917
      %v1933 = vunpack.c.l.b16 %v1918
      %v1934 = vunpack.c.l.b16 %v1919
      %v1935 = vpack.c.b16 %v1932, %v1931
      %v1936 = vpack.c.b16 %v1934, %v1933
      %v1940 = vsel %vm1126, %v1926, 0
      %1942 = vmatprep.subr.bf16.mxu0 0
      %1943 = vmatpush1.bf16.msra.mxu0 0
      %1944 = vmatprep.subr.bf16.mxu0 0
      %1945 = vmatpush1.bf16.msra.mxu0 0
      %1946 = vmatprep.subr.bf16.mxu0 0
      %1947 = vmatpush1.bf16.msra.mxu0 0
      %1948 = vmatprep.subr.bf16.mxu0 0
      %1949 = vmatpush1.bf16.msra.mxu0 0
      %1950 = vmatprep.subr.bf16.mxu0 0
      %1951 = vmatpush1.bf16.msra.mxu0 0
      %1952 = vmatprep.subr.bf16.mxu0 0
      %1953 = vmatpush1.bf16.msra.mxu0 0
      %1954 = vmatprep.subr.bf16.mxu0 0
      %1955 = vmatpush1.bf16.msra.mxu0 %v1936
      %1956 = vmatprep.subr.bf16.mxu0 0
      %1957 = vmatpush1.bf16.msra.mxu0 %v1935
      %1958 = vmatprep.subr.bf16.mxu0 0
      %1959 = vmatpush2.bf16.msra.mxu0 0
      %1960 = vmatprep.subr.bf16.mxu0 0
      %1961 = vmatpush2.bf16.msra.mxu0 0
      %1962 = vmatprep.subr.bf16.mxu0 0
      %1963 = vmatpush2.bf16.msra.mxu0 0
      %1964 = vmatprep.subr.bf16.mxu0 0
      %1965 = vmatpush2.bf16.msra.mxu0 0
      %1966 = vmatprep.subr.bf16.mxu0 0
      %1967 = vmatpush2.bf16.msra.mxu0 0
      %1968 = vmatprep.subr.bf16.mxu0 0
      %1969 = vmatpush2.bf16.msra.mxu0 0
      %1970 = vmatprep.subr.bf16.mxu0 0
      %1971 = vmatpush2.bf16.msra.mxu0 0
      %1972 = vmatprep.subr.bf16.mxu0 0
      %1973 = vmatpush2.bf16.msra.mxu0 0
      %1974 = vmatprep.mubr.bf16.mxu0 0
      %1975 = vmatmul.mubr.bf16.gmra.mxu0 %v1940
      %v1976 = vpop.f32.mrf.mxu0
      %v1977 = vadd.f32 0.0, %v1976
      %v1978 = vpop.f32.mrf.mxu0
      %v1979 = vpop.f32.mrf.mxu0
      %v1980 = vadd.f32 0.0, %v1979
      %v1981 = vpop.f32.mrf.mxu0
      %1982 = vdwg.mxu0
      %v1983 = vadd.f32 %v1909, %v1977
      %v1984 = vadd.f32 %v1912, %v1980
      %s1985 = scalar_lea.vmem %s10, 48
      %v1986 = vld [vmem:[%s1985] sm:$0xf]
      %v1987 = vld [vmem:[%s1985 + $0x4] sm:$0xf]
      %v1988 = vld [vmem:[%s1985 + $0x8] sm:$0xf]
      %v1989 = vld [vmem:[%s1985 + $0xc] sm:$0xf]
      %v1990 = vrot.slane %v1108, 1
      %v1991 = vrot.slane %v1109, 1
      %v1992 = vsel %vm1855, %v1990, %v1991
      %v1997 = vunpack.c.l.b16 %v1986
      %v1998 = vunpack.c.l.b16 %v1987
      %v1999 = vunpack.c.l.b16 %v1988
      %v2000 = vunpack.c.l.b16 %v1989
      %v2001 = vpack.c.b16 %v1998, %v1997
      %v2002 = vpack.c.b16 %v2000, %v1999
      %v2006 = vsel %vm1126, %v1992, 0
      %2008 = vmatprep.subr.bf16.mxu0 0
      %2009 = vmatpush1.bf16.msra.mxu0 0
      %2010 = vmatprep.subr.bf16.mxu0 0
      %2011 = vmatpush1.bf16.msra.mxu0 0
      %2012 = vmatprep.subr.bf16.mxu0 0
      %2013 = vmatpush1.bf16.msra.mxu0 0
      %2014 = vmatprep.subr.bf16.mxu0 0
      %2015 = vmatpush1.bf16.msra.mxu0 0
      %2016 = vmatprep.subr.bf16.mxu0 0
      %2017 = vmatpush1.bf16.msra.mxu0 0
      %2018 = vmatprep.subr.bf16.mxu0 0
      %2019 = vmatpush1.bf16.msra.mxu0 0
      %2020 = vmatprep.subr.bf16.mxu0 0
      %2021 = vmatpush1.bf16.msra.mxu0 %v2002
      %2022 = vmatprep.subr.bf16.mxu0 0
      %2023 = vmatpush1.bf16.msra.mxu0 %v2001
      %2024 = vmatprep.subr.bf16.mxu0 0
      %2025 = vmatpush2.bf16.msra.mxu0 0
      %2026 = vmatprep.subr.bf16.mxu0 0
      %2027 = vmatpush2.bf16.msra.mxu0 0
      %2028 = vmatprep.subr.bf16.mxu0 0
      %2029 = vmatpush2.bf16.msra.mxu0 0
      %2030 = vmatprep.subr.bf16.mxu0 0
      %2031 = vmatpush2.bf16.msra.mxu0 0
      %2032 = vmatprep.subr.bf16.mxu0 0
      %2033 = vmatpush2.bf16.msra.mxu0 0
      %2034 = vmatprep.subr.bf16.mxu0 0
      %2035 = vmatpush2.bf16.msra.mxu0 0
      %2036 = vmatprep.subr.bf16.mxu0 0
      %2037 = vmatpush2.bf16.msra.mxu0 0
      %2038 = vmatprep.subr.bf16.mxu0 0
      %2039 = vmatpush2.bf16.msra.mxu0 0
      %2040 = vmatprep.mubr.bf16.mxu0 0
      %2041 = vmatmul.mubr.bf16.gmra.mxu0 %v2006
      %v2042 = vpop.f32.mrf.mxu0
      %v2043 = vadd.f32 0.0, %v2042
      %v2044 = vpop.f32.mrf.mxu0
      %v2045 = vpop.f32.mrf.mxu0
      %v2046 = vadd.f32 0.0, %v2045
      %v2047 = vpop.f32.mrf.mxu0
      %2048 = vdwg.mxu0
      %v2049 = vadd.f32 %v1983, %v2043
      %v2050 = vadd.f32 %v1984, %v2046
      %s2051 = scalar_lea.vmem %s10, 64
      %v2052 = vld [vmem:[%s2051] sm:$0xf]
      %v2053 = vld [vmem:[%s2051 + $0x4] sm:$0xf]
      %v2054 = vld [vmem:[%s2051 + $0x8] sm:$0xf]
      %v2055 = vld [vmem:[%s2051 + $0xc] sm:$0xf]
      %v2060 = vunpack.c.l.b16 %v2052
      %v2061 = vunpack.c.l.b16 %v2053
      %v2062 = vunpack.c.l.b16 %v2054
      %v2063 = vunpack.c.l.b16 %v2055
      %v2064 = vpack.c.b16 %v2061, %v2060
      %v2065 = vpack.c.b16 %v2063, %v2062
      %2068 = vmatprep.subr.bf16.mxu0 0
      %2069 = vmatpush1.bf16.msra.mxu0 0
      %2070 = vmatprep.subr.bf16.mxu0 0
      %2071 = vmatpush1.bf16.msra.mxu0 0
      %2072 = vmatprep.subr.bf16.mxu0 0
      %2073 = vmatpush1.bf16.msra.mxu0 0
      %2074 = vmatprep.subr.bf16.mxu0 0
      %2075 = vmatpush1.bf16.msra.mxu0 0
      %2076 = vmatprep.subr.bf16.mxu0 0
      %2077 = vmatpush1.bf16.msra.mxu0 0
      %2078 = vmatprep.subr.bf16.mxu0 0
      %2079 = vmatpush1.bf16.msra.mxu0 0
      %2080 = vmatprep.subr.bf16.mxu0 0
      %2081 = vmatpush1.bf16.msra.mxu0 %v2065
      %2082 = vmatprep.subr.bf16.mxu0 0
      %2083 = vmatpush1.bf16.msra.mxu0 %v2064
      %2084 = vmatprep.subr.bf16.mxu0 0
      %2085 = vmatpush2.bf16.msra.mxu0 0
      %2086 = vmatprep.subr.bf16.mxu0 0
      %2087 = vmatpush2.bf16.msra.mxu0 0
      %2088 = vmatprep.subr.bf16.mxu0 0
      %2089 = vmatpush2.bf16.msra.mxu0 0
      %2090 = vmatprep.subr.bf16.mxu0 0
      %2091 = vmatpush2.bf16.msra.mxu0 0
      %2092 = vmatprep.subr.bf16.mxu0 0
      %2093 = vmatpush2.bf16.msra.mxu0 0
      %2094 = vmatprep.subr.bf16.mxu0 0
      %2095 = vmatpush2.bf16.msra.mxu0 0
      %2096 = vmatprep.subr.bf16.mxu0 0
      %2097 = vmatpush2.bf16.msra.mxu0 0
      %2098 = vmatprep.subr.bf16.mxu0 0
      %2099 = vmatpush2.bf16.msra.mxu0 0
      %2100 = vmatprep.mubr.bf16.mxu0 0
      %2101 = vmatmul.mubr.bf16.gmra.mxu0 %v1128
      %v2102 = vpop.f32.mrf.mxu0
      %v2103 = vadd.f32 0.0, %v2102
      %v2104 = vpop.f32.mrf.mxu0
      %v2105 = vpop.f32.mrf.mxu0
      %v2106 = vadd.f32 0.0, %v2105
      %v2107 = vpop.f32.mrf.mxu0
      %2108 = vdwg.mxu0
      %v2109 = vadd.f32 %v2049, %v2103
      %v2110 = vadd.f32 %v2050, %v2106
      %s2111 = scalar_lea.vmem %s10, 80
      %v2112 = vld [vmem:[%s2111] sm:$0xf]
      %v2113 = vld [vmem:[%s2111 + $0x4] sm:$0xf]
      %v2114 = vld [vmem:[%s2111 + $0x8] sm:$0xf]
      %v2115 = vld [vmem:[%s2111 + $0xc] sm:$0xf]
      %v2117 = vunpack.c.l.b16 %v1079
      %v2118 = vpack.c.b16 %v2117, %v2117
      %v2119 = vrot.slane %v1504, 1
      %v2120 = vrot.slane %v2118, 1
      %v2121 = vsel %vm1855, %v2119, %v2120
      %v2126 = vunpack.c.l.b16 %v2112
      %v2127 = vunpack.c.l.b16 %v2113
      %v2128 = vunpack.c.l.b16 %v2114
      %v2129 = vunpack.c.l.b16 %v2115
      %v2130 = vpack.c.b16 %v2127, %v2126
      %v2131 = vpack.c.b16 %v2129, %v2128
      %v2135 = vsel %vm1126, %v2121, 0
      %2137 = vmatprep.subr.bf16.mxu0 0
      %2138 = vmatpush1.bf16.msra.mxu0 0
      %2139 = vmatprep.subr.bf16.mxu0 0
      %2140 = vmatpush1.bf16.msra.mxu0 0
      %2141 = vmatprep.subr.bf16.mxu0 0
      %2142 = vmatpush1.bf16.msra.mxu0 0
      %2143 = vmatprep.subr.bf16.mxu0 0
      %2144 = vmatpush1.bf16.msra.mxu0 0
      %2145 = vmatprep.subr.bf16.mxu0 0
      %2146 = vmatpush1.bf16.msra.mxu0 0
      %2147 = vmatprep.subr.bf16.mxu0 0
      %2148 = vmatpush1.bf16.msra.mxu0 0
      %2149 = vmatprep.subr.bf16.mxu0 0
      %2150 = vmatpush1.bf16.msra.mxu0 %v2131
      %2151 = vmatprep.subr.bf16.mxu0 0
      %2152 = vmatpush1.bf16.msra.mxu0 %v2130
      %2153 = vmatprep.subr.bf16.mxu0 0
      %2154 = vmatpush2.bf16.msra.mxu0 0
      %2155 = vmatprep.subr.bf16.mxu0 0
      %2156 = vmatpush2.bf16.msra.mxu0 0
      %2157 = vmatprep.subr.bf16.mxu0 0
      %2158 = vmatpush2.bf16.msra.mxu0 0
      %2159 = vmatprep.subr.bf16.mxu0 0
      %2160 = vmatpush2.bf16.msra.mxu0 0
      %2161 = vmatprep.subr.bf16.mxu0 0
      %2162 = vmatpush2.bf16.msra.mxu0 0
      %2163 = vmatprep.subr.bf16.mxu0 0
      %2164 = vmatpush2.bf16.msra.mxu0 0
      %2165 = vmatprep.subr.bf16.mxu0 0
      %2166 = vmatpush2.bf16.msra.mxu0 0
      %2167 = vmatprep.subr.bf16.mxu0 0
      %2168 = vmatpush2.bf16.msra.mxu0 0
      %2169 = vmatprep.mubr.bf16.mxu0 0
      %2170 = vmatmul.mubr.bf16.gmra.mxu0 %v2135
      %v2171 = vpop.f32.mrf.mxu0
      %v2172 = vadd.f32 0.0, %v2171
      %v2173 = vpop.f32.mrf.mxu0
      %v2174 = vpop.f32.mrf.mxu0
      %v2175 = vadd.f32 0.0, %v2174
      %v2176 = vpop.f32.mrf.mxu0
      %2177 = vdwg.mxu0
      %v2178 = vadd.f32 %v2109, %v2172
      %v2179 = vadd.f32 %v2110, %v2175
      %s2180 = scalar_lea.vmem %s10, 96
      %v2181 = vld [vmem:[%s2180] sm:$0xf]
      %v2182 = vld [vmem:[%s2180 + $0x4] sm:$0xf]
      %v2183 = vld [vmem:[%s2180 + $0x8] sm:$0xf]
      %v2184 = vld [vmem:[%s2180 + $0xc] sm:$0xf]
      %v2188 = vunpack.c.l.b16 %v1083
      %v2189 = vunpack.c.l.b16 %v1084
      %v2190 = vunpack.c.l.b16 %v1085
      %v2191 = vpack.c.b16 %v2189, %v2188
      %v2192 = vpack.c.b16 %v2190, %v2190
      %v2193 = vrot.slane %v2191, 1
      %v2194 = vrot.slane %v2192, 1
      %v2195 = vsel %vm1855, %v2193, %v2194
      %v2200 = vunpack.c.l.b16 %v2181
      %v2201 = vunpack.c.l.b16 %v2182
      %v2202 = vunpack.c.l.b16 %v2183
      %v2203 = vunpack.c.l.b16 %v2184
      %v2204 = vpack.c.b16 %v2201, %v2200
      %v2205 = vpack.c.b16 %v2203, %v2202
      %v2209 = vsel %vm1126, %v2195, 0
      %2211 = vmatprep.subr.bf16.mxu0 0
      %2212 = vmatpush1.bf16.msra.mxu0 0
      %2213 = vmatprep.subr.bf16.mxu0 0
      %2214 = vmatpush1.bf16.msra.mxu0 0
      %2215 = vmatprep.subr.bf16.mxu0 0
      %2216 = vmatpush1.bf16.msra.mxu0 0
      %2217 = vmatprep.subr.bf16.mxu0 0
      %2218 = vmatpush1.bf16.msra.mxu0 0
      %2219 = vmatprep.subr.bf16.mxu0 0
      %2220 = vmatpush1.bf16.msra.mxu0 0
      %2221 = vmatprep.subr.bf16.mxu0 0
      %2222 = vmatpush1.bf16.msra.mxu0 0
      %2223 = vmatprep.subr.bf16.mxu0 0
      %2224 = vmatpush1.bf16.msra.mxu0 %v2205
      %2225 = vmatprep.subr.bf16.mxu0 0
      %2226 = vmatpush1.bf16.msra.mxu0 %v2204
      %2227 = vmatprep.subr.bf16.mxu0 0
      %2228 = vmatpush2.bf16.msra.mxu0 0
      %2229 = vmatprep.subr.bf16.mxu0 0
      %2230 = vmatpush2.bf16.msra.mxu0 0
      %2231 = vmatprep.subr.bf16.mxu0 0
      %2232 = vmatpush2.bf16.msra.mxu0 0
      %2233 = vmatprep.subr.bf16.mxu0 0
      %2234 = vmatpush2.bf16.msra.mxu0 0
      %2235 = vmatprep.subr.bf16.mxu0 0
      %2236 = vmatpush2.bf16.msra.mxu0 0
      %2237 = vmatprep.subr.bf16.mxu0 0
      %2238 = vmatpush2.bf16.msra.mxu0 0
      %2239 = vmatprep.subr.bf16.mxu0 0
      %2240 = vmatpush2.bf16.msra.mxu0 0
      %2241 = vmatprep.subr.bf16.mxu0 0
      %2242 = vmatpush2.bf16.msra.mxu0 0
      %2243 = vmatprep.mubr.bf16.mxu0 0
      %2244 = vmatmul.mubr.bf16.gmra.mxu0 %v2209
      %v2245 = vpop.f32.mrf.mxu0
      %v2246 = vadd.f32 0.0, %v2245
      %v2247 = vpop.f32.mrf.mxu0
      %v2248 = vpop.f32.mrf.mxu0
      %v2249 = vadd.f32 0.0, %v2248
      %v2250 = vpop.f32.mrf.mxu0
      %2251 = vdwg.mxu0
      %v2252 = vadd.f32 %v2178, %v2246
      %v2253 = vadd.f32 %v2179, %v2249
      %s2254 = scalar_lea.vmem %s10, 112
      %v2255 = vld [vmem:[%s2254] sm:$0xf]
      %v2256 = vld [vmem:[%s2254 + $0x4] sm:$0xf]
      %v2257 = vld [vmem:[%s2254 + $0x8] sm:$0xf]
      %v2258 = vld [vmem:[%s2254 + $0xc] sm:$0xf]
      %v2259 = vrot.slane %v2191, 3
      %v2260 = vrot.slane %v2192, 3
      %v2261 = vsel %vm1110, %v2259, %v2260
      %v2266 = vunpack.c.l.b16 %v2255
      %v2267 = vunpack.c.l.b16 %v2256
      %v2268 = vunpack.c.l.b16 %v2257
      %v2269 = vunpack.c.l.b16 %v2258
      %v2270 = vpack.c.b16 %v2267, %v2266
      %v2271 = vpack.c.b16 %v2269, %v2268
      %v2275 = vsel %vm1126, %v2261, 0
      %2277 = vmatprep.subr.bf16.mxu0 0
      %2278 = vmatpush1.bf16.msra.mxu0 0
      %2279 = vmatprep.subr.bf16.mxu0 0
      %2280 = vmatpush1.bf16.msra.mxu0 0
      %2281 = vmatprep.subr.bf16.mxu0 0
      %2282 = vmatpush1.bf16.msra.mxu0 0
      %2283 = vmatprep.subr.bf16.mxu0 0
      %2284 = vmatpush1.bf16.msra.mxu0 0
      %2285 = vmatprep.subr.bf16.mxu0 0
      %2286 = vmatpush1.bf16.msra.mxu0 0
      %2287 = vmatprep.subr.bf16.mxu0 0
      %2288 = vmatpush1.bf16.msra.mxu0 0
      %2289 = vmatprep.subr.bf16.mxu0 0
      %2290 = vmatpush1.bf16.msra.mxu0 %v2271
      %2291 = vmatprep.subr.bf16.mxu0 0
      %2292 = vmatpush1.bf16.msra.mxu0 %v2270
      %2293 = vmatprep.subr.bf16.mxu0 0
      %2294 = vmatpush2.bf16.msra.mxu0 0
      %2295 = vmatprep.subr.bf16.mxu0 0
      %2296 = vmatpush2.bf16.msra.mxu0 0
      %2297 = vmatprep.subr.bf16.mxu0 0
      %2298 = vmatpush2.bf16.msra.mxu0 0
      %2299 = vmatprep.subr.bf16.mxu0 0
      %2300 = vmatpush2.bf16.msra.mxu0 0
      %2301 = vmatprep.subr.bf16.mxu0 0
      %2302 = vmatpush2.bf16.msra.mxu0 0
      %2303 = vmatprep.subr.bf16.mxu0 0
      %2304 = vmatpush2.bf16.msra.mxu0 0
      %2305 = vmatprep.subr.bf16.mxu0 0
      %2306 = vmatpush2.bf16.msra.mxu0 0
      %2307 = vmatprep.subr.bf16.mxu0 0
      %2308 = vmatpush2.bf16.msra.mxu0 0
      %2309 = vmatprep.mubr.bf16.mxu0 0
      %2310 = vmatmul.mubr.bf16.gmra.mxu0 %v2275
      %v2311 = vpop.f32.mrf.mxu0
      %v2312 = vadd.f32 0.0, %v2311
      %v2313 = vpop.f32.mrf.mxu0
      %v2314 = vpop.f32.mrf.mxu0
      %v2315 = vadd.f32 0.0, %v2314
      %v2316 = vpop.f32.mrf.mxu0
      %2317 = vdwg.mxu0
      %v2318 = vadd.f32 %v2252, %v2312
      %v2319 = vadd.f32 %v2253, %v2315
      %s2320 = scalar_lea.vmem %s10, 128
      %v2321 = vld [vmem:[%s2320] sm:$0xf]
      %v2322 = vld [vmem:[%s2320 + $0x4] sm:$0xf]
      %v2323 = vld [vmem:[%s2320 + $0x8] sm:$0xf]
      %v2324 = vld [vmem:[%s2320 + $0xc] sm:$0xf]
      %v2326 = vunpack.c.l.b16 %v1086
      %v2327 = vpack.c.b16 %v2190, %v2189
      %v2328 = vpack.c.b16 %v2326, %v2326
      %v2329 = vrot.slane %v2327, 1
      %v2330 = vrot.slane %v2328, 1
      %v2331 = vsel %vm1855, %v2329, %v2330
      %v2336 = vunpack.c.l.b16 %v2321
      %v2337 = vunpack.c.l.b16 %v2322
      %v2338 = vunpack.c.l.b16 %v2323
      %v2339 = vunpack.c.l.b16 %v2324
      %v2340 = vpack.c.b16 %v2337, %v2336
      %v2341 = vpack.c.b16 %v2339, %v2338
      %v2345 = vsel %vm1126, %v2331, 0
      %2347 = vmatprep.subr.bf16.mxu0 0
      %2348 = vmatpush1.bf16.msra.mxu0 0
      %2349 = vmatprep.subr.bf16.mxu0 0
      %2350 = vmatpush1.bf16.msra.mxu0 0
      %2351 = vmatprep.subr.bf16.mxu0 0
      %2352 = vmatpush1.bf16.msra.mxu0 0
      %2353 = vmatprep.subr.bf16.mxu0 0
      %2354 = vmatpush1.bf16.msra.mxu0 0
      %2355 = vmatprep.subr.bf16.mxu0 0
      %2356 = vmatpush1.bf16.msra.mxu0 0
      %2357 = vmatprep.subr.bf16.mxu0 0
      %2358 = vmatpush1.bf16.msra.mxu0 0
      %2359 = vmatprep.subr.bf16.mxu0 0
      %2360 = vmatpush1.bf16.msra.mxu0 %v2341
      %2361 = vmatprep.subr.bf16.mxu0 0
      %2362 = vmatpush1.bf16.msra.mxu0 %v2340
      %2363 = vmatprep.subr.bf16.mxu0 0
      %2364 = vmatpush2.bf16.msra.mxu0 0
      %2365 = vmatprep.subr.bf16.mxu0 0
      %2366 = vmatpush2.bf16.msra.mxu0 0
      %2367 = vmatprep.subr.bf16.mxu0 0
      %2368 = vmatpush2.bf16.msra.mxu0 0
      %2369 = vmatprep.subr.bf16.mxu0 0
      %2370 = vmatpush2.bf16.msra.mxu0 0
      %2371 = vmatprep.subr.bf16.mxu0 0
      %2372 = vmatpush2.bf16.msra.mxu0 0
      %2373 = vmatprep.subr.bf16.mxu0 0
      %2374 = vmatpush2.bf16.msra.mxu0 0
      %2375 = vmatprep.subr.bf16.mxu0 0
      %2376 = vmatpush2.bf16.msra.mxu0 0
      %2377 = vmatprep.subr.bf16.mxu0 0
      %2378 = vmatpush2.bf16.msra.mxu0 0
      %2379 = vmatprep.mubr.bf16.mxu0 0
      %2380 = vmatmul.mubr.bf16.gmra.mxu0 %v2345
      %v2381 = vpop.f32.mrf.mxu0
      %v2382 = vadd.f32 0.0, %v2381
      %v2383 = vpop.f32.mrf.mxu0
      %v2384 = vpop.f32.mrf.mxu0
      %v2385 = vadd.f32 0.0, %v2384
      %v2386 = vpop.f32.mrf.mxu0
      %2387 = vdwg.mxu0
      %v2388 = vadd.f32 %v2318, %v2382
      %v2389 = vadd.f32 %v2319, %v2385
      %s2390 = scalar_lea.vmem %s14, 2
      %v2391 = vld [vmem:[%s2390] sm:$0x1]
      %v2393 = vlaneseq
      %v2394 = vshrl.u32 %v2393, 7
      %v2395 = vsub.s32 0, %v2394
      %v2396 = vrot.slane %v2391, %v2395
      %v2398 = vadd.f32 %v2388, %v2396
      %v2399 = vadd.f32 %v2389, %v2396
      %v2400 = vmax.f32 %v2398, 0.0
      %v2401 = vmax.f32 %v2399, 0.0
      %v2402 = vld [vmem:[%s11] sm:$0xf]
      %v2403 = vld [vmem:[%s11 + $0x4] sm:$0xf]
      %v2404 = vld [vmem:[%s11 + $0x8] sm:$0xf]
      %v2405 = vld [vmem:[%s11 + $0xc] sm:$0xf]
      %s2406 = scalar_lea.vmem %s11, 16
      %v2407 = vld [vmem:[%s2406] sm:$0xf]
      %v2408 = vld [vmem:[%s2406 + $0x4] sm:$0xf]
      %v2409 = vld [vmem:[%s2406 + $0x8] sm:$0xf]
      %v2410 = vld [vmem:[%s2406 + $0xc] sm:$0xf]
      %v2414 = vunpack.c.l.b16 %v1065
      %v2415 = vunpack.c.l.b16 %v1066
      %v2416 = vunpack.c.l.b16 %v1067
      %v2417 = vpack.c.b16 %v2415, %v2414
      %v2418 = vpack.c.b16 %v2416, %v2416
      %v2419 = vrot.slane %v2417, 3
      %v2420 = vrot.slane %v2418, 3
      %v2421 = vsel %vm1110, %v2419, %v2420
      %v2426 = vunpack.c.l.b16 %v2407
      %v2427 = vunpack.c.l.b16 %v2408
      %v2428 = vunpack.c.l.b16 %v2409
      %v2429 = vunpack.c.l.b16 %v2410
      %v2430 = vpack.c.b16 %v2427, %v2426
      %v2431 = vpack.c.b16 %v2429, %v2428
      %v2435 = vsel %vm1126, %v2421, 0
      %2437 = vmatprep.subr.bf16.mxu0 0
      %2438 = vmatpush1.bf16.msra.mxu0 0
      %2439 = vmatprep.subr.bf16.mxu0 0
      %2440 = vmatpush1.bf16.msra.mxu0 0
      %2441 = vmatprep.subr.bf16.mxu0 0
      %2442 = vmatpush1.bf16.msra.mxu0 0
      %2443 = vmatprep.subr.bf16.mxu0 0
      %2444 = vmatpush1.bf16.msra.mxu0 0
      %2445 = vmatprep.subr.bf16.mxu0 0
      %2446 = vmatpush1.bf16.msra.mxu0 0
      %2447 = vmatprep.subr.bf16.mxu0 0
      %2448 = vmatpush1.bf16.msra.mxu0 0
      %2449 = vmatprep.subr.bf16.mxu0 0
      %2450 = vmatpush1.bf16.msra.mxu0 %v2431
      %2451 = vmatprep.subr.bf16.mxu0 0
      %2452 = vmatpush1.bf16.msra.mxu0 %v2430
      %2453 = vmatprep.subr.bf16.mxu0 0
      %2454 = vmatpush2.bf16.msra.mxu0 0
      %2455 = vmatprep.subr.bf16.mxu0 0
      %2456 = vmatpush2.bf16.msra.mxu0 0
      %2457 = vmatprep.subr.bf16.mxu0 0
      %2458 = vmatpush2.bf16.msra.mxu0 0
      %2459 = vmatprep.subr.bf16.mxu0 0
      %2460 = vmatpush2.bf16.msra.mxu0 0
      %2461 = vmatprep.subr.bf16.mxu0 0
      %2462 = vmatpush2.bf16.msra.mxu0 0
      %2463 = vmatprep.subr.bf16.mxu0 0
      %2464 = vmatpush2.bf16.msra.mxu0 0
      %2465 = vmatprep.subr.bf16.mxu0 0
      %2466 = vmatpush2.bf16.msra.mxu0 0
      %2467 = vmatprep.subr.bf16.mxu0 0
      %2468 = vmatpush2.bf16.msra.mxu0 0
      %2469 = vmatprep.mubr.bf16.mxu0 0
      %2470 = vmatmul.mubr.bf16.gmra.mxu0 %v2435
      %v2471 = vpop.f32.mrf.mxu0
      %v2472 = vadd.f32 0.0, %v2471
      %v2473 = vpop.f32.mrf.mxu0
      %v2474 = vpop.f32.mrf.mxu0
      %v2475 = vadd.f32 0.0, %v2474
      %v2476 = vpop.f32.mrf.mxu0
      %2477 = vdwg.mxu0
      %v2482 = vunpack.c.l.b16 %v2402
      %v2483 = vunpack.c.l.b16 %v2403
      %v2484 = vunpack.c.l.b16 %v2404
      %v2485 = vunpack.c.l.b16 %v2405
      %v2486 = vpack.c.b16 %v2483, %v2482
      %v2487 = vpack.c.b16 %v2485, %v2484
      %v2491 = vsel %vm1126, %v2417, 0
      %2493 = vmatprep.subr.bf16.mxu0 0
      %2494 = vmatpush1.bf16.msra.mxu0 0
      %2495 = vmatprep.subr.bf16.mxu0 0
      %2496 = vmatpush1.bf16.msra.mxu0 0
      %2497 = vmatprep.subr.bf16.mxu0 0
      %2498 = vmatpush1.bf16.msra.mxu0 0
      %2499 = vmatprep.subr.bf16.mxu0 0
      %2500 = vmatpush1.bf16.msra.mxu0 0
      %2501 = vmatprep.subr.bf16.mxu0 0
      %2502 = vmatpush1.bf16.msra.mxu0 0
      %2503 = vmatprep.subr.bf16.mxu0 0
      %2504 = vmatpush1.bf16.msra.mxu0 0
      %2505 = vmatprep.subr.bf16.mxu0 0
      %2506 = vmatpush1.bf16.msra.mxu0 %v2487
      %2507 = vmatprep.subr.bf16.mxu0 0
      %2508 = vmatpush1.bf16.msra.mxu0 %v2486
      %2509 = vmatprep.subr.bf16.mxu0 0
      %2510 = vmatpush2.bf16.msra.mxu0 0
      %2511 = vmatprep.subr.bf16.mxu0 0
      %2512 = vmatpush2.bf16.msra.mxu0 0
      %2513 = vmatprep.subr.bf16.mxu0 0
      %2514 = vmatpush2.bf16.msra.mxu0 0
      %2515 = vmatprep.subr.bf16.mxu0 0
      %2516 = vmatpush2.bf16.msra.mxu0 0
      %2517 = vmatprep.subr.bf16.mxu0 0
      %2518 = vmatpush2.bf16.msra.mxu0 0
      %2519 = vmatprep.subr.bf16.mxu0 0
      %2520 = vmatpush2.bf16.msra.mxu0 0
      %2521 = vmatprep.subr.bf16.mxu0 0
      %2522 = vmatpush2.bf16.msra.mxu0 0
      %2523 = vmatprep.subr.bf16.mxu0 0
      %2524 = vmatpush2.bf16.msra.mxu0 0
      %2525 = vmatprep.mubr.bf16.mxu0 0
      %2526 = vmatmul.mubr.bf16.gmra.mxu0 %v2491
      %v2527 = vpop.f32.mrf.mxu0
      %v2528 = vadd.f32 %v2472, %v2527
      %v2529 = vpop.f32.mrf.mxu0
      %v2530 = vpop.f32.mrf.mxu0
      %v2531 = vadd.f32 %v2475, %v2530
      %v2532 = vpop.f32.mrf.mxu0
      %2533 = vdwg.mxu0
      %s2534 = scalar_lea.vmem %s11, 32
      %v2535 = vld [vmem:[%s2534] sm:$0xf]
      %v2536 = vld [vmem:[%s2534 + $0x4] sm:$0xf]
      %v2537 = vld [vmem:[%s2534 + $0x8] sm:$0xf]
      %v2538 = vld [vmem:[%s2534 + $0xc] sm:$0xf]
      %v2540 = vunpack.c.l.b16 %v1068
      %v2541 = vpack.c.b16 %v2416, %v2415
      %v2542 = vpack.c.b16 %v2540, %v2540
      %v2543 = vrot.slane %v2541, 2
      %v2544 = vrot.slane %v2542, 2
      %v2545 = vsel %vm1249, %v2543, %v2544
      %v2550 = vunpack.c.l.b16 %v2535
      %v2551 = vunpack.c.l.b16 %v2536
      %v2552 = vunpack.c.l.b16 %v2537
      %v2553 = vunpack.c.l.b16 %v2538
      %v2554 = vpack.c.b16 %v2551, %v2550
      %v2555 = vpack.c.b16 %v2553, %v2552
      %v2559 = vsel %vm1126, %v2545, 0
      %2561 = vmatprep.subr.bf16.mxu0 0
      %2562 = vmatpush1.bf16.msra.mxu0 0
      %2563 = vmatprep.subr.bf16.mxu0 0
      %2564 = vmatpush1.bf16.msra.mxu0 0
      %2565 = vmatprep.subr.bf16.mxu0 0
      %2566 = vmatpush1.bf16.msra.mxu0 0
      %2567 = vmatprep.subr.bf16.mxu0 0
      %2568 = vmatpush1.bf16.msra.mxu0 0
      %2569 = vmatprep.subr.bf16.mxu0 0
      %2570 = vmatpush1.bf16.msra.mxu0 0
      %2571 = vmatprep.subr.bf16.mxu0 0
      %2572 = vmatpush1.bf16.msra.mxu0 0
      %2573 = vmatprep.subr.bf16.mxu0 0
      %2574 = vmatpush1.bf16.msra.mxu0 %v2555
      %2575 = vmatprep.subr.bf16.mxu0 0
      %2576 = vmatpush1.bf16.msra.mxu0 %v2554
      %2577 = vmatprep.subr.bf16.mxu0 0
      %2578 = vmatpush2.bf16.msra.mxu0 0
      %2579 = vmatprep.subr.bf16.mxu0 0
      %2580 = vmatpush2.bf16.msra.mxu0 0
      %2581 = vmatprep.subr.bf16.mxu0 0
      %2582 = vmatpush2.bf16.msra.mxu0 0
      %2583 = vmatprep.subr.bf16.mxu0 0
      %2584 = vmatpush2.bf16.msra.mxu0 0
      %2585 = vmatprep.subr.bf16.mxu0 0
      %2586 = vmatpush2.bf16.msra.mxu0 0
      %2587 = vmatprep.subr.bf16.mxu0 0
      %2588 = vmatpush2.bf16.msra.mxu0 0
      %2589 = vmatprep.subr.bf16.mxu0 0
      %2590 = vmatpush2.bf16.msra.mxu0 0
      %2591 = vmatprep.subr.bf16.mxu0 0
      %2592 = vmatpush2.bf16.msra.mxu0 0
      %2593 = vmatprep.mubr.bf16.mxu0 0
      %2594 = vmatmul.mubr.bf16.gmra.mxu0 %v2559
      %v2595 = vpop.f32.mrf.mxu0
      %v2596 = vadd.f32 0.0, %v2595
      %v2597 = vpop.f32.mrf.mxu0
      %v2598 = vpop.f32.mrf.mxu0
      %v2599 = vadd.f32 0.0, %v2598
      %v2600 = vpop.f32.mrf.mxu0
      %2601 = vdwg.mxu0
      %v2602 = vadd.f32 %v2528, %v2596
      %v2603 = vadd.f32 %v2531, %v2599
      %s2604 = scalar_lea.vmem %s11, 48
      %v2605 = vld [vmem:[%s2604] sm:$0xf]
      %v2606 = vld [vmem:[%s2604 + $0x4] sm:$0xf]
      %v2607 = vld [vmem:[%s2604 + $0x8] sm:$0xf]
      %v2608 = vld [vmem:[%s2604 + $0xc] sm:$0xf]
      %v2613 = vunpack.c.l.b16 %v2605
      %v2614 = vunpack.c.l.b16 %v2606
      %v2615 = vunpack.c.l.b16 %v2607
      %v2616 = vunpack.c.l.b16 %v2608
      %v2617 = vpack.c.b16 %v2614, %v2613
      %v2618 = vpack.c.b16 %v2616, %v2615
      %v2622 = vsel %vm1126, %v1108, 0
      %2624 = vmatprep.subr.bf16.mxu0 0
      %2625 = vmatpush1.bf16.msra.mxu0 0
      %2626 = vmatprep.subr.bf16.mxu0 0
      %2627 = vmatpush1.bf16.msra.mxu0 0
      %2628 = vmatprep.subr.bf16.mxu0 0
      %2629 = vmatpush1.bf16.msra.mxu0 0
      %2630 = vmatprep.subr.bf16.mxu0 0
      %2631 = vmatpush1.bf16.msra.mxu0 0
      %2632 = vmatprep.subr.bf16.mxu0 0
      %2633 = vmatpush1.bf16.msra.mxu0 0
      %2634 = vmatprep.subr.bf16.mxu0 0
      %2635 = vmatpush1.bf16.msra.mxu0 0
      %2636 = vmatprep.subr.bf16.mxu0 0
      %2637 = vmatpush1.bf16.msra.mxu0 %v2618
      %2638 = vmatprep.subr.bf16.mxu0 0
      %2639 = vmatpush1.bf16.msra.mxu0 %v2617
      %2640 = vmatprep.subr.bf16.mxu0 0
      %2641 = vmatpush2.bf16.msra.mxu0 0
      %2642 = vmatprep.subr.bf16.mxu0 0
      %2643 = vmatpush2.bf16.msra.mxu0 0
      %2644 = vmatprep.subr.bf16.mxu0 0
      %2645 = vmatpush2.bf16.msra.mxu0 0
      %2646 = vmatprep.subr.bf16.mxu0 0
      %2647 = vmatpush2.bf16.msra.mxu0 0
      %2648 = vmatprep.subr.bf16.mxu0 0
      %2649 = vmatpush2.bf16.msra.mxu0 0
      %2650 = vmatprep.subr.bf16.mxu0 0
      %2651 = vmatpush2.bf16.msra.mxu0 0
      %2652 = vmatprep.subr.bf16.mxu0 0
      %2653 = vmatpush2.bf16.msra.mxu0 0
      %2654 = vmatprep.subr.bf16.mxu0 0
      %2655 = vmatpush2.bf16.msra.mxu0 0
      %2656 = vmatprep.mubr.bf16.mxu0 0
      %2657 = vmatmul.mubr.bf16.gmra.mxu0 %v2622
      %v2658 = vpop.f32.mrf.mxu0
      %v2659 = vadd.f32 0.0, %v2658
      %v2660 = vpop.f32.mrf.mxu0
      %v2661 = vpop.f32.mrf.mxu0
      %v2662 = vadd.f32 0.0, %v2661
      %v2663 = vpop.f32.mrf.mxu0
      %2664 = vdwg.mxu0
      %v2665 = vadd.f32 %v2602, %v2659
      %v2666 = vadd.f32 %v2603, %v2662
      %s2667 = scalar_lea.vmem %s11, 64
      %v2668 = vld [vmem:[%s2667] sm:$0xf]
      %v2669 = vld [vmem:[%s2667 + $0x4] sm:$0xf]
      %v2670 = vld [vmem:[%s2667 + $0x8] sm:$0xf]
      %v2671 = vld [vmem:[%s2667 + $0xc] sm:$0xf]
      %v2676 = vunpack.c.l.b16 %v2668
      %v2677 = vunpack.c.l.b16 %v2669
      %v2678 = vunpack.c.l.b16 %v2670
      %v2679 = vunpack.c.l.b16 %v2671
      %v2680 = vpack.c.b16 %v2677, %v2676
      %v2681 = vpack.c.b16 %v2679, %v2678
      %2684 = vmatprep.subr.bf16.mxu0 0
      %2685 = vmatpush1.bf16.msra.mxu0 0
      %2686 = vmatprep.subr.bf16.mxu0 0
      %2687 = vmatpush1.bf16.msra.mxu0 0
      %2688 = vmatprep.subr.bf16.mxu0 0
      %2689 = vmatpush1.bf16.msra.mxu0 0
      %2690 = vmatprep.subr.bf16.mxu0 0
      %2691 = vmatpush1.bf16.msra.mxu0 0
      %2692 = vmatprep.subr.bf16.mxu0 0
      %2693 = vmatpush1.bf16.msra.mxu0 0
      %2694 = vmatprep.subr.bf16.mxu0 0
      %2695 = vmatpush1.bf16.msra.mxu0 0
      %2696 = vmatprep.subr.bf16.mxu0 0
      %2697 = vmatpush1.bf16.msra.mxu0 %v2681
      %2698 = vmatprep.subr.bf16.mxu0 0
      %2699 = vmatpush1.bf16.msra.mxu0 %v2680
      %2700 = vmatprep.subr.bf16.mxu0 0
      %2701 = vmatpush2.bf16.msra.mxu0 0
      %2702 = vmatprep.subr.bf16.mxu0 0
      %2703 = vmatpush2.bf16.msra.mxu0 0
      %2704 = vmatprep.subr.bf16.mxu0 0
      %2705 = vmatpush2.bf16.msra.mxu0 0
      %2706 = vmatprep.subr.bf16.mxu0 0
      %2707 = vmatpush2.bf16.msra.mxu0 0
      %2708 = vmatprep.subr.bf16.mxu0 0
      %2709 = vmatpush2.bf16.msra.mxu0 0
      %2710 = vmatprep.subr.bf16.mxu0 0
      %2711 = vmatpush2.bf16.msra.mxu0 0
      %2712 = vmatprep.subr.bf16.mxu0 0
      %2713 = vmatpush2.bf16.msra.mxu0 0
      %2714 = vmatprep.subr.bf16.mxu0 0
      %2715 = vmatpush2.bf16.msra.mxu0 0
      %2716 = vmatprep.mubr.bf16.mxu0 0
      %2717 = vmatmul.mubr.bf16.gmra.mxu0 %v1128
      %v2718 = vpop.f32.mrf.mxu0
      %v2719 = vadd.f32 0.0, %v2718
      %v2720 = vpop.f32.mrf.mxu0
      %v2721 = vpop.f32.mrf.mxu0
      %v2722 = vadd.f32 0.0, %v2721
      %v2723 = vpop.f32.mrf.mxu0
      %2724 = vdwg.mxu0
      %v2725 = vadd.f32 %v2665, %v2719
      %v2726 = vadd.f32 %v2666, %v2722
      %s2727 = scalar_lea.vmem %s11, 80
      %v2728 = vld [vmem:[%s2727] sm:$0xf]
      %v2729 = vld [vmem:[%s2727 + $0x4] sm:$0xf]
      %v2730 = vld [vmem:[%s2727 + $0x8] sm:$0xf]
      %v2731 = vld [vmem:[%s2727 + $0xc] sm:$0xf]
      %v2732 = vrot.slane %v1504, 2
      %v2733 = vrot.slane %v2118, 2
      %v2734 = vsel %vm1249, %v2732, %v2733
      %v2739 = vunpack.c.l.b16 %v2728
      %v2740 = vunpack.c.l.b16 %v2729
      %v2741 = vunpack.c.l.b16 %v2730
      %v2742 = vunpack.c.l.b16 %v2731
      %v2743 = vpack.c.b16 %v2740, %v2739
      %v2744 = vpack.c.b16 %v2742, %v2741
      %v2748 = vsel %vm1126, %v2734, 0
      %2750 = vmatprep.subr.bf16.mxu0 0
      %2751 = vmatpush1.bf16.msra.mxu0 0
      %2752 = vmatprep.subr.bf16.mxu0 0
      %2753 = vmatpush1.bf16.msra.mxu0 0
      %2754 = vmatprep.subr.bf16.mxu0 0
      %2755 = vmatpush1.bf16.msra.mxu0 0
      %2756 = vmatprep.subr.bf16.mxu0 0
      %2757 = vmatpush1.bf16.msra.mxu0 0
      %2758 = vmatprep.subr.bf16.mxu0 0
      %2759 = vmatpush1.bf16.msra.mxu0 0
      %2760 = vmatprep.subr.bf16.mxu0 0
      %2761 = vmatpush1.bf16.msra.mxu0 0
      %2762 = vmatprep.subr.bf16.mxu0 0
      %2763 = vmatpush1.bf16.msra.mxu0 %v2744
      %2764 = vmatprep.subr.bf16.mxu0 0
      %2765 = vmatpush1.bf16.msra.mxu0 %v2743
      %2766 = vmatprep.subr.bf16.mxu0 0
      %2767 = vmatpush2.bf16.msra.mxu0 0
      %2768 = vmatprep.subr.bf16.mxu0 0
      %2769 = vmatpush2.bf16.msra.mxu0 0
      %2770 = vmatprep.subr.bf16.mxu0 0
      %2771 = vmatpush2.bf16.msra.mxu0 0
      %2772 = vmatprep.subr.bf16.mxu0 0
      %2773 = vmatpush2.bf16.msra.mxu0 0
      %2774 = vmatprep.subr.bf16.mxu0 0
      %2775 = vmatpush2.bf16.msra.mxu0 0
      %2776 = vmatprep.subr.bf16.mxu0 0
      %2777 = vmatpush2.bf16.msra.mxu0 0
      %2778 = vmatprep.subr.bf16.mxu0 0
      %2779 = vmatpush2.bf16.msra.mxu0 0
      %2780 = vmatprep.subr.bf16.mxu0 0
      %2781 = vmatpush2.bf16.msra.mxu0 0
      %2782 = vmatprep.mubr.bf16.mxu0 0
      %2783 = vmatmul.mubr.bf16.gmra.mxu0 %v2748
      %v2784 = vpop.f32.mrf.mxu0
      %v2785 = vadd.f32 0.0, %v2784
      %v2786 = vpop.f32.mrf.mxu0
      %v2787 = vpop.f32.mrf.mxu0
      %v2788 = vadd.f32 0.0, %v2787
      %v2789 = vpop.f32.mrf.mxu0
      %2790 = vdwg.mxu0
      %v2791 = vadd.f32 %v2725, %v2785
      %v2792 = vadd.f32 %v2726, %v2788
      %s2793 = scalar_lea.vmem %s11, 96
      %v2794 = vld [vmem:[%s2793] sm:$0xf]
      %v2795 = vld [vmem:[%s2793 + $0x4] sm:$0xf]
      %v2796 = vld [vmem:[%s2793 + $0x8] sm:$0xf]
      %v2797 = vld [vmem:[%s2793 + $0xc] sm:$0xf]
      %v2800 = vunpack.c.l.b16 %v1087
      %v2801 = vunpack.c.l.b16 %v1088
      %v2802 = vpack.c.b16 %v2801, %v2800
      %v2807 = vunpack.c.l.b16 %v2794
      %v2808 = vunpack.c.l.b16 %v2795
      %v2809 = vunpack.c.l.b16 %v2796
      %v2810 = vunpack.c.l.b16 %v2797
      %v2811 = vpack.c.b16 %v2808, %v2807
      %v2812 = vpack.c.b16 %v2810, %v2809
      %v2816 = vsel %vm1126, %v2802, 0
      %2818 = vmatprep.subr.bf16.mxu0 0
      %2819 = vmatpush1.bf16.msra.mxu0 0
      %2820 = vmatprep.subr.bf16.mxu0 0
      %2821 = vmatpush1.bf16.msra.mxu0 0
      %2822 = vmatprep.subr.bf16.mxu0 0
      %2823 = vmatpush1.bf16.msra.mxu0 0
      %2824 = vmatprep.subr.bf16.mxu0 0
      %2825 = vmatpush1.bf16.msra.mxu0 0
      %2826 = vmatprep.subr.bf16.mxu0 0
      %2827 = vmatpush1.bf16.msra.mxu0 0
      %2828 = vmatprep.subr.bf16.mxu0 0
      %2829 = vmatpush1.bf16.msra.mxu0 0
      %2830 = vmatprep.subr.bf16.mxu0 0
      %2831 = vmatpush1.bf16.msra.mxu0 %v2812
      %2832 = vmatprep.subr.bf16.mxu0 0
      %2833 = vmatpush1.bf16.msra.mxu0 %v2811
      %2834 = vmatprep.subr.bf16.mxu0 0
      %2835 = vmatpush2.bf16.msra.mxu0 0
      %2836 = vmatprep.subr.bf16.mxu0 0
      %2837 = vmatpush2.bf16.msra.mxu0 0
      %2838 = vmatprep.subr.bf16.mxu0 0
      %2839 = vmatpush2.bf16.msra.mxu0 0
      %2840 = vmatprep.subr.bf16.mxu0 0
      %2841 = vmatpush2.bf16.msra.mxu0 0
      %2842 = vmatprep.subr.bf16.mxu0 0
      %2843 = vmatpush2.bf16.msra.mxu0 0
      %2844 = vmatprep.subr.bf16.mxu0 0
      %2845 = vmatpush2.bf16.msra.mxu0 0
      %2846 = vmatprep.subr.bf16.mxu0 0
      %2847 = vmatpush2.bf16.msra.mxu0 0
      %2848 = vmatprep.subr.bf16.mxu0 0
      %2849 = vmatpush2.bf16.msra.mxu0 0
      %2850 = vmatprep.mubr.bf16.mxu0 0
      %2851 = vmatmul.mubr.bf16.gmra.mxu0 %v2816
      %v2852 = vpop.f32.mrf.mxu0
      %v2853 = vadd.f32 0.0, %v2852
      %v2854 = vpop.f32.mrf.mxu0
      %v2855 = vpop.f32.mrf.mxu0
      %v2856 = vadd.f32 0.0, %v2855
      %v2857 = vpop.f32.mrf.mxu0
      %2858 = vdwg.mxu0
      %v2859 = vadd.f32 %v2791, %v2853
      %v2860 = vadd.f32 %v2792, %v2856
      %s2861 = scalar_lea.vmem %s11, 112
      %v2862 = vld [vmem:[%s2861] sm:$0xf]
      %v2863 = vld [vmem:[%s2861 + $0x4] sm:$0xf]
      %v2864 = vld [vmem:[%s2861 + $0x8] sm:$0xf]
      %v2865 = vld [vmem:[%s2861 + $0xc] sm:$0xf]
      %v2867 = vunpack.c.l.b16 %v1089
      %v2868 = vpack.c.b16 %v2867, %v2867
      %v2869 = vrot.slane %v2802, 3
      %v2870 = vrot.slane %v2868, 3
      %v2871 = vsel %vm1110, %v2869, %v2870
      %v2876 = vunpack.c.l.b16 %v2862
      %v2877 = vunpack.c.l.b16 %v2863
      %v2878 = vunpack.c.l.b16 %v2864
      %v2879 = vunpack.c.l.b16 %v2865
      %v2880 = vpack.c.b16 %v2877, %v2876
      %v2881 = vpack.c.b16 %v2879, %v2878
      %v2885 = vsel %vm1126, %v2871, 0
      %2887 = vmatprep.subr.bf16.mxu0 0
      %2888 = vmatpush1.bf16.msra.mxu0 0
      %2889 = vmatprep.subr.bf16.mxu0 0
      %2890 = vmatpush1.bf16.msra.mxu0 0
      %2891 = vmatprep.subr.bf16.mxu0 0
      %2892 = vmatpush1.bf16.msra.mxu0 0
      %2893 = vmatprep.subr.bf16.mxu0 0
      %2894 = vmatpush1.bf16.msra.mxu0 0
      %2895 = vmatprep.subr.bf16.mxu0 0
      %2896 = vmatpush1.bf16.msra.mxu0 0
      %2897 = vmatprep.subr.bf16.mxu0 0
      %2898 = vmatpush1.bf16.msra.mxu0 0
      %2899 = vmatprep.subr.bf16.mxu0 0
      %2900 = vmatpush1.bf16.msra.mxu0 %v2881
      %2901 = vmatprep.subr.bf16.mxu0 0
      %2902 = vmatpush1.bf16.msra.mxu0 %v2880
      %2903 = vmatprep.subr.bf16.mxu0 0
      %2904 = vmatpush2.bf16.msra.mxu0 0
      %2905 = vmatprep.subr.bf16.mxu0 0
      %2906 = vmatpush2.bf16.msra.mxu0 0
      %2907 = vmatprep.subr.bf16.mxu0 0
      %2908 = vmatpush2.bf16.msra.mxu0 0
      %2909 = vmatprep.subr.bf16.mxu0 0
      %2910 = vmatpush2.bf16.msra.mxu0 0
      %2911 = vmatprep.subr.bf16.mxu0 0
      %2912 = vmatpush2.bf16.msra.mxu0 0
      %2913 = vmatprep.subr.bf16.mxu0 0
      %2914 = vmatpush2.bf16.msra.mxu0 0
      %2915 = vmatprep.subr.bf16.mxu0 0
      %2916 = vmatpush2.bf16.msra.mxu0 0
      %2917 = vmatprep.subr.bf16.mxu0 0
      %2918 = vmatpush2.bf16.msra.mxu0 0
      %2919 = vmatprep.mubr.bf16.mxu0 0
      %2920 = vmatmul.mubr.bf16.gmra.mxu0 %v2885
      %v2921 = vpop.f32.mrf.mxu0
      %v2922 = vadd.f32 0.0, %v2921
      %v2923 = vpop.f32.mrf.mxu0
      %v2924 = vpop.f32.mrf.mxu0
      %v2925 = vadd.f32 0.0, %v2924
      %v2926 = vpop.f32.mrf.mxu0
      %2927 = vdwg.mxu0
      %v2928 = vadd.f32 %v2859, %v2922
      %v2929 = vadd.f32 %v2860, %v2925
      %s2930 = scalar_lea.vmem %s11, 128
      %v2931 = vld [vmem:[%s2930] sm:$0xf]
      %v2932 = vld [vmem:[%s2930 + $0x4] sm:$0xf]
      %v2933 = vld [vmem:[%s2930 + $0x8] sm:$0xf]
      %v2934 = vld [vmem:[%s2930 + $0xc] sm:$0xf]
      %v2936 = vunpack.c.l.b16 %v1090
      %v2937 = vpack.c.b16 %v2867, %v2801
      %v2938 = vpack.c.b16 %v2936, %v2936
      %v2939 = vrot.slane %v2937, 2
      %v2940 = vrot.slane %v2938, 2
      %v2941 = vsel %vm1249, %v2939, %v2940
      %v2946 = vunpack.c.l.b16 %v2931
      %v2947 = vunpack.c.l.b16 %v2932
      %v2948 = vunpack.c.l.b16 %v2933
      %v2949 = vunpack.c.l.b16 %v2934
      %v2950 = vpack.c.b16 %v2947, %v2946
      %v2951 = vpack.c.b16 %v2949, %v2948
      %v2955 = vsel %vm1126, %v2941, 0
      %2957 = vmatprep.subr.bf16.mxu0 0
      %2958 = vmatpush1.bf16.msra.mxu0 0
      %2959 = vmatprep.subr.bf16.mxu0 0
      %2960 = vmatpush1.bf16.msra.mxu0 0
      %2961 = vmatprep.subr.bf16.mxu0 0
      %2962 = vmatpush1.bf16.msra.mxu0 0
      %2963 = vmatprep.subr.bf16.mxu0 0
      %2964 = vmatpush1.bf16.msra.mxu0 0
      %2965 = vmatprep.subr.bf16.mxu0 0
      %2966 = vmatpush1.bf16.msra.mxu0 0
      %2967 = vmatprep.subr.bf16.mxu0 0
      %2968 = vmatpush1.bf16.msra.mxu0 0
      %2969 = vmatprep.subr.bf16.mxu0 0
      %2970 = vmatpush1.bf16.msra.mxu0 %v2951
      %2971 = vmatprep.subr.bf16.mxu0 0
      %2972 = vmatpush1.bf16.msra.mxu0 %v2950
      %2973 = vmatprep.subr.bf16.mxu0 0
      %2974 = vmatpush2.bf16.msra.mxu0 0
      %2975 = vmatprep.subr.bf16.mxu0 0
      %2976 = vmatpush2.bf16.msra.mxu0 0
      %2977 = vmatprep.subr.bf16.mxu0 0
      %2978 = vmatpush2.bf16.msra.mxu0 0
      %2979 = vmatprep.subr.bf16.mxu0 0
      %2980 = vmatpush2.bf16.msra.mxu0 0
      %2981 = vmatprep.subr.bf16.mxu0 0
      %2982 = vmatpush2.bf16.msra.mxu0 0
      %2983 = vmatprep.subr.bf16.mxu0 0
      %2984 = vmatpush2.bf16.msra.mxu0 0
      %2985 = vmatprep.subr.bf16.mxu0 0
      %2986 = vmatpush2.bf16.msra.mxu0 0
      %2987 = vmatprep.subr.bf16.mxu0 0
      %2988 = vmatpush2.bf16.msra.mxu0 0
      %2989 = vmatprep.mubr.bf16.mxu0 0
      %2990 = vmatmul.mubr.bf16.gmra.mxu0 %v2955
      %v2991 = vpop.f32.mrf.mxu0
      %v2992 = vadd.f32 0.0, %v2991
      %v2993 = vpop.f32.mrf.mxu0
      %v2994 = vpop.f32.mrf.mxu0
      %v2995 = vadd.f32 0.0, %v2994
      %v2996 = vpop.f32.mrf.mxu0
      %2997 = vdwg.mxu0
      %v2998 = vadd.f32 %v2928, %v2992
      %v2999 = vadd.f32 %v2929, %v2995
      %s3000 = scalar_lea.vmem %s14, 3
      %v3001 = vld [vmem:[%s3000] sm:$0x1]
      %v3003 = vlaneseq
      %v3004 = vshrl.u32 %v3003, 7
      %v3005 = vsub.s32 0, %v3004
      %v3006 = vrot.slane %v3001, %v3005
      %v3008 = vadd.f32 %v2998, %v3006
      %v3009 = vadd.f32 %v2999, %v3006
      %v3010 = vmax.f32 %v3008, 0.0
      %v3011 = vmax.f32 %v3009, 0.0
      %v3012 = vld [vmem:[%s1009] sm:$0x1]
      %v3013 = vld [vmem:[%s12] sm:$0xf]
      %v3014 = vld [vmem:[%s12 + $0x4] sm:$0xf]
      %v3015 = vld [vmem:[%s12 + $0x8] sm:$0xf]
      %v3016 = vld [vmem:[%s12 + $0xc] sm:$0xf]
      %s3017 = scalar_lea.vmem %s14, 4
      %v3018 = vld [vmem:[%s3017] sm:$0x1]
      %v3023 = vunpack.c.l.b16 %v3013
      %v3024 = vunpack.c.l.b16 %v3014
      %v3025 = vunpack.c.l.b16 %v3015
      %v3026 = vunpack.c.l.b16 %v3016
      %v3027 = vpack.c.b16 %v3024, %v3023
      %v3028 = vpack.c.b16 %v3026, %v3025
      %v3032 = vsel %vm1126, %v3012, 0
      %3034 = vmatprep.subr.bf16.mxu0 0
      %3035 = vmatpush1.bf16.msra.mxu0 0
      %3036 = vmatprep.subr.bf16.mxu0 0
      %3037 = vmatpush1.bf16.msra.mxu0 0
      %3038 = vmatprep.subr.bf16.mxu0 0
      %3039 = vmatpush1.bf16.msra.mxu0 0
      %3040 = vmatprep.subr.bf16.mxu0 0
      %3041 = vmatpush1.bf16.msra.mxu0 0
      %3042 = vmatprep.subr.bf16.mxu0 0
      %3043 = vmatpush1.bf16.msra.mxu0 0
      %3044 = vmatprep.subr.bf16.mxu0 0
      %3045 = vmatpush1.bf16.msra.mxu0 0
      %3046 = vmatprep.subr.bf16.mxu0 0
      %3047 = vmatpush1.bf16.msra.mxu0 %v3028
      %3048 = vmatprep.subr.bf16.mxu0 0
      %3049 = vmatpush1.bf16.msra.mxu0 %v3027
      %3050 = vmatprep.subr.bf16.mxu0 0
      %3051 = vmatpush2.bf16.msra.mxu0 0
      %3052 = vmatprep.subr.bf16.mxu0 0
      %3053 = vmatpush2.bf16.msra.mxu0 0
      %3054 = vmatprep.subr.bf16.mxu0 0
      %3055 = vmatpush2.bf16.msra.mxu0 0
      %3056 = vmatprep.subr.bf16.mxu0 0
      %3057 = vmatpush2.bf16.msra.mxu0 0
      %3058 = vmatprep.subr.bf16.mxu0 0
      %3059 = vmatpush2.bf16.msra.mxu0 0
      %3060 = vmatprep.subr.bf16.mxu0 0
      %3061 = vmatpush2.bf16.msra.mxu0 0
      %3062 = vmatprep.subr.bf16.mxu0 0
      %3063 = vmatpush2.bf16.msra.mxu0 0
      %3064 = vmatprep.subr.bf16.mxu0 0
      %3065 = vmatpush2.bf16.msra.mxu0 0
      %3066 = vmatprep.mubr.bf16.mxu0 0
      %3067 = vmatmul.mubr.bf16.gmra.mxu0 %v3032
      %v3068 = vpop.f32.mrf.mxu0
      %v3069 = vadd.f32 %v3018, %v3068
      %v3070 = vpop.f32.mrf.mxu0
      %v3071 = vpop.f32.mrf.mxu0
      %v3072 = vpop.f32.mrf.mxu0
      %3073 = vdwg.mxu0
      %v3074 = vmax.f32 %v3069, 0.0
      %v3075 = vpack.c.bf16 %v1172, %v1171
      %v3076 = vld [vmem:[%s13] sm:$0x3]
      %v3077 = vpack.c.bf16 %v1778, %v1777
      %s3078 = scalar_lea.vmem %s13, 2
      %v3079 = vld [vmem:[%s3078] sm:$0x3]
      %vm3080 = vcmask 31744
      %v3082 = vsel %vm3080, %v3077, 0
      %vm3084 = vcmask 1041408
      %v3086 = vsel %vm3084, %v3079, 0
      %3088 = vmatprep.subr.bf16.mxu0 0
      %3089 = vmatpush1.bf16.msra.mxu0 0
      %3090 = vmatprep.subr.bf16.mxu0 0
      %3091 = vmatpush1.bf16.msra.mxu0 0
      %3092 = vmatprep.subr.bf16.mxu0 0
      %3093 = vmatpush1.bf16.msra.mxu0 0
      %3094 = vmatprep.subr.bf16.mxu0 0
      %3095 = vmatpush1.bf16.msra.mxu0 0
      %3096 = vmatprep.subr.bf16.mxu0 0
      %3097 = vmatpush1.bf16.msra.mxu0 0
      %3098 = vmatprep.subr.bf16.mxu0 0
      %3099 = vmatpush1.bf16.msra.mxu0 0
      %3100 = vmatprep.subr.bf16.mxu0 0
      %3101 = vmatpush1.bf16.msra.mxu0 0
      %3102 = vmatprep.subr.bf16.mxu0 0
      %3103 = vmatpush1.bf16.msra.mxu0 %v3086
      %3104 = vmatprep.subr.bf16.mxu0 0
      %3105 = vmatpush2.bf16.msra.mxu0 0
      %3106 = vmatprep.subr.bf16.mxu0 0
      %3107 = vmatpush2.bf16.msra.mxu0 0
      %3108 = vmatprep.subr.bf16.mxu0 0
      %3109 = vmatpush2.bf16.msra.mxu0 0
      %3110 = vmatprep.subr.bf16.mxu0 0
      %3111 = vmatpush2.bf16.msra.mxu0 0
      %3112 = vmatprep.subr.bf16.mxu0 0
      %3113 = vmatpush2.bf16.msra.mxu0 0
      %3114 = vmatprep.subr.bf16.mxu0 0
      %3115 = vmatpush2.bf16.msra.mxu0 0
      %3116 = vmatprep.subr.bf16.mxu0 0
      %3117 = vmatpush2.bf16.msra.mxu0 0
      %3118 = vmatprep.subr.bf16.mxu0 0
      %3119 = vmatpush2.bf16.msra.mxu0 0
      %3120 = vmatprep.mubr.bf16.mxu0 0
      %3121 = vmatmul.mubr.bf16.gmra.mxu0 %v3082
      %v3122 = vpop.f32.mrf.mxu0
      %v3123 = vadd.f32 0.0, %v3122
      %v3124 = vpop.f32.mrf.mxu0
      %v3125 = vpop.f32.mrf.mxu0
      %v3126 = vadd.f32 0.0, %v3125
      %v3127 = vpop.f32.mrf.mxu0
      %3128 = vdwg.mxu0
      %v3130 = vsel %vm3080, %v3075, 0
      %v3133 = vsel %vm3084, %v3076, 0
      %3135 = vmatprep.subr.bf16.mxu0 0
      %3136 = vmatpush1.bf16.msra.mxu0 0
      %3137 = vmatprep.subr.bf16.mxu0 0
      %3138 = vmatpush1.bf16.msra.mxu0 0
      %3139 = vmatprep.subr.bf16.mxu0 0
      %3140 = vmatpush1.bf16.msra.mxu0 0
      %3141 = vmatprep.subr.bf16.mxu0 0
      %3142 = vmatpush1.bf16.msra.mxu0 0
      %3143 = vmatprep.subr.bf16.mxu0 0
      %3144 = vmatpush1.bf16.msra.mxu0 0
      %3145 = vmatprep.subr.bf16.mxu0 0
      %3146 = vmatpush1.bf16.msra.mxu0 0
      %3147 = vmatprep.subr.bf16.mxu0 0
      %3148 = vmatpush1.bf16.msra.mxu0 0
      %3149 = vmatprep.subr.bf16.mxu0 0
      %3150 = vmatpush1.bf16.msra.mxu0 %v3133
      %3151 = vmatprep.subr.bf16.mxu0 0
      %3152 = vmatpush2.bf16.msra.mxu0 0
      %3153 = vmatprep.subr.bf16.mxu0 0
      %3154 = vmatpush2.bf16.msra.mxu0 0
      %3155 = vmatprep.subr.bf16.mxu0 0
      %3156 = vmatpush2.bf16.msra.mxu0 0
      %3157 = vmatprep.subr.bf16.mxu0 0
      %3158 = vmatpush2.bf16.msra.mxu0 0
      %3159 = vmatprep.subr.bf16.mxu0 0
      %3160 = vmatpush2.bf16.msra.mxu0 0
      %3161 = vmatprep.subr.bf16.mxu0 0
      %3162 = vmatpush2.bf16.msra.mxu0 0
      %3163 = vmatprep.subr.bf16.mxu0 0
      %3164 = vmatpush2.bf16.msra.mxu0 0
      %3165 = vmatprep.subr.bf16.mxu0 0
      %3166 = vmatpush2.bf16.msra.mxu0 0
      %3167 = vmatprep.mubr.bf16.mxu0 0
      %3168 = vmatmul.mubr.bf16.gmra.mxu0 %v3130
      %v3169 = vpop.f32.mrf.mxu0
      %v3170 = vadd.f32 %v3123, %v3169
      %v3171 = vpop.f32.mrf.mxu0
      %v3172 = vpop.f32.mrf.mxu0
      %v3173 = vadd.f32 %v3126, %v3172
      %v3174 = vpop.f32.mrf.mxu0
      %3175 = vdwg.mxu0
      %v3176 = vpack.c.bf16 %v2401, %v2400
      %s3177 = scalar_lea.vmem %s13, 4
      %v3178 = vld [vmem:[%s3177] sm:$0x3]
      %v3180 = vsel %vm3080, %v3176, 0
      %v3183 = vsel %vm3084, %v3178, 0
      %3185 = vmatprep.subr.bf16.mxu0 0
      %3186 = vmatpush1.bf16.msra.mxu0 0
      %3187 = vmatprep.subr.bf16.mxu0 0
      %3188 = vmatpush1.bf16.msra.mxu0 0
      %3189 = vmatprep.subr.bf16.mxu0 0
      %3190 = vmatpush1.bf16.msra.mxu0 0
      %3191 = vmatprep.subr.bf16.mxu0 0
      %3192 = vmatpush1.bf16.msra.mxu0 0
      %3193 = vmatprep.subr.bf16.mxu0 0
      %3194 = vmatpush1.bf16.msra.mxu0 0
      %3195 = vmatprep.subr.bf16.mxu0 0
      %3196 = vmatpush1.bf16.msra.mxu0 0
      %3197 = vmatprep.subr.bf16.mxu0 0
      %3198 = vmatpush1.bf16.msra.mxu0 0
      %3199 = vmatprep.subr.bf16.mxu0 0
      %3200 = vmatpush1.bf16.msra.mxu0 %v3183
      %3201 = vmatprep.subr.bf16.mxu0 0
      %3202 = vmatpush2.bf16.msra.mxu0 0
      %3203 = vmatprep.subr.bf16.mxu0 0
      %3204 = vmatpush2.bf16.msra.mxu0 0
      %3205 = vmatprep.subr.bf16.mxu0 0
      %3206 = vmatpush2.bf16.msra.mxu0 0
      %3207 = vmatprep.subr.bf16.mxu0 0
      %3208 = vmatpush2.bf16.msra.mxu0 0
      %3209 = vmatprep.subr.bf16.mxu0 0
      %3210 = vmatpush2.bf16.msra.mxu0 0
      %3211 = vmatprep.subr.bf16.mxu0 0
      %3212 = vmatpush2.bf16.msra.mxu0 0
      %3213 = vmatprep.subr.bf16.mxu0 0
      %3214 = vmatpush2.bf16.msra.mxu0 0
      %3215 = vmatprep.subr.bf16.mxu0 0
      %3216 = vmatpush2.bf16.msra.mxu0 0
      %3217 = vmatprep.mubr.bf16.mxu0 0
      %3218 = vmatmul.mubr.bf16.gmra.mxu0 %v3180
      %v3219 = vpop.f32.mrf.mxu0
      %v3220 = vadd.f32 0.0, %v3219
      %v3221 = vpop.f32.mrf.mxu0
      %v3222 = vpop.f32.mrf.mxu0
      %v3223 = vadd.f32 0.0, %v3222
      %v3224 = vpop.f32.mrf.mxu0
      %3225 = vdwg.mxu0
      %v3226 = vadd.f32 %v3170, %v3220
      %v3227 = vadd.f32 %v3173, %v3223
      %v3228 = vpack.c.bf16 %v3011, %v3010
      %s3229 = scalar_lea.vmem %s13, 6
      %v3230 = vld [vmem:[%s3229] sm:$0x3]
      %v3232 = vsel %vm3080, %v3228, 0
      %v3235 = vsel %vm3084, %v3230, 0
      %3237 = vmatprep.subr.bf16.mxu0 0
      %3238 = vmatpush1.bf16.msra.mxu0 0
      %3239 = vmatprep.subr.bf16.mxu0 0
      %3240 = vmatpush1.bf16.msra.mxu0 0
      %3241 = vmatprep.subr.bf16.mxu0 0
      %3242 = vmatpush1.bf16.msra.mxu0 0
      %3243 = vmatprep.subr.bf16.mxu0 0
      %3244 = vmatpush1.bf16.msra.mxu0 0
      %3245 = vmatprep.subr.bf16.mxu0 0
      %3246 = vmatpush1.bf16.msra.mxu0 0
      %3247 = vmatprep.subr.bf16.mxu0 0
      %3248 = vmatpush1.bf16.msra.mxu0 0
      %3249 = vmatprep.subr.bf16.mxu0 0
      %3250 = vmatpush1.bf16.msra.mxu0 0
      %3251 = vmatprep.subr.bf16.mxu0 0
      %3252 = vmatpush1.bf16.msra.mxu0 %v3235
      %3253 = vmatprep.subr.bf16.mxu0 0
      %3254 = vmatpush2.bf16.msra.mxu0 0
      %3255 = vmatprep.subr.bf16.mxu0 0
      %3256 = vmatpush2.bf16.msra.mxu0 0
      %3257 = vmatprep.subr.bf16.mxu0 0
      %3258 = vmatpush2.bf16.msra.mxu0 0
      %3259 = vmatprep.subr.bf16.mxu0 0
      %3260 = vmatpush2.bf16.msra.mxu0 0
      %3261 = vmatprep.subr.bf16.mxu0 0
      %3262 = vmatpush2.bf16.msra.mxu0 0
      %3263 = vmatprep.subr.bf16.mxu0 0
      %3264 = vmatpush2.bf16.msra.mxu0 0
      %3265 = vmatprep.subr.bf16.mxu0 0
      %3266 = vmatpush2.bf16.msra.mxu0 0
      %3267 = vmatprep.subr.bf16.mxu0 0
      %3268 = vmatpush2.bf16.msra.mxu0 0
      %3269 = vmatprep.mubr.bf16.mxu0 0
      %3270 = vmatmul.mubr.bf16.gmra.mxu0 %v3232
      %v3271 = vpop.f32.mrf.mxu0
      %v3272 = vadd.f32 0.0, %v3271
      %v3273 = vpop.f32.mrf.mxu0
      %v3274 = vpop.f32.mrf.mxu0
      %v3275 = vadd.f32 0.0, %v3274
      %v3276 = vpop.f32.mrf.mxu0
      %3277 = vdwg.mxu0
      %v3278 = vadd.f32 %v3226, %v3272
      %v3279 = vadd.f32 %v3227, %v3275
      %v3280 = vpack.c.bf16 %v3074, %v3074
      %s3281 = scalar_lea.vmem %s13, 8
      %v3282 = vld [vmem:[%s3281] sm:$0x3]
      %v3284 = vsel %vm3080, %v3280, 0
      %v3287 = vsel %vm3084, %v3282, 0
      %3289 = vmatprep.subr.bf16.mxu0 0
      %3290 = vmatpush1.bf16.msra.mxu0 0
      %3291 = vmatprep.subr.bf16.mxu0 0
      %3292 = vmatpush1.bf16.msra.mxu0 0
      %3293 = vmatprep.subr.bf16.mxu0 0
      %3294 = vmatpush1.bf16.msra.mxu0 0
      %3295 = vmatprep.subr.bf16.mxu0 0
      %3296 = vmatpush1.bf16.msra.mxu0 0
      %3297 = vmatprep.subr.bf16.mxu0 0
      %3298 = vmatpush1.bf16.msra.mxu0 0
      %3299 = vmatprep.subr.bf16.mxu0 0
      %3300 = vmatpush1.bf16.msra.mxu0 0
      %3301 = vmatprep.subr.bf16.mxu0 0
      %3302 = vmatpush1.bf16.msra.mxu0 0
      %3303 = vmatprep.subr.bf16.mxu0 0
      %3304 = vmatpush1.bf16.msra.mxu0 %v3287
      %3305 = vmatprep.subr.bf16.mxu0 0
      %3306 = vmatpush2.bf16.msra.mxu0 0
      %3307 = vmatprep.subr.bf16.mxu0 0
      %3308 = vmatpush2.bf16.msra.mxu0 0
      %3309 = vmatprep.subr.bf16.mxu0 0
      %3310 = vmatpush2.bf16.msra.mxu0 0
      %3311 = vmatprep.subr.bf16.mxu0 0
      %3312 = vmatpush2.bf16.msra.mxu0 0
      %3313 = vmatprep.subr.bf16.mxu0 0
      %3314 = vmatpush2.bf16.msra.mxu0 0
      %3315 = vmatprep.subr.bf16.mxu0 0
      %3316 = vmatpush2.bf16.msra.mxu0 0
      %3317 = vmatprep.subr.bf16.mxu0 0
      %3318 = vmatpush2.bf16.msra.mxu0 0
      %3319 = vmatprep.subr.bf16.mxu0 0
      %3320 = vmatpush2.bf16.msra.mxu0 0
      %3321 = vmatprep.mubr.bf16.mxu0 0
      %3322 = vmatmul.mubr.bf16.gmra.mxu0 %v3284
      %v3323 = vpop.f32.mrf.mxu0
      %v3324 = vadd.f32 0.0, %v3323
      %v3325 = vpop.f32.mrf.mxu0
      %v3326 = vpop.f32.mrf.mxu0
      %v3327 = vpop.f32.mrf.mxu0
      %3328 = vdwg.mxu0
      %v3329 = vlaneseq
      %v3330 = vshrl.u32 %v3329, 7
      %v3331 = vsub.s32 0, %v3330
      %v3332 = vrot.slane %v3324, %v3331
      %v3333 = vadd.f32 %v3278, %v3332
      %v3334 = vadd.f32 %v3279, %v3332
      %v3335 = vld [vmem:[%s15] sm:$0x1]
      %v3337 = vlaneseq
      %v3338 = vshrl.u32 %v3337, 7
      %v3339 = vsub.s32 0, %v3338
      %v3340 = vrot.slane %v3335, %v3339
      %v3342 = vadd.f32 %v3333, %v3340
      %v3343 = vadd.f32 %v3334, %v3340
      %v3344 = vmax.f32 %v3342, 0.0
      %v3345 = vmax.f32 %v3343, 0.0
      %3346 = vst.msk [vmem:[%s1018] sm:$0xff] %vm3080, %v1171
      %3347 = vst.msk [vmem:[%s1018 + $0x8] sm:$0xff] %vm3080, %v1172
      %3348 = vst.msk [vmem:[%s1027] sm:$0xff] %vm3080, %v1777
      %3349 = vst.msk [vmem:[%s1027 + $0x8] sm:$0xff] %vm3080, %v1778
      %3350 = vst.msk [vmem:[%s1036] sm:$0xff] %vm3080, %v2400
      %3351 = vst.msk [vmem:[%s1036 + $0x8] sm:$0xff] %vm3080, %v2401
      %3352 = vst.msk [vmem:[%s1045] sm:$0xff] %vm3080, %v3010
      %3353 = vst.msk [vmem:[%s1045 + $0x8] sm:$0xff] %vm3080, %v3011
      %v3354 = vlaneseq
      %v3355 = vshrl.u32 %v3354, 7
      %v3356 = vsub.s32 0, %v3355
      %v3357 = vrot.slane %v3074, %v3356
      %3358 = vst.msk [vmem:[%s1054] sm:$0xff] %vm3080, %v3357
      %3359 = vst.msk [vmem:[%s1054 + $0x8] sm:$0xff] %vm3080, %v3357
      %3360 = vst.msk [vmem:[%s1063] sm:$0xff] %vm3080, %v3344
      %3361 = vst.msk [vmem:[%s1063 + $0x8] sm:$0xff] %vm3080, %v3345
      %p3362 = scmp.lt.s32.totalorder %s37, 1
      %s3363 = scalar_select %p3362, %s37, 1
      %p3364 = scmp.lt.s32.totalorder %s38, 15
      %s3365 = scalar_select %p3364, %s38, 15
      %s3366 = smul.addr %s3365, 2
      %s3367 = smul.addr %s3363, 32
      %s3368 = sadd.s32 %s3366, %s3367
      %s3369 = smul.addr %s3368, 8
      %s3370 = scalar_lea.vmem %s16, %s3369
      %p3371 = scmp.lt.s32.totalorder %s37, 1
      %s3372 = scalar_select %p3371, %s37, 1
      %p3373 = scmp.lt.s32.totalorder %s38, 15
      %s3374 = scalar_select %p3373, %s38, 15
      %s3375 = smul.addr %s3374, 2
      %s3376 = smul.addr %s3372, 32
      %s3377 = sadd.s32 %s3375, %s3376
      %s3378 = smul.addr %s3377, 8
      %s3379 = scalar_lea.vmem %s17, %s3378
      %p3380 = scmp.lt.s32.totalorder %s37, 1
      %s3381 = scalar_select %p3380, %s37, 1
      %p3382 = scmp.lt.s32.totalorder %s38, 15
      %s3383 = scalar_select %p3382, %s38, 15
      %s3384 = smul.addr %s3383, 2
      %s3385 = smul.addr %s3381, 32
      %s3386 = sadd.s32 %s3384, %s3385
      %s3387 = smul.addr %s3386, 8
      %s3388 = scalar_lea.vmem %s18, %s3387
      %p3389 = scmp.lt.s32.totalorder %s37, 1
      %s3390 = scalar_select %p3389, %s37, 1
      %p3391 = scmp.lt.s32.totalorder %s38, 15
      %s3392 = scalar_select %p3391, %s38, 15
      %s3393 = smul.addr %s3392, 2
      %s3394 = smul.addr %s3390, 32
      %s3395 = sadd.s32 %s3393, %s3394
      %s3396 = smul.addr %s3395, 8
      %s3397 = scalar_lea.vmem %s19, %s3396
      %p3398 = scmp.lt.s32.totalorder %s37, 1
      %s3399 = scalar_select %p3398, %s37, 1
      %p3400 = scmp.lt.s32.totalorder %s38, 15
      %s3401 = scalar_select %p3400, %s38, 15
      %s3402 = smul.addr %s3401, 2
      %s3403 = smul.addr %s3399, 32
      %s3404 = sadd.s32 %s3402, %s3403
      %s3405 = smul.addr %s3404, 8
      %s3406 = scalar_lea.vmem %s20, %s3405
      %p3407 = scmp.lt.s32.totalorder %s37, 1
      %s3408 = scalar_select %p3407, %s37, 1
      %p3409 = scmp.lt.s32.totalorder %s38, 15
      %s3410 = scalar_select %p3409, %s38, 15
      %s3411 = smul.addr %s3410, 2
      %s3412 = smul.addr %s3408, 32
      %s3413 = sadd.s32 %s3411, %s3412
      %s3414 = smul.addr %s3413, 8
      %s3415 = scalar_lea.vmem %s21, %s3414
      // Predicated region
      $region85: #{aspp_forward.1} parent=83 // pred_check
        %p3416 = pneg %p467
      $region86: #{aspp_forward.1} parent=83 // pred_check_branch
        %3418 = sbr.rel (%p3416) target = $region88
      $region87: #{aspp_forward.1} parent=83 // pred_region
        _
      $region88: #{aspp_forward.1} parent=83 // pred_fallthru
        _
      // Predicated region
      $region89: #{aspp_forward.1} parent=83 // pred_check
        %p3419 = pneg %p495
      $region90: #{aspp_forward.1} parent=83 // pred_check_branch
        %3421 = sbr.rel (%p3419) target = $region92
      $region91: #{aspp_forward.1} parent=83 // pred_region
        _
      $region92: #{aspp_forward.1} parent=83 // pred_fallthru
        _
      // Predicated region
      $region93: #{aspp_forward.1} parent=83 // pred_check
        %p3422 = pneg %p523
      $region94: #{aspp_forward.1} parent=83 // pred_check_branch
        %3424 = sbr.rel (%p3422) target = $region96
      $region95: #{aspp_forward.1} parent=83 // pred_region
        _
      $region96: #{aspp_forward.1} parent=83 // pred_fallthru
        _
      // Predicated region
      $region97: #{aspp_forward.1} parent=83 // pred_check
        %p3425 = pneg %p551
      $region98: #{aspp_forward.1} parent=83 // pred_check_branch
        %3427 = sbr.rel (%p3425) target = $region100
      $region99: #{aspp_forward.1} parent=83 // pred_region
        _
      $region100: #{aspp_forward.1} parent=83 // pred_fallthru
        _
      // Predicated region
      $region101: #{aspp_forward.1} parent=83 // pred_check
        %p3428 = pneg %p579
      $region102: #{aspp_forward.1} parent=83 // pred_check_branch
        %3430 = sbr.rel (%p3428) target = $region104
      $region103: #{aspp_forward.1} parent=83 // pred_region
        _
      $region104: #{aspp_forward.1} parent=83 // pred_fallthru
        _
      // Predicated region
      $region105: #{aspp_forward.1} parent=83 // pred_check
        %p3431 = pneg %p607
      $region106: #{aspp_forward.1} parent=83 // pred_check_branch
        %3433 = sbr.rel (%p3431) target = $region108
      $region107: #{aspp_forward.1} parent=83 // pred_region
        _
      $region108: #{aspp_forward.1} parent=83 // pred_fallthru
        _
    $region84: #{aspp_forward.1} parent=5 // pred_fallthru
      _
    %p3434 = scmp.le.s32.totalorder 2, %s28
    // Predicated region
    $region109: #{aspp_forward.1} parent=5 // pred_check
      %p3435 = pneg %p3434
    $region110: #{aspp_forward.1} parent=5 // pred_check_branch
      %3437 = sbr.rel (%p3435) target = $region112
    $region111: #{aspp_forward.1} parent=5 // pred_region
      %s3438 = ssub.s32 %s28, 2
      // Predicated region
      $region113: #{aspp_forward.1} parent=111 // pred_check
        %p3439 = pneg %p473
      $region114: #{aspp_forward.1} parent=111 // pred_check_branch
        %3441 = sbr.rel (%p3439) target = $region116
      $region115: #{aspp_forward.1} parent=111 // pred_region
        %p3442 = scmp.lt.s32.totalorder %s39, 1
        %s3443 = scalar_select %p3442, %s39, 1
        %p3444 = scmp.lt.s32.totalorder %s40, 15
        %s3445 = scalar_select %p3444, %s40, 15
        %s3446 = smul.addr %s3445, 2
        %s3447 = smul.addr %s3443, 32
        %s3448 = sadd.s32 %s3446, %s3447
        %s3449 = smul.addr %s3448, 8
        %s3450 = scalar_lea.vmem %s16, %s3449
      $region116: #{aspp_forward.1} parent=111 // pred_fallthru
        _
      // Predicated region
      $region117: #{aspp_forward.1} parent=111 // pred_check
        %p3451 = pneg %p501
      $region118: #{aspp_forward.1} parent=111 // pred_check_branch
        %3453 = sbr.rel (%p3451) target = $region120
      $region119: #{aspp_forward.1} parent=111 // pred_region
        %p3454 = scmp.lt.s32.totalorder %s39, 1
        %s3455 = scalar_select %p3454, %s39, 1
        %p3456 = scmp.lt.s32.totalorder %s40, 15
        %s3457 = scalar_select %p3456, %s40, 15
        %s3458 = smul.addr %s3457, 2
        %s3459 = smul.addr %s3455, 32
        %s3460 = sadd.s32 %s3458, %s3459
        %s3461 = smul.addr %s3460, 8
        %s3462 = scalar_lea.vmem %s17, %s3461
      $region120: #{aspp_forward.1} parent=111 // pred_fallthru
        _
      // Predicated region
      $region121: #{aspp_forward.1} parent=111 // pred_check
        %p3463 = pneg %p529
      $region122: #{aspp_forward.1} parent=111 // pred_check_branch
        %3465 = sbr.rel (%p3463) target = $region124
      $region123: #{aspp_forward.1} parent=111 // pred_region
        %p3466 = scmp.lt.s32.totalorder %s39, 1
        %s3467 = scalar_select %p3466, %s39, 1
        %p3468 = scmp.lt.s32.totalorder %s40, 15
        %s3469 = scalar_select %p3468, %s40, 15
        %s3470 = smul.addr %s3469, 2
        %s3471 = smul.addr %s3467, 32
        %s3472 = sadd.s32 %s3470, %s3471
        %s3473 = smul.addr %s3472, 8
        %s3474 = scalar_lea.vmem %s18, %s3473
      $region124: #{aspp_forward.1} parent=111 // pred_fallthru
        _
      // Predicated region
      $region125: #{aspp_forward.1} parent=111 // pred_check
        %p3475 = pneg %p557
      $region126: #{aspp_forward.1} parent=111 // pred_check_branch
        %3477 = sbr.rel (%p3475) target = $region128
      $region127: #{aspp_forward.1} parent=111 // pred_region
        %p3478 = scmp.lt.s32.totalorder %s39, 1
        %s3479 = scalar_select %p3478, %s39, 1
        %p3480 = scmp.lt.s32.totalorder %s40, 15
        %s3481 = scalar_select %p3480, %s40, 15
        %s3482 = smul.addr %s3481, 2
        %s3483 = smul.addr %s3479, 32
        %s3484 = sadd.s32 %s3482, %s3483
        %s3485 = smul.addr %s3484, 8
        %s3486 = scalar_lea.vmem %s19, %s3485
      $region128: #{aspp_forward.1} parent=111 // pred_fallthru
        _
      // Predicated region
      $region129: #{aspp_forward.1} parent=111 // pred_check
        %p3487 = pneg %p585
      $region130: #{aspp_forward.1} parent=111 // pred_check_branch
        %3489 = sbr.rel (%p3487) target = $region132
      $region131: #{aspp_forward.1} parent=111 // pred_region
        %p3490 = scmp.lt.s32.totalorder %s39, 1
        %s3491 = scalar_select %p3490, %s39, 1
        %p3492 = scmp.lt.s32.totalorder %s40, 15
        %s3493 = scalar_select %p3492, %s40, 15
        %s3494 = smul.addr %s3493, 2
        %s3495 = smul.addr %s3491, 32
        %s3496 = sadd.s32 %s3494, %s3495
        %s3497 = smul.addr %s3496, 8
        %s3498 = scalar_lea.vmem %s20, %s3497
      $region132: #{aspp_forward.1} parent=111 // pred_fallthru
        _
      // Predicated region
      $region133: #{aspp_forward.1} parent=111 // pred_check
        %p3499 = pneg %p613
      $region134: #{aspp_forward.1} parent=111 // pred_check_branch
        %3501 = sbr.rel (%p3499) target = $region136
      $region135: #{aspp_forward.1} parent=111 // pred_region
        %p3502 = scmp.lt.s32.totalorder %s39, 1
        %s3503 = scalar_select %p3502, %s39, 1
        %p3504 = scmp.lt.s32.totalorder %s40, 15
        %s3505 = scalar_select %p3504, %s40, 15
        %s3506 = smul.addr %s3505, 2
        %s3507 = smul.addr %s3503, 32
        %s3508 = sadd.s32 %s3506, %s3507
        %s3509 = smul.addr %s3508, 8
        %s3510 = scalar_lea.vmem %s21, %s3509
      $region136: #{aspp_forward.1} parent=111 // pred_fallthru
        _
    $region112: #{aspp_forward.1} parent=5 // pred_fallthru
      _
  $region6: #{aspp_forward.1} parent=0 // loop_footer
    %s32 = sadd.s32 1, %s28
  $region7: #{aspp_forward.1} parent=0 // loop_footer_branch
    %27 = sbr.rel target = $region3
  $region8: #{aspp_forward.1} parent=0 // loop_exit
    _

</llo_original>
